<compile_context>
chip_gen: v7x
topology: tpu7x:2x2x1
jax: 0.10.0
libtpu: 0.0.40
codegen_flags: <defaults>
</compile_context>

<pallas_src>
import functools
import math

import jax
import jax.numpy as jnp
from jax.experimental import pallas as pl
from jax.experimental.pallas import tpu as pltpu


# ----------------------------------------------------------------------------
# helpers
# ----------------------------------------------------------------------------
def _round_up(n, m):
    return ((n + m - 1) // m) * m


def _pad2d(x, rows, cols):
    r, c = x.shape
    if r == rows and c == cols:
        return x
    return jnp.pad(x, ((0, rows - r), (0, cols - c)))


def _pad_row(v, cols):
    n = v.shape[0]
    v = v if n == cols else jnp.pad(v, (0, cols - n))
    return v.reshape(1, cols)


# Tile caps: conservative so double-buffered blocks fit v7x's 64 MiB VMEM as
# well as v5e/v6e; they shrink automatically for small problems.
_TM, _TN, _TK = 256, 256, 512


# ----------------------------------------------------------------------------
# Pallas kernels: tiled linear (+ optional ReLU) and linear+residual+LayerNorm
# ----------------------------------------------------------------------------
def _matmul_kernel(x_ref, w_ref, b_ref, o_ref, acc_ref, *, relu):
    @pl.when(pl.program_id(2) == 0)
    def _():
        acc_ref[...] = jnp.zeros_like(acc_ref)

    acc_ref[...] += jnp.dot(
        x_ref[...].astype(jnp.bfloat16),
        w_ref[...].astype(jnp.bfloat16),
        preferred_element_type=jnp.float32,
    )

    @pl.when(pl.program_id(2) == pl.num_programs(2) - 1)
    def _():
        y = acc_ref[...] + b_ref[...]
        if relu:
            y = jnp.maximum(y, 0.0)
        o_ref[...] = y.astype(o_ref.dtype)


def linear(x, w, b, relu=False):
    """y = x @ w + b (optional ReLU).  x:(M,K) f32, w:(K,N), b:(N,) -> (M,N) f32."""
    M, K = x.shape
    N = w.shape[1]
    tm = min(_TM, _round_up(M, 8))
    tn = min(_TN, _round_up(N, 128))
    tk = min(_TK, _round_up(K, 128))
    Mp, Kp, Np = _round_up(M, tm), _round_up(K, tk), _round_up(N, tn)

    xp = _pad2d(x, Mp, Kp)
    wp = _pad2d(w, Kp, Np).astype(jnp.bfloat16)
    bp = _pad_row(b, Np)

    out = pl.pallas_call(
        functools.partial(_matmul_kernel, relu=relu),
        out_shape=jax.ShapeDtypeStruct((Mp, Np), jnp.float32),
        grid=(Mp // tm, Np // tn, Kp // tk),
        in_specs=[
            pl.BlockSpec((tm, tk), lambda i, j, k: (i, k)),
            pl.BlockSpec((tk, tn), lambda i, j, k: (k, j)),
            pl.BlockSpec((1, tn), lambda i, j, k: (0, j)),
        ],
        out_specs=pl.BlockSpec((tm, tn), lambda i, j, k: (i, j)),
        scratch_shapes=[pltpu.VMEM((tm, tn), jnp.float32)],
        compiler_params=pltpu.CompilerParams(
            dimension_semantics=("parallel", "parallel", "arbitrary")),
    )(xp, wp, bp)
    if Mp != M or Np != N:
        out = out[:M, :N]
    return out


def _matmul_res_ln_kernel(x_ref, w_ref, b_ref, r_ref, g_ref, bb_ref,
                          o_ref, acc_ref, *, n_real, eps):
    @pl.when(pl.program_id(1) == 0)
    def _():
        acc_ref[...] = jnp.zeros_like(acc_ref)

    acc_ref[...] += jnp.dot(
        x_ref[...].astype(jnp.bfloat16),
        w_ref[...].astype(jnp.bfloat16),
        preferred_element_type=jnp.float32,
    )

    @pl.when(pl.program_id(1) == pl.num_programs(1) - 1)
    def _():
        z = acc_ref[...] + b_ref[...] + r_ref[...]
        n_pad = z.shape[-1]
        inv_n = jnp.float32(1.0 / n_real)
        if n_pad == n_real:                       # lane-aligned model dim
            mu = jnp.mean(z, axis=-1, keepdims=True)
            d = z - mu
            var = jnp.mean(d * d, axis=-1, keepdims=True)
        else:                                     # ignore zero-padded columns
            cmask = (jax.lax.broadcasted_iota(jnp.int32, z.shape, 1)
                     < n_real).astype(jnp.float32)
            mu = jnp.sum(z * cmask, axis=-1, keepdims=True) * inv_n
            d = (z - mu) * cmask
            var = jnp.sum(d * d, axis=-1, keepdims=True) * inv_n
        y = (z - mu) * jax.lax.rsqrt(var + eps) * g_ref[...] + bb_ref[...]
        o_ref[...] = y.astype(o_ref.dtype)


def linear_res_ln(x, w, b, residual, gamma, beta, eps=1e-5):
    """LayerNorm(residual + x @ w + b).  N (model dim) is kept whole for the LN
    epilogue; M and K are tiled/pipelined."""
    M, K = x.shape
    N = w.shape[1]
    tm = min(128, _round_up(M, 8))
    tk = min(_TK, _round_up(K, 128))
    Np = _round_up(N, 128)
    Mp, Kp = _round_up(M, tm), _round_up(K, tk)

    xp = _pad2d(x, Mp, Kp)
    wp = _pad2d(w, Kp, Np).astype(jnp.bfloat16)
    rp = _pad2d(residual, Mp, Np)
    bp = _pad_row(b, Np)
    gp = _pad_row(gamma, Np)
    btp = _pad_row(beta, Np)

    out = pl.pallas_call(
        functools.partial(_matmul_res_ln_kernel, n_real=N, eps=eps),
        out_shape=jax.ShapeDtypeStruct((Mp, Np), jnp.float32),
        grid=(Mp // tm, Kp // tk),
        in_specs=[
            pl.BlockSpec((tm, tk), lambda i, k: (i, k)),
            pl.BlockSpec((tk, Np), lambda i, k: (k, 0)),
            pl.BlockSpec((1, Np), lambda i, k: (0, 0)),
            pl.BlockSpec((tm, Np), lambda i, k: (i, 0)),
            pl.BlockSpec((1, Np), lambda i, k: (0, 0)),
            pl.BlockSpec((1, Np), lambda i, k: (0, 0)),
        ],
        out_specs=pl.BlockSpec((tm, Np), lambda i, k: (i, 0)),
        scratch_shapes=[pltpu.VMEM((tm, Np), jnp.float32)],
        compiler_params=pltpu.CompilerParams(
            dimension_semantics=("parallel", "arbitrary")),
    )(xp, wp, bp, rp, gp, btp)
    if Mp != M or Np != N:
        out = out[:M, :N]
    return out


# ----------------------------------------------------------------------------
# Pallas kernels: attention (self consumes fused QKV slab; cross consumes
# fused KV slab).  One invocation per batch element, all heads in-kernel.
# ----------------------------------------------------------------------------
def _mha_heads(q, k, v, keep, n_heads, dh):
    """q:(Sq,D) pre-scaled f32, k/v:(Sk,D) f32, keep: bool (Sq,Sk) or (1,Sk)."""
    neg = jnp.float32(-1e9)
    # TODO(synk): for long sequences, flash-tile over Sk instead of holding the
    # full (Sq, Sk) score matrix per head in VMEM.
    outs = []
    for h in range(n_heads):                      # static unroll over heads
        sl = slice(h * dh, (h + 1) * dh)
        qh = q[:, sl].astype(jnp.bfloat16)
        kh = k[:, sl].astype(jnp.bfloat16)
        vh = v[:, sl].astype(jnp.bfloat16)
        # contract Dh directly (no explicit K transpose)
        s = jax.lax.dot_general(qh, kh, (((1,), (1,)), ((), ())),
                                preferred_element_type=jnp.float32)   # (Sq,Sk)
        s = jnp.where(keep, s, neg)
        m = jnp.max(s, axis=-1, keepdims=True)
        p = jnp.exp(s - m)
        inv = pl.reciprocal(jnp.sum(p, axis=-1, keepdims=True), approx=True)
        ctx = jax.lax.dot_general(p.astype(jnp.bfloat16), vh,
                                  (((1,), (0,)), ((), ())),
                                  preferred_element_type=jnp.float32)  # (Sq,Dh)
        outs.append(ctx * inv)
    return jnp.concatenate(outs, axis=-1)         # (Sq, D)


def _self_attn_kernel(qkv_ref, qm_ref, km_ref, o_ref, *, n_heads, scale, causal):
    # qkv_ref: (1, S, 3D) fused QKV slab; qm_ref: (1, S, 1); km_ref: (1, 1, S)
    s_len = qkv_ref.shape[1]
    d = o_ref.shape[2]
    dh = d // n_heads

    qkv = qkv_ref[0]                              # (S, 3D)
    q = qkv[:, :d] * jnp.float32(scale)
    k = qkv[:, d:2 * d]
    v = qkv[:, 2 * d:3 * d]

    keep = qm_ref[0] * km_ref[0]                  # (S,1)*(1,S) -> (S,S)
    if causal:
        rows = jax.lax.broadcasted_iota(jnp.int32, (s_len, s_len), 0)
        cols = jax.lax.broadcasted_iota(jnp.int32, (s_len, s_len), 1)
        keep = keep * (cols <= rows).astype(jnp.float32)
    keep = keep > 0.5

    o_ref[0] = _mha_heads(q, k, v, keep, n_heads, dh).astype(o_ref.dtype)


def self_attention(qkv, q_keep, kv_keep, n_heads, causal):
    """qkv:(B,S,3D), q_keep:(B,S,1), kv_keep:(B,1,S) -> (B,S,D)."""
    B, S, D3 = qkv.shape
    D = D3 // 3
    scale = 1.0 / math.sqrt(D // n_heads)
    return pl.pallas_call(
        functools.partial(_self_attn_kernel, n_heads=n_heads, scale=scale,
                          causal=causal),
        out_shape=jax.ShapeDtypeStruct((B, S, D), jnp.float32),
        grid=(B,),
        in_specs=[
            pl.BlockSpec((1, S, D3), lambda b: (b, 0, 0)),
            pl.BlockSpec((1, S, 1), lambda b: (b, 0, 0)),
            pl.BlockSpec((1, 1, S), lambda b: (b, 0, 0)),
        ],
        out_specs=pl.BlockSpec((1, S, D), lambda b: (b, 0, 0)),
        compiler_params=pltpu.CompilerParams(
            dimension_semantics=("parallel",)),
    )(qkv, q_keep, kv_keep)


def _cross_attn_kernel(q_ref, kv_ref, km_ref, o_ref, *, n_heads, scale):
    # q_ref: (1, Sq, D); kv_ref: (1, Sk, 2D) fused KV slab; km_ref: (1, 1, Sk)
    d = o_ref.shape[2]
    dh = d // n_heads

    q = q_ref[0] * jnp.float32(scale)             # (Sq, D)
    kv = kv_ref[0]                                # (Sk, 2D)
    k = kv[:, :d]
    v = kv[:, d:2 * d]

    keep = km_ref[0] > 0.5                        # (1, Sk): broadcasts over Sq
    o_ref[0] = _mha_heads(q, k, v, keep, n_heads, dh).astype(o_ref.dtype)


def cross_attention(q, kv, kv_keep, n_heads):
    """q:(B,Sq,D), kv:(B,Sk,2D), kv_keep:(B,1,Sk) -> (B,Sq,D)."""
    B, Sq, D = q.shape
    Sk = kv.shape[1]
    scale = 1.0 / math.sqrt(D // n_heads)
    return pl.pallas_call(
        functools.partial(_cross_attn_kernel, n_heads=n_heads, scale=scale),
        out_shape=jax.ShapeDtypeStruct((B, Sq, D), jnp.float32),
        grid=(B,),
        in_specs=[
            pl.BlockSpec((1, Sq, D), lambda b: (b, 0, 0)),
            pl.BlockSpec((1, Sk, 2 * D), lambda b: (b, 0, 0)),
            pl.BlockSpec((1, 1, Sk), lambda b: (b, 0, 0)),
        ],
        out_specs=pl.BlockSpec((1, Sq, D), lambda b: (b, 0, 0)),
        compiler_params=pltpu.CompilerParams(
            dimension_semantics=("parallel",)),
    )(q, kv, kv_keep)


# ----------------------------------------------------------------------------
# Model (parameters + glue in plain JAX; all hot paths in the kernels above)
# ----------------------------------------------------------------------------
def sinusoidal_pe(max_seq_length, d):
    pos = jnp.arange(max_seq_length, dtype=jnp.float32)[:, None]
    i = jnp.arange(0, d, 2, dtype=jnp.float32)[None, :]
    div = jnp.exp(-math.log(10000.0) * i / d)
    pe = jnp.zeros((max_seq_length, d), jnp.float32)
    pe = pe.at[:, 0::2].set(jnp.sin(pos * div))
    pe = pe.at[:, 1::2].set(jnp.cos(pos * div))
    return pe


def init_params(key, src_vocab, tgt_vocab, d, n_heads, n_layers, d_ff, max_seq):
    def nrm(k, shape, scale=0.02, dtype=jnp.bfloat16):
        return (scale * jax.random.normal(k, shape)).astype(dtype)

    keys = iter(jax.random.split(key, 8 + n_layers * 32))
    p = {
        "enc_emb": nrm(next(keys), (src_vocab, d), 1.0, jnp.float32),
        "dec_emb": nrm(next(keys), (tgt_vocab, d), 1.0, jnp.float32),
        "pe": sinusoidal_pe(max_seq, d),
        "out_w": nrm(next(keys), (d, tgt_vocab)),
        "out_b": jnp.zeros((tgt_vocab,), jnp.float32),
        "enc": [],
        "dec": [],
    }

    def self_attn_params():
        return {
            "w_qkv": nrm(next(keys), (d, 3 * d)),
            "b_qkv": jnp.zeros((3 * d,), jnp.float32),
            "wo": nrm(next(keys), (d, d)), "bo": jnp.zeros((d,), jnp.float32),
        }

    def cross_attn_params():
        return {
            "wq": nrm(next(keys), (d, d)), "bq": jnp.zeros((d,), jnp.float32),
            "w_kv": nrm(next(keys), (d, 2 * d)),
            "b_kv": jnp.zeros((2 * d,), jnp.float32),
            "wo": nrm(next(keys), (d, d)), "bo": jnp.zeros((d,), jnp.float32),
        }

    def ff_params():
        return {
            "w1": nrm(next(keys), (d, d_ff)), "b1": jnp.zeros((d_ff,), jnp.float32),
            "w2": nrm(next(keys), (d_ff, d)), "b2": jnp.zeros((d,), jnp.float32),
        }

    def ln_params():
        return {"g": jnp.ones((d,), jnp.float32), "b": jnp.zeros((d,), jnp.float32)}

    for _ in range(n_layers):
        p["enc"].append({"attn": self_attn_params(), "ff": ff_params(),
                         "ln1": ln_params(), "ln2": ln_params()})
    for _ in range(n_layers):
        p["dec"].append({"self_attn": self_attn_params(),
                         "cross_attn": cross_attn_params(),
                         "ff": ff_params(), "ln1": ln_params(),
                         "ln2": ln_params(), "ln3": ln_params()})
    return p


def mha_self(p, x, q_keep, kv_keep, causal, ln, n_heads):
    """Fused QKV projection -> attention -> (wo + residual + LayerNorm)."""
    B, S, D = x.shape
    x2 = x.reshape(B * S, D)
    qkv = linear(x2, p["w_qkv"], p["b_qkv"]).reshape(B, S, 3 * D)
    ctx = self_attention(qkv, q_keep, kv_keep, n_heads, causal)
    out = linear_res_ln(ctx.reshape(B * S, D), p["wo"], p["bo"],
                        x2, ln["g"], ln["b"])
    return out.reshape(B, S, D)


def mha_cross(p, x, enc, kv_keep, ln, n_heads):
    """Q projection + fused KV projection -> attention -> (wo + res + LN)."""
    B, Sq, D = x.shape
    Sk = enc.shape[1]
    x2 = x.reshape(B * Sq, D)
    q = linear(x2, p["wq"], p["bq"]).reshape(B, Sq, D)
    kv = linear(enc.reshape(B * Sk, D), p["w_kv"], p["b_kv"]).reshape(B, Sk, 2 * D)
    ctx = cross_attention(q, kv, kv_keep, n_heads)
    out = linear_res_ln(ctx.reshape(B * Sq, D), p["wo"], p["bo"],
                        x2, ln["g"], ln["b"])
    return out.reshape(B, Sq, D)


def feed_forward(p, x, ln):
    B, S, D = x.shape
    x2 = x.reshape(B * S, D)
    h = linear(x2, p["w1"], p["b1"], relu=True)
    out = linear_res_ln(h, p["w2"], p["b2"], x2, ln["g"], ln["b"])
    return out.reshape(B, S, D)


def encoder_block(p, x, src_kv_keep, n_heads):
    B, S, _ = x.shape
    q_keep = jnp.ones((B, S, 1), jnp.float32)
    x = mha_self(p["attn"], x, q_keep, src_kv_keep, False, p["ln1"], n_heads)
    x = feed_forward(p["ff"], x, p["ln2"])
    return x


def decoder_block(p, x, enc, src_kv_keep, tgt_q_keep, n_heads):
    B, St, _ = x.shape
    ones_kv = jnp.ones((B, 1, St), jnp.float32)
    x = mha_self(p["self_attn"], x, tgt_q_keep, ones_kv, True, p["ln1"], n_heads)
    x = mha_cross(p["cross_attn"], x, enc, src_kv_keep, p["ln2"], n_heads)
    x = feed_forward(p["ff"], x, p["ln3"])
    return x


def vanilla_transformer_forward(params, src, tgt, n_heads):
    """src: (B, Ss) int32, tgt: (B, St) int32 -> (B, St, tgt_vocab) float32."""
    B, Ss = src.shape
    St = tgt.shape[1]
    D = params["enc_emb"].shape[1]

    # mask flags (same semantics as generate_mask):
    #   encoder / cross-attn:   keys with src==0 are masked
    #   decoder self-attn:      query rows with tgt==0 are masked + causal
    src_kv_keep = (src != 0).astype(jnp.float32).reshape(B, 1, Ss)
    tgt_q_keep = (tgt != 0).astype(jnp.float32).reshape(B, St, 1)

    # embeddings + positional encoding (gather + add: glue, not hot path)
    src_x = params["enc_emb"][src] + params["pe"][None, :Ss, :]
    tgt_x = params["dec_emb"][tgt] + params["pe"][None, :St, :]

    enc_out = src_x
    for lp in params["enc"]:
        enc_out = encoder_block(lp, enc_out, src_kv_keep, n_heads)

    dec_out = tgt_x
    for lp in params["dec"]:
        dec_out = decoder_block(lp, dec_out, enc_out, src_kv_keep,
                                tgt_q_keep, n_heads)

    out = linear(dec_out.reshape(B * St, D), params["out_w"], params["out_b"])
    return out.reshape(B, St, params["out_w"].shape[1])


# ----------------------------------------------------------------------------
if __name__ == "__main__":
    # small configuration
    SRC_VOCAB = 48
    TGT_VOCAB = 48
    EMBED_DIM = 32
    MAX_SEQ = 16
    N_HEADS = 4
    N_LAYERS = 2
    D_FF = 64
    B, S_SRC, S_TGT = 2, 8, 8

    key = jax.random.PRNGKey(0)
    k_param, k_src, k_tgt = jax.random.split(key, 3)

    params = init_params(k_param, SRC_VOCAB, TGT_VOCAB, EMBED_DIM,
                         N_HEADS, N_LAYERS, D_FF, MAX_SEQ)

    # token ids (0 is the pad token and participates in masking)
    src = jax.random.randint(k_src, (B, S_SRC), 0, SRC_VOCAB, dtype=jnp.int32)
    tgt = jax.random.randint(k_tgt, (B, S_TGT), 0, TGT_VOCAB, dtype=jnp.int32)

    fwd = jax.jit(functools.partial(vanilla_transformer_forward, n_heads=N_HEADS))
    out = jax.block_until_ready(fwd(params, src, tgt))

    assert out.shape == (B, S_TGT, TGT_VOCAB), out.shape
    assert bool(jnp.all(jnp.isfinite(out)))
    print("KERNEL_OK")
</pallas_src>

<mosaic_0001>
module attributes {stable_mosaic.version = 11 : i64} {
  func.func @_matmul_kernel(%arg0: i32, %arg1: i32, %arg2: i32, %arg3: memref<16x128xf32, #tpu.memory_space<vmem>>, %arg4: memref<128x128xbf16, #tpu.memory_space<vmem>>, %arg5: memref<1x128xf32, #tpu.memory_space<vmem>>, %arg6: memref<16x128xf32, #tpu.memory_space<vmem>>, %arg7: memref<16x128xf32, #tpu.memory_space<vmem>>) attributes {dimension_semantics = [#tpu.dimension_semantics<parallel>, #tpu.dimension_semantics<parallel>, #tpu.dimension_semantics<arbitrary>], iteration_bounds = array<i64: 1, 1, 1>, scalar_prefetch = 0 : i64, scratch_operands = 1 : i64, tpu.core_type = #tpu.core_type<tc>, window_params = [{transform_indices = @transform_0, window_bounds = array<i64: 16, 128>}, {transform_indices = @transform_1, window_bounds = array<i64: 128, 128>}, {transform_indices = @transform_2, window_bounds = array<i64: 1, 128>}, {transform_indices = @transform_3, window_bounds = array<i64: 16, 128>}]} {
    %c0_i32 = arith.constant 0 : i32
    %0 = arith.cmpi eq, %arg2, %c0_i32 : i32
    %1 = arith.extui %0 : i1 to i32
    %c0_i32_0 = arith.constant 0 : i32
    %2 = arith.cmpi ne, %1, %c0_i32_0 : i32
    scf.if %2 {
      %cst_10 = arith.constant 0.000000e+00 : f32
      %13 = vector.broadcast %cst_10 : f32 to vector<16x128xf32>
      %c0_11 = arith.constant 0 : index
      %c0_12 = arith.constant 0 : index
      %14 = vector.load %arg7[%c0_11, %c0_12] : memref<16x128xf32, #tpu.memory_space<vmem>>, vector<16x128xf32>
      tpu.vector_store %arg7[%c0_11, %c0_12], %13 {strides = array<i32>} : memref<16x128xf32, #tpu.memory_space<vmem>>, vector<16x128xf32>,
    } else {
    }
    %c0 = arith.constant 0 : index
    %c0_1 = arith.constant 0 : index
    %3 = vector.load %arg7[%c0, %c0_1] : memref<16x128xf32, #tpu.memory_space<vmem>>, vector<16x128xf32>
    %c0_2 = arith.constant 0 : index
    %c0_3 = arith.constant 0 : index
    %4 = vector.load %arg3[%c0_2, %c0_3] : memref<16x128xf32, #tpu.memory_space<vmem>>, vector<16x128xf32>
    %5 = arith.truncf %4 : vector<16x128xf32> to vector<16x128xbf16>
    %c0_4 = arith.constant 0 : index
    %c0_5 = arith.constant 0 : index
    %6 = vector.load %arg4[%c0_4, %c0_5] : memref<128x128xbf16, #tpu.memory_space<vmem>>, vector<128x128xbf16>
    %cst = arith.constant dense<0.000000e+00> : vector<16x128xf32>
    %7 = tpu.matmul %5, %6, %cst {dimension_numbers = #tpu.dot_dimension_numbers<[1], [0], [0], [1], [0, 0, 1, 1], [], []>} : vector<16x128xbf16>, vector<128x128xbf16>, vector<16x128xf32> -> vector<16x128xf32>
    %8 = arith.addf %3, %7 : vector<16x128xf32>
    %c0_6 = arith.constant 0 : index
    %c0_7 = arith.constant 0 : index
    %9 = vector.load %arg7[%c0_6, %c0_7] : memref<16x128xf32, #tpu.memory_space<vmem>>, vector<16x128xf32>
    tpu.vector_store %arg7[%c0_6, %c0_7], %8 {strides = array<i32>} : memref<16x128xf32, #tpu.memory_space<vmem>>, vector<16x128xf32>,
    %c0_i32_8 = arith.constant 0 : i32
    %10 = arith.cmpi eq, %arg2, %c0_i32_8 : i32
    %11 = arith.extui %10 : i1 to i32
    %c0_i32_9 = arith.constant 0 : i32
    %12 = arith.cmpi ne, %11, %c0_i32_9 : i32
    scf.if %12 {
      %c0_10 = arith.constant 0 : index
      %c0_11 = arith.constant 0 : index
      %13 = vector.load %arg7[%c0_10, %c0_11] : memref<16x128xf32, #tpu.memory_space<vmem>>, vector<16x128xf32>
      %c0_12 = arith.constant 0 : index
      %c0_13 = arith.constant 0 : index
      %14 = vector.load %arg5[%c0_12, %c0_13] : memref<1x128xf32, #tpu.memory_space<vmem>>, vector<1x128xf32>
      %15 = vector.broadcast %14 : vector<1x128xf32> to vector<16x128xf32>
      %16 = arith.addf %13, %15 : vector<16x128xf32>
      %c0_14 = arith.constant 0 : index
      %c0_15 = arith.constant 0 : index
      %17 = vector.load %arg6[%c0_14, %c0_15] : memref<16x128xf32, #tpu.memory_space<vmem>>, vector<16x128xf32>
      tpu.vector_store %arg6[%c0_14, %c0_15], %16 {strides = array<i32>} : memref<16x128xf32, #tpu.memory_space<vmem>>, vector<16x128xf32>,
    } else {
    }
    return
  }
  func.func @transform_0(%arg0: i32, %arg1: i32, %arg2: i32) -> (i32, i32) {
    %c0_i32 = arith.constant 0 : i32
    return %arg0, %arg2 : i32, i32
  }
  func.func @transform_1(%arg0: i32, %arg1: i32, %arg2: i32) -> (i32, i32) {
    %c0_i32 = arith.constant 0 : i32
    return %arg2, %arg1 : i32, i32
  }
  func.func @transform_2(%arg0: i32, %arg1: i32, %arg2: i32) -> (i32, i32) {
    %c0_i32 = arith.constant 0 : i32
    %c0_i32_0 = arith.constant 0 : i32
    return %c0_i32, %arg1 : i32, i32
  }
  func.func @transform_3(%arg0: i32, %arg1: i32, %arg2: i32) -> (i32, i32) {
    %c0_i32 = arith.constant 0 : i32
    return %arg0, %arg1 : i32, i32
  }
}

module attributes {stable_mosaic.version = 11 : i64} {
  func.func @_self_attn_kernel(%arg0: i32, %arg1: memref<1x8x96xf32, #tpu.memory_space<vmem>>, %arg2: memref<1x8x1xf32, #tpu.memory_space<vmem>>, %arg3: memref<1x1x8xf32, #tpu.memory_space<vmem>>, %arg4: memref<1x8x32xf32, #tpu.memory_space<vmem>>) attributes {dimension_semantics = [#tpu.dimension_semantics<parallel>], iteration_bounds = array<i64: 2>, scalar_prefetch = 0 : i64, scratch_operands = 0 : i64, tpu.core_type = #tpu.core_type<tc>, window_params = [{transform_indices = @transform_0, window_bounds = array<i64: 1, 8, 96>}, {transform_indices = @transform_1, window_bounds = array<i64: 1, 8, 1>}, {transform_indices = @transform_2, window_bounds = array<i64: 1, 1, 8>}, {transform_indices = @transform_3, window_bounds = array<i64: 1, 8, 32>}]} {
    %c0 = arith.constant 0 : index
    %c0_0 = arith.constant 0 : index
    %c0_1 = arith.constant 0 : index
    %0 = vector.load %arg1[%c0, %c0_0, %c0_1] : memref<1x8x96xf32, #tpu.memory_space<vmem>>, vector<1x8x96xf32>
    %1 = vector.shape_cast %0 : vector<1x8x96xf32> to vector<8x96xf32>
    %2 = vector.extract_strided_slice %1 {offsets = [0, 0], sizes = [8, 32], strides = [1, 1]} : vector<8x96xf32> to vector<8x32xf32>
    %cst = arith.constant 0.353553385 : f32
    %3 = vector.broadcast %cst : f32 to vector<8x32xf32>
    %4 = arith.mulf %2, %3 : vector<8x32xf32>
    %5 = vector.extract_strided_slice %1 {offsets = [0, 32], sizes = [8, 32], strides = [1, 1]} : vector<8x96xf32> to vector<8x32xf32>
    %6 = vector.extract_strided_slice %1 {offsets = [0, 64], sizes = [8, 32], strides = [1, 1]} : vector<8x96xf32> to vector<8x32xf32>
    %c0_2 = arith.constant 0 : index
    %c0_3 = arith.constant 0 : index
    %c0_4 = arith.constant 0 : index
    %7 = vector.load %arg2[%c0_2, %c0_3, %c0_4] : memref<1x8x1xf32, #tpu.memory_space<vmem>>, vector<1x8x1xf32>
    %8 = vector.shape_cast %7 : vector<1x8x1xf32> to vector<8x1xf32>
    %c0_5 = arith.constant 0 : index
    %c0_6 = arith.constant 0 : index
    %c0_7 = arith.constant 0 : index
    %9 = vector.load %arg3[%c0_5, %c0_6, %c0_7] : memref<1x1x8xf32, #tpu.memory_space<vmem>>, vector<1x1x8xf32>
    %10 = vector.shape_cast %9 : vector<1x1x8xf32> to vector<1x8xf32>
    %11 = vector.broadcast %8 : vector<8x1xf32> to vector<8x8xf32>
    %12 = vector.broadcast %10 : vector<1x8xf32> to vector<8x8xf32>
    %13 = arith.mulf %11, %12 : vector<8x8xf32>
    %cst_8 = arith.constant 5.000000e-01 : f32
    %14 = vector.broadcast %cst_8 : f32 to vector<8x8xf32>
    %15 = arith.cmpf ogt, %13, %14 : vector<8x8xf32>
    %16 = vector.extract_strided_slice %4 {offsets = [0, 0], sizes = [8, 8], strides = [1, 1]} : vector<8x32xf32> to vector<8x8xf32>
    %17 = arith.truncf %16 : vector<8x8xf32> to vector<8x8xbf16>
    %18 = vector.extract_strided_slice %5 {offsets = [0, 0], sizes = [8, 8], strides = [1, 1]} : vector<8x32xf32> to vector<8x8xf32>
    %19 = arith.truncf %18 : vector<8x8xf32> to vector<8x8xbf16>
    %20 = vector.extract_strided_slice %6 {offsets = [0, 0], sizes = [8, 8], strides = [1, 1]} : vector<8x32xf32> to vector<8x8xf32>
    %21 = arith.truncf %20 : vector<8x8xf32> to vector<8x8xbf16>
    %cst_9 = arith.constant dense<0.000000e+00> : vector<8x8xf32>
    %22 = tpu.matmul %17, %19, %cst_9 {dimension_numbers = #tpu.dot_dimension_numbers<[1], [1], [0], [0], [0, 0, 1, 0], [], []>} : vector<8x8xbf16>, vector<8x8xbf16>, vector<8x8xf32> -> vector<8x8xf32>
    %cst_10 = arith.constant -1.000000e+09 : f32
    %23 = vector.broadcast %cst_10 : f32 to vector<8x8xf32>
    %24 = arith.select %15, %22, %23 : vector<8x8xi1>, vector<8x8xf32>
    %cst_11 = arith.constant dense<0xFF800000> : vector<8xf32>
    %25 = vector.multi_reduction <maximumf>, %24, %cst_11 [1] : vector<8x8xf32> to vector<8xf32>
    %26 = vector.shape_cast %25 : vector<8xf32> to vector<8x1xf32>
    %27 = vector.broadcast %26 : vector<8x1xf32> to vector<8x8xf32>
    %28 = arith.subf %24, %27 : vector<8x8xf32>
    %29 = math.exp %28 : vector<8x8xf32>
    %cst_12 = arith.constant dense<0.000000e+00> : vector<8xf32>
    %30 = vector.multi_reduction <add>, %29, %cst_12 [1] : vector<8x8xf32> to vector<8xf32>
    %31 = vector.shape_cast %30 : vector<8xf32> to vector<8x1xf32>
    %32 = tpu.reciprocal %31 {approx = true} : vector<8x1xf32> -> vector<8x1xf32>
    %33 = arith.truncf %29 : vector<8x8xf32> to vector<8x8xbf16>
    %cst_13 = arith.constant dense<0.000000e+00> : vector<8x8xf32>
    %34 = tpu.matmul %33, %21, %cst_13 {dimension_numbers = #tpu.dot_dimension_numbers<[1], [0], [0], [1], [0, 0, 1, 1], [], []>} : vector<8x8xbf16>, vector<8x8xbf16>, vector<8x8xf32> -> vector<8x8xf32>
    %35 = vector.broadcast %32 : vector<8x1xf32> to vector<8x8xf32>
    %36 = arith.mulf %34, %35 : vector<8x8xf32>
    %37 = vector.extract_strided_slice %4 {offsets = [0, 8], sizes = [8, 8], strides = [1, 1]} : vector<8x32xf32> to vector<8x8xf32>
    %38 = arith.truncf %37 : vector<8x8xf32> to vector<8x8xbf16>
    %39 = vector.extract_strided_slice %5 {offsets = [0, 8], sizes = [8, 8], strides = [1, 1]} : vector<8x32xf32> to vector<8x8xf32>
    %40 = arith.truncf %39 : vector<8x8xf32> to vector<8x8xbf16>
    %41 = vector.extract_strided_slice %6 {offsets = [0, 8], sizes = [8, 8], strides = [1, 1]} : vector<8x32xf32> to vector<8x8xf32>
    %42 = arith.truncf %41 : vector<8x8xf32> to vector<8x8xbf16>
    %cst_14 = arith.constant dense<0.000000e+00> : vector<8x8xf32>
    %43 = tpu.matmul %38, %40, %cst_14 {dimension_numbers = #tpu.dot_dimension_numbers<[1], [1], [0], [0], [0, 0, 1, 0], [], []>} : vector<8x8xbf16>, vector<8x8xbf16>, vector<8x8xf32> -> vector<8x8xf32>
    %cst_15 = arith.constant -1.000000e+09 : f32
    %44 = vector.broadcast %cst_15 : f32 to vector<8x8xf32>
    %45 = arith.select %15, %43, %44 : vector<8x8xi1>, vector<8x8xf32>
    %cst_16 = arith.constant dense<0xFF800000> : vector<8xf32>
    %46 = vector.multi_reduction <maximumf>, %45, %cst_16 [1] : vector<8x8xf32> to vector<8xf32>
    %47 = vector.shape_cast %46 : vector<8xf32> to vector<8x1xf32>
    %48 = vector.broadcast %47 : vector<8x1xf32> to vector<8x8xf32>
    %49 = arith.subf %45, %48 : vector<8x8xf32>
    %50 = math.exp %49 : vector<8x8xf32>
    %cst_17 = arith.constant dense<0.000000e+00> : vector<8xf32>
    %51 = vector.multi_reduction <add>, %50, %cst_17 [1] : vector<8x8xf32> to vector<8xf32>
    %52 = vector.shape_cast %51 : vector<8xf32> to vector<8x1xf32>
    %53 = tpu.reciprocal %52 {approx = true} : vector<8x1xf32> -> vector<8x1xf32>
    %54 = arith.truncf %50 : vector<8x8xf32> to vector<8x8xbf16>
    %cst_18 = arith.constant dense<0.000000e+00> : vector<8x8xf32>
    %55 = tpu.matmul %54, %42, %cst_18 {dimension_numbers = #tpu.dot_dimension_numbers<[1], [0], [0], [1], [0, 0, 1, 1], [], []>} : vector<8x8xbf16>, vector<8x8xbf16>, vector<8x8xf32> -> vector<8x8xf32>
    %56 = vector.broadcast %53 : vector<8x1xf32> to vector<8x8xf32>
    %57 = arith.mulf %55, %56 : vector<8x8xf32>
    %58 = vector.extract_strided_slice %4 {offsets = [0, 16], sizes = [8, 8], strides = [1, 1]} : vector<8x32xf32> to vector<8x8xf32>
    %59 = arith.truncf %58 : vector<8x8xf32> to vector<8x8xbf16>
    %60 = vector.extract_strided_slice %5 {offsets = [0, 16], sizes = [8, 8], strides = [1, 1]} : vector<8x32xf32> to vector<8x8xf32>
    %61 = arith.truncf %60 : vector<8x8xf32> to vector<8x8xbf16>
    %62 = vector.extract_strided_slice %6 {offsets = [0, 16], sizes = [8, 8], strides = [1, 1]} : vector<8x32xf32> to vector<8x8xf32>
    %63 = arith.truncf %62 : vector<8x8xf32> to vector<8x8xbf16>
    %cst_19 = arith.constant dense<0.000000e+00> : vector<8x8xf32>
    %64 = tpu.matmul %59, %61, %cst_19 {dimension_numbers = #tpu.dot_dimension_numbers<[1], [1], [0], [0], [0, 0, 1, 0], [], []>} : vector<8x8xbf16>, vector<8x8xbf16>, vector<8x8xf32> -> vector<8x8xf32>
    %cst_20 = arith.constant -1.000000e+09 : f32
    %65 = vector.broadcast %cst_20 : f32 to vector<8x8xf32>
    %66 = arith.select %15, %64, %65 : vector<8x8xi1>, vector<8x8xf32>
    %cst_21 = arith.constant dense<0xFF800000> : vector<8xf32>
    %67 = vector.multi_reduction <maximumf>, %66, %cst_21 [1] : vector<8x8xf32> to vector<8xf32>
    %68 = vector.shape_cast %67 : vector<8xf32> to vector<8x1xf32>
    %69 = vector.broadcast %68 : vector<8x1xf32> to vector<8x8xf32>
    %70 = arith.subf %66, %69 : vector<8x8xf32>
    %71 = math.exp %70 : vector<8x8xf32>
    %cst_22 = arith.constant dense<0.000000e+00> : vector<8xf32>
    %72 = vector.multi_reduction <add>, %71, %cst_22 [1] : vector<8x8xf32> to vector<8xf32>
    %73 = vector.shape_cast %72 : vector<8xf32> to vector<8x1xf32>
    %74 = tpu.reciprocal %73 {approx = true} : vector<8x1xf32> -> vector<8x1xf32>
    %75 = arith.truncf %71 : vector<8x8xf32> to vector<8x8xbf16>
    %cst_23 = arith.constant dense<0.000000e+00> : vector<8x8xf32>
    %76 = tpu.matmul %75, %63, %cst_23 {dimension_numbers = #tpu.dot_dimension_numbers<[1], [0], [0], [1], [0, 0, 1, 1], [], []>} : vector<8x8xbf16>, vector<8x8xbf16>, vector<8x8xf32> -> vector<8x8xf32>
    %77 = vector.broadcast %74 : vector<8x1xf32> to vector<8x8xf32>
    %78 = arith.mulf %76, %77 : vector<8x8xf32>
    %79 = vector.extract_strided_slice %4 {offsets = [0, 24], sizes = [8, 8], strides = [1, 1]} : vector<8x32xf32> to vector<8x8xf32>
    %80 = arith.truncf %79 : vector<8x8xf32> to vector<8x8xbf16>
    %81 = vector.extract_strided_slice %5 {offsets = [0, 24], sizes = [8, 8], strides = [1, 1]} : vector<8x32xf32> to vector<8x8xf32>
    %82 = arith.truncf %81 : vector<8x8xf32> to vector<8x8xbf16>
    %83 = vector.extract_strided_slice %6 {offsets = [0, 24], sizes = [8, 8], strides = [1, 1]} : vector<8x32xf32> to vector<8x8xf32>
    %84 = arith.truncf %83 : vector<8x8xf32> to vector<8x8xbf16>
    %cst_24 = arith.constant dense<0.000000e+00> : vector<8x8xf32>
    %85 = tpu.matmul %80, %82, %cst_24 {dimension_numbers = #tpu.dot_dimension_numbers<[1], [1], [0], [0], [0, 0, 1, 0], [], []>} : vector<8x8xbf16>, vector<8x8xbf16>, vector<8x8xf32> -> vector<8x8xf32>
    %cst_25 = arith.constant -1.000000e+09 : f32
    %86 = vector.broadcast %cst_25 : f32 to vector<8x8xf32>
    %87 = arith.select %15, %85, %86 : vector<8x8xi1>, vector<8x8xf32>
    %cst_26 = arith.constant dense<0xFF800000> : vector<8xf32>
    %88 = vector.multi_reduction <maximumf>, %87, %cst_26 [1] : vector<8x8xf32> to vector<8xf32>
    %89 = vector.shape_cast %88 : vector<8xf32> to vector<8x1xf32>
    %90 = vector.broadcast %89 : vector<8x1xf32> to vector<8x8xf32>
    %91 = arith.subf %87, %90 : vector<8x8xf32>
    %92 = math.exp %91 : vector<8x8xf32>
    %cst_27 = arith.constant dense<0.000000e+00> : vector<8xf32>
    %93 = vector.multi_reduction <add>, %92, %cst_27 [1] : vector<8x8xf32> to vector<8xf32>
    %94 = vector.shape_cast %93 : vector<8xf32> to vector<8x1xf32>
    %95 = tpu.reciprocal %94 {approx = true} : vector<8x1xf32> -> vector<8x1xf32>
    %96 = arith.truncf %92 : vector<8x8xf32> to vector<8x8xbf16>
    %cst_28 = arith.constant dense<0.000000e+00> : vector<8x8xf32>
    %97 = tpu.matmul %96, %84, %cst_28 {dimension_numbers = #tpu.dot_dimension_numbers<[1], [0], [0], [1], [0, 0, 1, 1], [], []>} : vector<8x8xbf16>, vector<8x8xbf16>, vector<8x8xf32> -> vector<8x8xf32>
    %98 = vector.broadcast %95 : vector<8x1xf32> to vector<8x8xf32>
    %99 = arith.mulf %97, %98 : vector<8x8xf32>
    %100 = tpu.concatenate %36, %57, %78, %99 in 1 : vector<8x8xf32>, vector<8x8xf32>, vector<8x8xf32>, vector<8x8xf32> -> vector<8x32xf32>
    %c0_29 = arith.constant 0 : index
    %c0_30 = arith.constant 0 : index
    %c0_31 = arith.constant 0 : index
    %101 = vector.load %arg4[%c0_29, %c0_30, %c0_31] : memref<1x8x32xf32, #tpu.memory_space<vmem>>, vector<1x8x32xf32>
    %102 = vector.shape_cast %101 : vector<1x8x32xf32> to vector<8x32xf32>
    %103 = vector.shape_cast %100 : vector<8x32xf32> to vector<1x8x32xf32>
    tpu.vector_store %arg4[%c0_29, %c0_30, %c0_31], %103 {strides = array<i32>} : memref<1x8x32xf32, #tpu.memory_space<vmem>>, vector<1x8x32xf32>,
    return
  }
  func.func @transform_0(%arg0: i32) -> (i32, i32, i32) {
    %c0_i32 = arith.constant 0 : i32
    %c0_i32_0 = arith.constant 0 : i32
    %c0_i32_1 = arith.constant 0 : i32
    return %arg0, %c0_i32, %c0_i32_0 : i32, i32, i32
  }
  func.func @transform_1(%arg0: i32) -> (i32, i32, i32) {
    %c0_i32 = arith.constant 0 : i32
    %c0_i32_0 = arith.constant 0 : i32
    %c0_i32_1 = arith.constant 0 : i32
    return %arg0, %c0_i32, %c0_i32_0 : i32, i32, i32
  }
  func.func @transform_2(%arg0: i32) -> (i32, i32, i32) {
    %c0_i32 = arith.constant 0 : i32
    %c0_i32_0 = arith.constant 0 : i32
    %c0_i32_1 = arith.constant 0 : i32
    return %arg0, %c0_i32, %c0_i32_0 : i32, i32, i32
  }
  func.func @transform_3(%arg0: i32) -> (i32, i32, i32) {
    %c0_i32 = arith.constant 0 : i32
    %c0_i32_0 = arith.constant 0 : i32
    %c0_i32_1 = arith.constant 0 : i32
    return %arg0, %c0_i32, %c0_i32_0 : i32, i32, i32
  }
}

module attributes {stable_mosaic.version = 11 : i64} {
  func.func @_matmul_res_ln_kernel(%arg0: i32, %arg1: i32, %arg2: memref<16x128xf32, #tpu.memory_space<vmem>>, %arg3: memref<128x128xbf16, #tpu.memory_space<vmem>>, %arg4: memref<1x128xf32, #tpu.memory_space<vmem>>, %arg5: memref<16x128xf32, #tpu.memory_space<vmem>>, %arg6: memref<1x128xf32, #tpu.memory_space<vmem>>, %arg7: memref<1x128xf32, #tpu.memory_space<vmem>>, %arg8: memref<16x128xf32, #tpu.memory_space<vmem>>, %arg9: memref<16x128xf32, #tpu.memory_space<vmem>>) attributes {dimension_semantics = [#tpu.dimension_semantics<parallel>, #tpu.dimension_semantics<arbitrary>], iteration_bounds = array<i64: 1, 1>, scalar_prefetch = 0 : i64, scratch_operands = 1 : i64, tpu.core_type = #tpu.core_type<tc>, window_params = [{transform_indices = @transform_0, window_bounds = array<i64: 16, 128>}, {transform_indices = @transform_1, window_bounds = array<i64: 128, 128>}, {pipeline_mode = #tpu.pipeline_mode<synchronous>, transform_indices = @transform_2, window_bounds = array<i64: 1, 128>}, {transform_indices = @transform_3, window_bounds = array<i64: 16, 128>}, {pipeline_mode = #tpu.pipeline_mode<synchronous>, transform_indices = @transform_4, window_bounds = array<i64: 1, 128>}, {pipeline_mode = #tpu.pipeline_mode<synchronous>, transform_indices = @transform_5, window_bounds = array<i64: 1, 128>}, {transform_indices = @transform_6, window_bounds = array<i64: 16, 128>}]} {
    %c0_i32 = arith.constant 0 : i32
    %0 = arith.cmpi eq, %arg1, %c0_i32 : i32
    %1 = arith.extui %0 : i1 to i32
    %c0_i32_0 = arith.constant 0 : i32
    %2 = arith.cmpi ne, %1, %c0_i32_0 : i32
    scf.if %2 {
      %cst_10 = arith.constant 0.000000e+00 : f32
      %13 = vector.broadcast %cst_10 : f32 to vector<16x128xf32>
      %c0_11 = arith.constant 0 : index
      %c0_12 = arith.constant 0 : index
      %14 = vector.load %arg9[%c0_11, %c0_12] : memref<16x128xf32, #tpu.memory_space<vmem>>, vector<16x128xf32>
      tpu.vector_store %arg9[%c0_11, %c0_12], %13 {strides = array<i32>} : memref<16x128xf32, #tpu.memory_space<vmem>>, vector<16x128xf32>,
    } else {
    }
    %c0 = arith.constant 0 : index
    %c0_1 = arith.constant 0 : index
    %3 = vector.load %arg9[%c0, %c0_1] : memref<16x128xf32, #tpu.memory_space<vmem>>, vector<16x128xf32>
    %c0_2 = arith.constant 0 : index
    %c0_3 = arith.constant 0 : index
    %4 = vector.load %arg2[%c0_2, %c0_3] : memref<16x128xf32, #tpu.memory_space<vmem>>, vector<16x128xf32>
    %5 = arith.truncf %4 : vector<16x128xf32> to vector<16x128xbf16>
    %c0_4 = arith.constant 0 : index
    %c0_5 = arith.constant 0 : index
    %6 = vector.load %arg3[%c0_4, %c0_5] : memref<128x128xbf16, #tpu.memory_space<vmem>>, vector<128x128xbf16>
    %cst = arith.constant dense<0.000000e+00> : vector<16x128xf32>
    %7 = tpu.matmul %5, %6, %cst {dimension_numbers = #tpu.dot_dimension_numbers<[1], [0], [0], [1], [0, 0, 1, 1], [], []>} : vector<16x128xbf16>, vector<128x128xbf16>, vector<16x128xf32> -> vector<16x128xf32>
    %8 = arith.addf %3, %7 : vector<16x128xf32>
    %c0_6 = arith.constant 0 : index
    %c0_7 = arith.constant 0 : index
    %9 = vector.load %arg9[%c0_6, %c0_7] : memref<16x128xf32, #tpu.memory_space<vmem>>, vector<16x128xf32>
    tpu.vector_store %arg9[%c0_6, %c0_7], %8 {strides = array<i32>} : memref<16x128xf32, #tpu.memory_space<vmem>>, vector<16x128xf32>,
    %c0_i32_8 = arith.constant 0 : i32
    %10 = arith.cmpi eq, %arg1, %c0_i32_8 : i32
    %11 = arith.extui %10 : i1 to i32
    %c0_i32_9 = arith.constant 0 : i32
    %12 = arith.cmpi ne, %11, %c0_i32_9 : i32
    scf.if %12 {
      %c0_10 = arith.constant 0 : index
      %c0_11 = arith.constant 0 : index
      %13 = vector.load %arg9[%c0_10, %c0_11] : memref<16x128xf32, #tpu.memory_space<vmem>>, vector<16x128xf32>
      %c0_12 = arith.constant 0 : index
      %c0_13 = arith.constant 0 : index
      %14 = vector.load %arg4[%c0_12, %c0_13] : memref<1x128xf32, #tpu.memory_space<vmem>>, vector<1x128xf32>
      %15 = vector.broadcast %14 : vector<1x128xf32> to vector<16x128xf32>
      %16 = arith.addf %13, %15 : vector<16x128xf32>
      %c0_14 = arith.constant 0 : index
      %c0_15 = arith.constant 0 : index
      %17 = vector.load %arg5[%c0_14, %c0_15] : memref<16x128xf32, #tpu.memory_space<vmem>>, vector<16x128xf32>
      %18 = arith.addf %16, %17 : vector<16x128xf32>
      %19 = tpu.iota {dimensions = array<i32: 1>} : vector<16x128xi32>
      %c32_i32 = arith.constant 32 : i32
      %20 = vector.broadcast %c32_i32 : i32 to vector<16x128xi32>
      %21 = arith.cmpi slt, %19, %20 : vector<16x128xi32>
      %22 = arith.extui %21 : vector<16x128xi1> to vector<16x128xi32>
      %23 = arith.sitofp %22 : vector<16x128xi32> to vector<16x128xf32>
      %24 = arith.mulf %18, %23 : vector<16x128xf32>
      %cst_16 = arith.constant dense<0.000000e+00> : vector<16xf32>
      %25 = vector.multi_reduction <add>, %24, %cst_16 [1] : vector<16x128xf32> to vector<16xf32>
      %26 = vector.shape_cast %25 : vector<16xf32> to vector<16x1xf32>
      %cst_17 = arith.constant 3.125000e-02 : f32
      %27 = vector.broadcast %cst_17 : f32 to vector<16x1xf32>
      %28 = arith.mulf %26, %27 : vector<16x1xf32>
      %29 = vector.broadcast %28 : vector<16x1xf32> to vector<16x128xf32>
      %30 = arith.subf %18, %29 : vector<16x128xf32>
      %31 = arith.mulf %30, %23 : vector<16x128xf32>
      %32 = arith.mulf %31, %31 : vector<16x128xf32>
      %cst_18 = arith.constant dense<0.000000e+00> : vector<16xf32>
      %33 = vector.multi_reduction <add>, %32, %cst_18 [1] : vector<16x128xf32> to vector<16xf32>
      %34 = vector.shape_cast %33 : vector<16xf32> to vector<16x1xf32>
      %cst_19 = arith.constant 3.125000e-02 : f32
      %35 = vector.broadcast %cst_19 : f32 to vector<16x1xf32>
      %36 = arith.mulf %34, %35 : vector<16x1xf32>
      %37 = vector.broadcast %28 : vector<16x1xf32> to vector<16x128xf32>
      %38 = arith.subf %18, %37 : vector<16x128xf32>
      %cst_20 = arith.constant 9.99999974E-6 : f32
      %39 = vector.broadcast %cst_20 : f32 to vector<16x1xf32>
      %40 = arith.addf %36, %39 : vector<16x1xf32>
      %41 = math.rsqrt %40 : vector<16x1xf32>
      %42 = vector.broadcast %41 : vector<16x1xf32> to vector<16x128xf32>
      %43 = arith.mulf %38, %42 : vector<16x128xf32>
      %c0_21 = arith.constant 0 : index
      %c0_22 = arith.constant 0 : index
      %44 = vector.load %arg6[%c0_21, %c0_22] : memref<1x128xf32, #tpu.memory_space<vmem>>, vector<1x128xf32>
      %45 = vector.broadcast %44 : vector<1x128xf32> to vector<16x128xf32>
      %46 = arith.mulf %43, %45 : vector<16x128xf32>
      %c0_23 = arith.constant 0 : index
      %c0_24 = arith.constant 0 : index
      %47 = vector.load %arg7[%c0_23, %c0_24] : memref<1x128xf32, #tpu.memory_space<vmem>>, vector<1x128xf32>
      %48 = vector.broadcast %47 : vector<1x128xf32> to vector<16x128xf32>
      %49 = arith.addf %46, %48 : vector<16x128xf32>
      %c0_25 = arith.constant 0 : index
      %c0_26 = arith.constant 0 : index
      %50 = vector.load %arg8[%c0_25, %c0_26] : memref<16x128xf32, #tpu.memory_space<vmem>>, vector<16x128xf32>
      tpu.vector_store %arg8[%c0_25, %c0_26], %49 {strides = array<i32>} : memref<16x128xf32, #tpu.memory_space<vmem>>, vector<16x128xf32>,
    } else {
    }
    return
  }
  func.func @transform_0(%arg0: i32, %arg1: i32) -> (i32, i32) {
    %c0_i32 = arith.constant 0 : i32
    return %arg0, %arg1 : i32, i32
  }
  func.func @transform_1(%arg0: i32, %arg1: i32) -> (i32, i32) {
    %c0_i32 = arith.constant 0 : i32
    %c0_i32_0 = arith.constant 0 : i32
    return %arg1, %c0_i32 : i32, i32
  }
  func.func @transform_2(%arg0: i32, %arg1: i32) -> (i32, i32) {
    %c0_i32 = arith.constant 0 : i32
    %c0_i32_0 = arith.constant 0 : i32
    %c0_i32_1 = arith.constant 0 : i32
    return %c0_i32, %c0_i32_0 : i32, i32
  }
  func.func @transform_3(%arg0: i32, %arg1: i32) -> (i32, i32) {
    %c0_i32 = arith.constant 0 : i32
    %c0_i32_0 = arith.constant 0 : i32
    return %arg0, %c0_i32 : i32, i32
  }
  func.func @transform_4(%arg0: i32, %arg1: i32) -> (i32, i32) {
    %c0_i32 = arith.constant 0 : i32
    %c0_i32_0 = arith.constant 0 : i32
    %c0_i32_1 = arith.constant 0 : i32
    return %c0_i32, %c0_i32_0 : i32, i32
  }
  func.func @transform_5(%arg0: i32, %arg1: i32) -> (i32, i32) {
    %c0_i32 = arith.constant 0 : i32
    %c0_i32_0 = arith.constant 0 : i32
    %c0_i32_1 = arith.constant 0 : i32
    return %c0_i32, %c0_i32_0 : i32, i32
  }
  func.func @transform_6(%arg0: i32, %arg1: i32) -> (i32, i32) {
    %c0_i32 = arith.constant 0 : i32
    %c0_i32_0 = arith.constant 0 : i32
    return %arg0, %c0_i32 : i32, i32
  }
}

module attributes {stable_mosaic.version = 11 : i64} {
  func.func @_matmul_kernel(%arg0: i32, %arg1: i32, %arg2: i32, %arg3: memref<16x128xf32, #tpu.memory_space<vmem>>, %arg4: memref<128x128xbf16, #tpu.memory_space<vmem>>, %arg5: memref<1x128xf32, #tpu.memory_space<vmem>>, %arg6: memref<16x128xf32, #tpu.memory_space<vmem>>, %arg7: memref<16x128xf32, #tpu.memory_space<vmem>>) attributes {dimension_semantics = [#tpu.dimension_semantics<parallel>, #tpu.dimension_semantics<parallel>, #tpu.dimension_semantics<arbitrary>], iteration_bounds = array<i64: 1, 1, 1>, scalar_prefetch = 0 : i64, scratch_operands = 1 : i64, tpu.core_type = #tpu.core_type<tc>, window_params = [{transform_indices = @transform_0, window_bounds = array<i64: 16, 128>}, {transform_indices = @transform_1, window_bounds = array<i64: 128, 128>}, {transform_indices = @transform_2, window_bounds = array<i64: 1, 128>}, {transform_indices = @transform_3, window_bounds = array<i64: 16, 128>}]} {
    %c0_i32 = arith.constant 0 : i32
    %0 = arith.cmpi eq, %arg2, %c0_i32 : i32
    %1 = arith.extui %0 : i1 to i32
    %c0_i32_0 = arith.constant 0 : i32
    %2 = arith.cmpi ne, %1, %c0_i32_0 : i32
    scf.if %2 {
      %cst_10 = arith.constant 0.000000e+00 : f32
      %13 = vector.broadcast %cst_10 : f32 to vector<16x128xf32>
      %c0_11 = arith.constant 0 : index
      %c0_12 = arith.constant 0 : index
      %14 = vector.load %arg7[%c0_11, %c0_12] : memref<16x128xf32, #tpu.memory_space<vmem>>, vector<16x128xf32>
      tpu.vector_store %arg7[%c0_11, %c0_12], %13 {strides = array<i32>} : memref<16x128xf32, #tpu.memory_space<vmem>>, vector<16x128xf32>,
    } else {
    }
    %c0 = arith.constant 0 : index
    %c0_1 = arith.constant 0 : index
    %3 = vector.load %arg7[%c0, %c0_1] : memref<16x128xf32, #tpu.memory_space<vmem>>, vector<16x128xf32>
    %c0_2 = arith.constant 0 : index
    %c0_3 = arith.constant 0 : index
    %4 = vector.load %arg3[%c0_2, %c0_3] : memref<16x128xf32, #tpu.memory_space<vmem>>, vector<16x128xf32>
    %5 = arith.truncf %4 : vector<16x128xf32> to vector<16x128xbf16>
    %c0_4 = arith.constant 0 : index
    %c0_5 = arith.constant 0 : index
    %6 = vector.load %arg4[%c0_4, %c0_5] : memref<128x128xbf16, #tpu.memory_space<vmem>>, vector<128x128xbf16>
    %cst = arith.constant dense<0.000000e+00> : vector<16x128xf32>
    %7 = tpu.matmul %5, %6, %cst {dimension_numbers = #tpu.dot_dimension_numbers<[1], [0], [0], [1], [0, 0, 1, 1], [], []>} : vector<16x128xbf16>, vector<128x128xbf16>, vector<16x128xf32> -> vector<16x128xf32>
    %8 = arith.addf %3, %7 : vector<16x128xf32>
    %c0_6 = arith.constant 0 : index
    %c0_7 = arith.constant 0 : index
    %9 = vector.load %arg7[%c0_6, %c0_7] : memref<16x128xf32, #tpu.memory_space<vmem>>, vector<16x128xf32>
    tpu.vector_store %arg7[%c0_6, %c0_7], %8 {strides = array<i32>} : memref<16x128xf32, #tpu.memory_space<vmem>>, vector<16x128xf32>,
    %c0_i32_8 = arith.constant 0 : i32
    %10 = arith.cmpi eq, %arg2, %c0_i32_8 : i32
    %11 = arith.extui %10 : i1 to i32
    %c0_i32_9 = arith.constant 0 : i32
    %12 = arith.cmpi ne, %11, %c0_i32_9 : i32
    scf.if %12 {
      %c0_10 = arith.constant 0 : index
      %c0_11 = arith.constant 0 : index
      %13 = vector.load %arg7[%c0_10, %c0_11] : memref<16x128xf32, #tpu.memory_space<vmem>>, vector<16x128xf32>
      %c0_12 = arith.constant 0 : index
      %c0_13 = arith.constant 0 : index
      %14 = vector.load %arg5[%c0_12, %c0_13] : memref<1x128xf32, #tpu.memory_space<vmem>>, vector<1x128xf32>
      %15 = vector.broadcast %14 : vector<1x128xf32> to vector<16x128xf32>
      %16 = arith.addf %13, %15 : vector<16x128xf32>
      %cst_14 = arith.constant 0.000000e+00 : f32
      %17 = vector.broadcast %cst_14 : f32 to vector<16x128xf32>
      %18 = arith.maximumf %16, %17 : vector<16x128xf32>
      %c0_15 = arith.constant 0 : index
      %c0_16 = arith.constant 0 : index
      %19 = vector.load %arg6[%c0_15, %c0_16] : memref<16x128xf32, #tpu.memory_space<vmem>>, vector<16x128xf32>
      tpu.vector_store %arg6[%c0_15, %c0_16], %18 {strides = array<i32>} : memref<16x128xf32, #tpu.memory_space<vmem>>, vector<16x128xf32>,
    } else {
    }
    return
  }
  func.func @transform_0(%arg0: i32, %arg1: i32, %arg2: i32) -> (i32, i32) {
    %c0_i32 = arith.constant 0 : i32
    return %arg0, %arg2 : i32, i32
  }
  func.func @transform_1(%arg0: i32, %arg1: i32, %arg2: i32) -> (i32, i32) {
    %c0_i32 = arith.constant 0 : i32
    return %arg2, %arg1 : i32, i32
  }
  func.func @transform_2(%arg0: i32, %arg1: i32, %arg2: i32) -> (i32, i32) {
    %c0_i32 = arith.constant 0 : i32
    %c0_i32_0 = arith.constant 0 : i32
    return %c0_i32, %arg1 : i32, i32
  }
  func.func @transform_3(%arg0: i32, %arg1: i32, %arg2: i32) -> (i32, i32) {
    %c0_i32 = arith.constant 0 : i32
    return %arg0, %arg1 : i32, i32
  }
}

module attributes {stable_mosaic.version = 11 : i64} {
  func.func @_self_attn_kernel(%arg0: i32, %arg1: memref<1x8x96xf32, #tpu.memory_space<vmem>>, %arg2: memref<1x8x1xf32, #tpu.memory_space<vmem>>, %arg3: memref<1x1x8xf32, #tpu.memory_space<vmem>>, %arg4: memref<1x8x32xf32, #tpu.memory_space<vmem>>) attributes {dimension_semantics = [#tpu.dimension_semantics<parallel>], iteration_bounds = array<i64: 2>, scalar_prefetch = 0 : i64, scratch_operands = 0 : i64, tpu.core_type = #tpu.core_type<tc>, window_params = [{transform_indices = @transform_0, window_bounds = array<i64: 1, 8, 96>}, {transform_indices = @transform_1, window_bounds = array<i64: 1, 8, 1>}, {transform_indices = @transform_2, window_bounds = array<i64: 1, 1, 8>}, {transform_indices = @transform_3, window_bounds = array<i64: 1, 8, 32>}]} {
    %c0 = arith.constant 0 : index
    %c0_0 = arith.constant 0 : index
    %c0_1 = arith.constant 0 : index
    %0 = vector.load %arg1[%c0, %c0_0, %c0_1] : memref<1x8x96xf32, #tpu.memory_space<vmem>>, vector<1x8x96xf32>
    %1 = vector.shape_cast %0 : vector<1x8x96xf32> to vector<8x96xf32>
    %2 = vector.extract_strided_slice %1 {offsets = [0, 0], sizes = [8, 32], strides = [1, 1]} : vector<8x96xf32> to vector<8x32xf32>
    %cst = arith.constant 0.353553385 : f32
    %3 = vector.broadcast %cst : f32 to vector<8x32xf32>
    %4 = arith.mulf %2, %3 : vector<8x32xf32>
    %5 = vector.extract_strided_slice %1 {offsets = [0, 32], sizes = [8, 32], strides = [1, 1]} : vector<8x96xf32> to vector<8x32xf32>
    %6 = vector.extract_strided_slice %1 {offsets = [0, 64], sizes = [8, 32], strides = [1, 1]} : vector<8x96xf32> to vector<8x32xf32>
    %c0_2 = arith.constant 0 : index
    %c0_3 = arith.constant 0 : index
    %c0_4 = arith.constant 0 : index
    %7 = vector.load %arg2[%c0_2, %c0_3, %c0_4] : memref<1x8x1xf32, #tpu.memory_space<vmem>>, vector<1x8x1xf32>
    %8 = vector.shape_cast %7 : vector<1x8x1xf32> to vector<8x1xf32>
    %c0_5 = arith.constant 0 : index
    %c0_6 = arith.constant 0 : index
    %c0_7 = arith.constant 0 : index
    %9 = vector.load %arg3[%c0_5, %c0_6, %c0_7] : memref<1x1x8xf32, #tpu.memory_space<vmem>>, vector<1x1x8xf32>
    %10 = vector.shape_cast %9 : vector<1x1x8xf32> to vector<1x8xf32>
    %11 = vector.broadcast %8 : vector<8x1xf32> to vector<8x8xf32>
    %12 = vector.broadcast %10 : vector<1x8xf32> to vector<8x8xf32>
    %13 = arith.mulf %11, %12 : vector<8x8xf32>
    %14 = tpu.iota {dimensions = array<i32: 0>} : vector<8x8xi32>
    %15 = tpu.iota {dimensions = array<i32: 1>} : vector<8x8xi32>
    %16 = arith.cmpi sle, %15, %14 : vector<8x8xi32>
    %17 = arith.extui %16 : vector<8x8xi1> to vector<8x8xi32>
    %18 = arith.sitofp %17 : vector<8x8xi32> to vector<8x8xf32>
    %19 = arith.mulf %13, %18 : vector<8x8xf32>
    %cst_8 = arith.constant 5.000000e-01 : f32
    %20 = vector.broadcast %cst_8 : f32 to vector<8x8xf32>
    %21 = arith.cmpf ogt, %19, %20 : vector<8x8xf32>
    %22 = vector.extract_strided_slice %4 {offsets = [0, 0], sizes = [8, 8], strides = [1, 1]} : vector<8x32xf32> to vector<8x8xf32>
    %23 = arith.truncf %22 : vector<8x8xf32> to vector<8x8xbf16>
    %24 = vector.extract_strided_slice %5 {offsets = [0, 0], sizes = [8, 8], strides = [1, 1]} : vector<8x32xf32> to vector<8x8xf32>
    %25 = arith.truncf %24 : vector<8x8xf32> to vector<8x8xbf16>
    %26 = vector.extract_strided_slice %6 {offsets = [0, 0], sizes = [8, 8], strides = [1, 1]} : vector<8x32xf32> to vector<8x8xf32>
    %27 = arith.truncf %26 : vector<8x8xf32> to vector<8x8xbf16>
    %cst_9 = arith.constant dense<0.000000e+00> : vector<8x8xf32>
    %28 = tpu.matmul %23, %25, %cst_9 {dimension_numbers = #tpu.dot_dimension_numbers<[1], [1], [0], [0], [0, 0, 1, 0], [], []>} : vector<8x8xbf16>, vector<8x8xbf16>, vector<8x8xf32> -> vector<8x8xf32>
    %cst_10 = arith.constant -1.000000e+09 : f32
    %29 = vector.broadcast %cst_10 : f32 to vector<8x8xf32>
    %30 = arith.select %21, %28, %29 : vector<8x8xi1>, vector<8x8xf32>
    %cst_11 = arith.constant dense<0xFF800000> : vector<8xf32>
    %31 = vector.multi_reduction <maximumf>, %30, %cst_11 [1] : vector<8x8xf32> to vector<8xf32>
    %32 = vector.shape_cast %31 : vector<8xf32> to vector<8x1xf32>
    %33 = vector.broadcast %32 : vector<8x1xf32> to vector<8x8xf32>
    %34 = arith.subf %30, %33 : vector<8x8xf32>
    %35 = math.exp %34 : vector<8x8xf32>
    %cst_12 = arith.constant dense<0.000000e+00> : vector<8xf32>
    %36 = vector.multi_reduction <add>, %35, %cst_12 [1] : vector<8x8xf32> to vector<8xf32>
    %37 = vector.shape_cast %36 : vector<8xf32> to vector<8x1xf32>
    %38 = tpu.reciprocal %37 {approx = true} : vector<8x1xf32> -> vector<8x1xf32>
    %39 = arith.truncf %35 : vector<8x8xf32> to vector<8x8xbf16>
    %cst_13 = arith.constant dense<0.000000e+00> : vector<8x8xf32>
    %40 = tpu.matmul %39, %27, %cst_13 {dimension_numbers = #tpu.dot_dimension_numbers<[1], [0], [0], [1], [0, 0, 1, 1], [], []>} : vector<8x8xbf16>, vector<8x8xbf16>, vector<8x8xf32> -> vector<8x8xf32>
    %41 = vector.broadcast %38 : vector<8x1xf32> to vector<8x8xf32>
    %42 = arith.mulf %40, %41 : vector<8x8xf32>
    %43 = vector.extract_strided_slice %4 {offsets = [0, 8], sizes = [8, 8], strides = [1, 1]} : vector<8x32xf32> to vector<8x8xf32>
    %44 = arith.truncf %43 : vector<8x8xf32> to vector<8x8xbf16>
    %45 = vector.extract_strided_slice %5 {offsets = [0, 8], sizes = [8, 8], strides = [1, 1]} : vector<8x32xf32> to vector<8x8xf32>
    %46 = arith.truncf %45 : vector<8x8xf32> to vector<8x8xbf16>
    %47 = vector.extract_strided_slice %6 {offsets = [0, 8], sizes = [8, 8], strides = [1, 1]} : vector<8x32xf32> to vector<8x8xf32>
    %48 = arith.truncf %47 : vector<8x8xf32> to vector<8x8xbf16>
    %cst_14 = arith.constant dense<0.000000e+00> : vector<8x8xf32>
    %49 = tpu.matmul %44, %46, %cst_14 {dimension_numbers = #tpu.dot_dimension_numbers<[1], [1], [0], [0], [0, 0, 1, 0], [], []>} : vector<8x8xbf16>, vector<8x8xbf16>, vector<8x8xf32> -> vector<8x8xf32>
    %cst_15 = arith.constant -1.000000e+09 : f32
    %50 = vector.broadcast %cst_15 : f32 to vector<8x8xf32>
    %51 = arith.select %21, %49, %50 : vector<8x8xi1>, vector<8x8xf32>
    %cst_16 = arith.constant dense<0xFF800000> : vector<8xf32>
    %52 = vector.multi_reduction <maximumf>, %51, %cst_16 [1] : vector<8x8xf32> to vector<8xf32>
    %53 = vector.shape_cast %52 : vector<8xf32> to vector<8x1xf32>
    %54 = vector.broadcast %53 : vector<8x1xf32> to vector<8x8xf32>
    %55 = arith.subf %51, %54 : vector<8x8xf32>
    %56 = math.exp %55 : vector<8x8xf32>
    %cst_17 = arith.constant dense<0.000000e+00> : vector<8xf32>
    %57 = vector.multi_reduction <add>, %56, %cst_17 [1] : vector<8x8xf32> to vector<8xf32>
    %58 = vector.shape_cast %57 : vector<8xf32> to vector<8x1xf32>
    %59 = tpu.reciprocal %58 {approx = true} : vector<8x1xf32> -> vector<8x1xf32>
    %60 = arith.truncf %56 : vector<8x8xf32> to vector<8x8xbf16>
    %cst_18 = arith.constant dense<0.000000e+00> : vector<8x8xf32>
    %61 = tpu.matmul %60, %48, %cst_18 {dimension_numbers = #tpu.dot_dimension_numbers<[1], [0], [0], [1], [0, 0, 1, 1], [], []>} : vector<8x8xbf16>, vector<8x8xbf16>, vector<8x8xf32> -> vector<8x8xf32>
    %62 = vector.broadcast %59 : vector<8x1xf32> to vector<8x8xf32>
    %63 = arith.mulf %61, %62 : vector<8x8xf32>
    %64 = vector.extract_strided_slice %4 {offsets = [0, 16], sizes = [8, 8], strides = [1, 1]} : vector<8x32xf32> to vector<8x8xf32>
    %65 = arith.truncf %64 : vector<8x8xf32> to vector<8x8xbf16>
    %66 = vector.extract_strided_slice %5 {offsets = [0, 16], sizes = [8, 8], strides = [1, 1]} : vector<8x32xf32> to vector<8x8xf32>
    %67 = arith.truncf %66 : vector<8x8xf32> to vector<8x8xbf16>
    %68 = vector.extract_strided_slice %6 {offsets = [0, 16], sizes = [8, 8], strides = [1, 1]} : vector<8x32xf32> to vector<8x8xf32>
    %69 = arith.truncf %68 : vector<8x8xf32> to vector<8x8xbf16>
    %cst_19 = arith.constant dense<0.000000e+00> : vector<8x8xf32>
    %70 = tpu.matmul %65, %67, %cst_19 {dimension_numbers = #tpu.dot_dimension_numbers<[1], [1], [0], [0], [0, 0, 1, 0], [], []>} : vector<8x8xbf16>, vector<8x8xbf16>, vector<8x8xf32> -> vector<8x8xf32>
    %cst_20 = arith.constant -1.000000e+09 : f32
    %71 = vector.broadcast %cst_20 : f32 to vector<8x8xf32>
    %72 = arith.select %21, %70, %71 : vector<8x8xi1>, vector<8x8xf32>
    %cst_21 = arith.constant dense<0xFF800000> : vector<8xf32>
    %73 = vector.multi_reduction <maximumf>, %72, %cst_21 [1] : vector<8x8xf32> to vector<8xf32>
    %74 = vector.shape_cast %73 : vector<8xf32> to vector<8x1xf32>
    %75 = vector.broadcast %74 : vector<8x1xf32> to vector<8x8xf32>
    %76 = arith.subf %72, %75 : vector<8x8xf32>
    %77 = math.exp %76 : vector<8x8xf32>
    %cst_22 = arith.constant dense<0.000000e+00> : vector<8xf32>
    %78 = vector.multi_reduction <add>, %77, %cst_22 [1] : vector<8x8xf32> to vector<8xf32>
    %79 = vector.shape_cast %78 : vector<8xf32> to vector<8x1xf32>
    %80 = tpu.reciprocal %79 {approx = true} : vector<8x1xf32> -> vector<8x1xf32>
    %81 = arith.truncf %77 : vector<8x8xf32> to vector<8x8xbf16>
    %cst_23 = arith.constant dense<0.000000e+00> : vector<8x8xf32>
    %82 = tpu.matmul %81, %69, %cst_23 {dimension_numbers = #tpu.dot_dimension_numbers<[1], [0], [0], [1], [0, 0, 1, 1], [], []>} : vector<8x8xbf16>, vector<8x8xbf16>, vector<8x8xf32> -> vector<8x8xf32>
    %83 = vector.broadcast %80 : vector<8x1xf32> to vector<8x8xf32>
    %84 = arith.mulf %82, %83 : vector<8x8xf32>
    %85 = vector.extract_strided_slice %4 {offsets = [0, 24], sizes = [8, 8], strides = [1, 1]} : vector<8x32xf32> to vector<8x8xf32>
    %86 = arith.truncf %85 : vector<8x8xf32> to vector<8x8xbf16>
    %87 = vector.extract_strided_slice %5 {offsets = [0, 24], sizes = [8, 8], strides = [1, 1]} : vector<8x32xf32> to vector<8x8xf32>
    %88 = arith.truncf %87 : vector<8x8xf32> to vector<8x8xbf16>
    %89 = vector.extract_strided_slice %6 {offsets = [0, 24], sizes = [8, 8], strides = [1, 1]} : vector<8x32xf32> to vector<8x8xf32>
    %90 = arith.truncf %89 : vector<8x8xf32> to vector<8x8xbf16>
    %cst_24 = arith.constant dense<0.000000e+00> : vector<8x8xf32>
    %91 = tpu.matmul %86, %88, %cst_24 {dimension_numbers = #tpu.dot_dimension_numbers<[1], [1], [0], [0], [0, 0, 1, 0], [], []>} : vector<8x8xbf16>, vector<8x8xbf16>, vector<8x8xf32> -> vector<8x8xf32>
    %cst_25 = arith.constant -1.000000e+09 : f32
    %92 = vector.broadcast %cst_25 : f32 to vector<8x8xf32>
    %93 = arith.select %21, %91, %92 : vector<8x8xi1>, vector<8x8xf32>
    %cst_26 = arith.constant dense<0xFF800000> : vector<8xf32>
    %94 = vector.multi_reduction <maximumf>, %93, %cst_26 [1] : vector<8x8xf32> to vector<8xf32>
    %95 = vector.shape_cast %94 : vector<8xf32> to vector<8x1xf32>
    %96 = vector.broadcast %95 : vector<8x1xf32> to vector<8x8xf32>
    %97 = arith.subf %93, %96 : vector<8x8xf32>
    %98 = math.exp %97 : vector<8x8xf32>
    %cst_27 = arith.constant dense<0.000000e+00> : vector<8xf32>
    %99 = vector.multi_reduction <add>, %98, %cst_27 [1] : vector<8x8xf32> to vector<8xf32>
    %100 = vector.shape_cast %99 : vector<8xf32> to vector<8x1xf32>
    %101 = tpu.reciprocal %100 {approx = true} : vector<8x1xf32> -> vector<8x1xf32>
    %102 = arith.truncf %98 : vector<8x8xf32> to vector<8x8xbf16>
    %cst_28 = arith.constant dense<0.000000e+00> : vector<8x8xf32>
    %103 = tpu.matmul %102, %90, %cst_28 {dimension_numbers = #tpu.dot_dimension_numbers<[1], [0], [0], [1], [0, 0, 1, 1], [], []>} : vector<8x8xbf16>, vector<8x8xbf16>, vector<8x8xf32> -> vector<8x8xf32>
    %104 = vector.broadcast %101 : vector<8x1xf32> to vector<8x8xf32>
    %105 = arith.mulf %103, %104 : vector<8x8xf32>
    %106 = tpu.concatenate %42, %63, %84, %105 in 1 : vector<8x8xf32>, vector<8x8xf32>, vector<8x8xf32>, vector<8x8xf32> -> vector<8x32xf32>
    %c0_29 = arith.constant 0 : index
    %c0_30 = arith.constant 0 : index
    %c0_31 = arith.constant 0 : index
    %107 = vector.load %arg4[%c0_29, %c0_30, %c0_31] : memref<1x8x32xf32, #tpu.memory_space<vmem>>, vector<1x8x32xf32>
    %108 = vector.shape_cast %107 : vector<1x8x32xf32> to vector<8x32xf32>
    %109 = vector.shape_cast %106 : vector<8x32xf32> to vector<1x8x32xf32>
    tpu.vector_store %arg4[%c0_29, %c0_30, %c0_31], %109 {strides = array<i32>} : memref<1x8x32xf32, #tpu.memory_space<vmem>>, vector<1x8x32xf32>,
    return
  }
  func.func @transform_0(%arg0: i32) -> (i32, i32, i32) {
    %c0_i32 = arith.constant 0 : i32
    %c0_i32_0 = arith.constant 0 : i32
    %c0_i32_1 = arith.constant 0 : i32
    return %arg0, %c0_i32, %c0_i32_0 : i32, i32, i32
  }
  func.func @transform_1(%arg0: i32) -> (i32, i32, i32) {
    %c0_i32 = arith.constant 0 : i32
    %c0_i32_0 = arith.constant 0 : i32
    %c0_i32_1 = arith.constant 0 : i32
    return %arg0, %c0_i32, %c0_i32_0 : i32, i32, i32
  }
  func.func @transform_2(%arg0: i32) -> (i32, i32, i32) {
    %c0_i32 = arith.constant 0 : i32
    %c0_i32_0 = arith.constant 0 : i32
    %c0_i32_1 = arith.constant 0 : i32
    return %arg0, %c0_i32, %c0_i32_0 : i32, i32, i32
  }
  func.func @transform_3(%arg0: i32) -> (i32, i32, i32) {
    %c0_i32 = arith.constant 0 : i32
    %c0_i32_0 = arith.constant 0 : i32
    %c0_i32_1 = arith.constant 0 : i32
    return %arg0, %c0_i32, %c0_i32_0 : i32, i32, i32
  }
}

module attributes {stable_mosaic.version = 11 : i64} {
  func.func @_cross_attn_kernel(%arg0: i32, %arg1: memref<1x8x32xf32, #tpu.memory_space<vmem>>, %arg2: memref<1x8x64xf32, #tpu.memory_space<vmem>>, %arg3: memref<1x1x8xf32, #tpu.memory_space<vmem>>, %arg4: memref<1x8x32xf32, #tpu.memory_space<vmem>>) attributes {dimension_semantics = [#tpu.dimension_semantics<parallel>], iteration_bounds = array<i64: 2>, scalar_prefetch = 0 : i64, scratch_operands = 0 : i64, tpu.core_type = #tpu.core_type<tc>, window_params = [{transform_indices = @transform_0, window_bounds = array<i64: 1, 8, 32>}, {transform_indices = @transform_1, window_bounds = array<i64: 1, 8, 64>}, {transform_indices = @transform_2, window_bounds = array<i64: 1, 1, 8>}, {transform_indices = @transform_3, window_bounds = array<i64: 1, 8, 32>}]} {
    %c0 = arith.constant 0 : index
    %c0_0 = arith.constant 0 : index
    %c0_1 = arith.constant 0 : index
    %0 = vector.load %arg1[%c0, %c0_0, %c0_1] : memref<1x8x32xf32, #tpu.memory_space<vmem>>, vector<1x8x32xf32>
    %1 = vector.shape_cast %0 : vector<1x8x32xf32> to vector<8x32xf32>
    %cst = arith.constant 0.353553385 : f32
    %2 = vector.broadcast %cst : f32 to vector<8x32xf32>
    %3 = arith.mulf %1, %2 : vector<8x32xf32>
    %c0_2 = arith.constant 0 : index
    %c0_3 = arith.constant 0 : index
    %c0_4 = arith.constant 0 : index
    %4 = vector.load %arg2[%c0_2, %c0_3, %c0_4] : memref<1x8x64xf32, #tpu.memory_space<vmem>>, vector<1x8x64xf32>
    %5 = vector.shape_cast %4 : vector<1x8x64xf32> to vector<8x64xf32>
    %6 = vector.extract_strided_slice %5 {offsets = [0, 0], sizes = [8, 32], strides = [1, 1]} : vector<8x64xf32> to vector<8x32xf32>
    %7 = vector.extract_strided_slice %5 {offsets = [0, 32], sizes = [8, 32], strides = [1, 1]} : vector<8x64xf32> to vector<8x32xf32>
    %c0_5 = arith.constant 0 : index
    %c0_6 = arith.constant 0 : index
    %c0_7 = arith.constant 0 : index
    %8 = vector.load %arg3[%c0_5, %c0_6, %c0_7] : memref<1x1x8xf32, #tpu.memory_space<vmem>>, vector<1x1x8xf32>
    %9 = vector.shape_cast %8 : vector<1x1x8xf32> to vector<1x8xf32>
    %cst_8 = arith.constant 5.000000e-01 : f32
    %10 = vector.broadcast %cst_8 : f32 to vector<1x8xf32>
    %11 = arith.cmpf ogt, %9, %10 : vector<1x8xf32>
    %12 = vector.extract_strided_slice %3 {offsets = [0, 0], sizes = [8, 8], strides = [1, 1]} : vector<8x32xf32> to vector<8x8xf32>
    %13 = arith.truncf %12 : vector<8x8xf32> to vector<8x8xbf16>
    %14 = vector.extract_strided_slice %6 {offsets = [0, 0], sizes = [8, 8], strides = [1, 1]} : vector<8x32xf32> to vector<8x8xf32>
    %15 = arith.truncf %14 : vector<8x8xf32> to vector<8x8xbf16>
    %16 = vector.extract_strided_slice %7 {offsets = [0, 0], sizes = [8, 8], strides = [1, 1]} : vector<8x32xf32> to vector<8x8xf32>
    %17 = arith.truncf %16 : vector<8x8xf32> to vector<8x8xbf16>
    %cst_9 = arith.constant dense<0.000000e+00> : vector<8x8xf32>
    %18 = tpu.matmul %13, %15, %cst_9 {dimension_numbers = #tpu.dot_dimension_numbers<[1], [1], [0], [0], [0, 0, 1, 0], [], []>} : vector<8x8xbf16>, vector<8x8xbf16>, vector<8x8xf32> -> vector<8x8xf32>
    %cst_10 = arith.constant -1.000000e+09 : f32
    %19 = vector.shape_cast %11 : vector<1x8xi1> to vector<1x8xi1>
    %20 = vector.broadcast %19 : vector<1x8xi1> to vector<8x8xi1>
    %21 = vector.broadcast %cst_10 : f32 to vector<8x8xf32>
    %22 = arith.select %20, %18, %21 : vector<8x8xi1>, vector<8x8xf32>
    %cst_11 = arith.constant dense<0xFF800000> : vector<8xf32>
    %23 = vector.multi_reduction <maximumf>, %22, %cst_11 [1] : vector<8x8xf32> to vector<8xf32>
    %24 = vector.shape_cast %23 : vector<8xf32> to vector<8x1xf32>
    %25 = vector.broadcast %24 : vector<8x1xf32> to vector<8x8xf32>
    %26 = arith.subf %22, %25 : vector<8x8xf32>
    %27 = math.exp %26 : vector<8x8xf32>
    %cst_12 = arith.constant dense<0.000000e+00> : vector<8xf32>
    %28 = vector.multi_reduction <add>, %27, %cst_12 [1] : vector<8x8xf32> to vector<8xf32>
    %29 = vector.shape_cast %28 : vector<8xf32> to vector<8x1xf32>
    %30 = tpu.reciprocal %29 {approx = true} : vector<8x1xf32> -> vector<8x1xf32>
    %31 = arith.truncf %27 : vector<8x8xf32> to vector<8x8xbf16>
    %cst_13 = arith.constant dense<0.000000e+00> : vector<8x8xf32>
    %32 = tpu.matmul %31, %17, %cst_13 {dimension_numbers = #tpu.dot_dimension_numbers<[1], [0], [0], [1], [0, 0, 1, 1], [], []>} : vector<8x8xbf16>, vector<8x8xbf16>, vector<8x8xf32> -> vector<8x8xf32>
    %33 = vector.broadcast %30 : vector<8x1xf32> to vector<8x8xf32>
    %34 = arith.mulf %32, %33 : vector<8x8xf32>
    %35 = vector.extract_strided_slice %3 {offsets = [0, 8], sizes = [8, 8], strides = [1, 1]} : vector<8x32xf32> to vector<8x8xf32>
    %36 = arith.truncf %35 : vector<8x8xf32> to vector<8x8xbf16>
    %37 = vector.extract_strided_slice %6 {offsets = [0, 8], sizes = [8, 8], strides = [1, 1]} : vector<8x32xf32> to vector<8x8xf32>
    %38 = arith.truncf %37 : vector<8x8xf32> to vector<8x8xbf16>
    %39 = vector.extract_strided_slice %7 {offsets = [0, 8], sizes = [8, 8], strides = [1, 1]} : vector<8x32xf32> to vector<8x8xf32>
    %40 = arith.truncf %39 : vector<8x8xf32> to vector<8x8xbf16>
    %cst_14 = arith.constant dense<0.000000e+00> : vector<8x8xf32>
    %41 = tpu.matmul %36, %38, %cst_14 {dimension_numbers = #tpu.dot_dimension_numbers<[1], [1], [0], [0], [0, 0, 1, 0], [], []>} : vector<8x8xbf16>, vector<8x8xbf16>, vector<8x8xf32> -> vector<8x8xf32>
    %cst_15 = arith.constant -1.000000e+09 : f32
    %42 = vector.shape_cast %11 : vector<1x8xi1> to vector<1x8xi1>
    %43 = vector.broadcast %42 : vector<1x8xi1> to vector<8x8xi1>
    %44 = vector.broadcast %cst_15 : f32 to vector<8x8xf32>
    %45 = arith.select %43, %41, %44 : vector<8x8xi1>, vector<8x8xf32>
    %cst_16 = arith.constant dense<0xFF800000> : vector<8xf32>
    %46 = vector.multi_reduction <maximumf>, %45, %cst_16 [1] : vector<8x8xf32> to vector<8xf32>
    %47 = vector.shape_cast %46 : vector<8xf32> to vector<8x1xf32>
    %48 = vector.broadcast %47 : vector<8x1xf32> to vector<8x8xf32>
    %49 = arith.subf %45, %48 : vector<8x8xf32>
    %50 = math.exp %49 : vector<8x8xf32>
    %cst_17 = arith.constant dense<0.000000e+00> : vector<8xf32>
    %51 = vector.multi_reduction <add>, %50, %cst_17 [1] : vector<8x8xf32> to vector<8xf32>
    %52 = vector.shape_cast %51 : vector<8xf32> to vector<8x1xf32>
    %53 = tpu.reciprocal %52 {approx = true} : vector<8x1xf32> -> vector<8x1xf32>
    %54 = arith.truncf %50 : vector<8x8xf32> to vector<8x8xbf16>
    %cst_18 = arith.constant dense<0.000000e+00> : vector<8x8xf32>
    %55 = tpu.matmul %54, %40, %cst_18 {dimension_numbers = #tpu.dot_dimension_numbers<[1], [0], [0], [1], [0, 0, 1, 1], [], []>} : vector<8x8xbf16>, vector<8x8xbf16>, vector<8x8xf32> -> vector<8x8xf32>
    %56 = vector.broadcast %53 : vector<8x1xf32> to vector<8x8xf32>
    %57 = arith.mulf %55, %56 : vector<8x8xf32>
    %58 = vector.extract_strided_slice %3 {offsets = [0, 16], sizes = [8, 8], strides = [1, 1]} : vector<8x32xf32> to vector<8x8xf32>
    %59 = arith.truncf %58 : vector<8x8xf32> to vector<8x8xbf16>
    %60 = vector.extract_strided_slice %6 {offsets = [0, 16], sizes = [8, 8], strides = [1, 1]} : vector<8x32xf32> to vector<8x8xf32>
    %61 = arith.truncf %60 : vector<8x8xf32> to vector<8x8xbf16>
    %62 = vector.extract_strided_slice %7 {offsets = [0, 16], sizes = [8, 8], strides = [1, 1]} : vector<8x32xf32> to vector<8x8xf32>
    %63 = arith.truncf %62 : vector<8x8xf32> to vector<8x8xbf16>
    %cst_19 = arith.constant dense<0.000000e+00> : vector<8x8xf32>
    %64 = tpu.matmul %59, %61, %cst_19 {dimension_numbers = #tpu.dot_dimension_numbers<[1], [1], [0], [0], [0, 0, 1, 0], [], []>} : vector<8x8xbf16>, vector<8x8xbf16>, vector<8x8xf32> -> vector<8x8xf32>
    %cst_20 = arith.constant -1.000000e+09 : f32
    %65 = vector.shape_cast %11 : vector<1x8xi1> to vector<1x8xi1>
    %66 = vector.broadcast %65 : vector<1x8xi1> to vector<8x8xi1>
    %67 = vector.broadcast %cst_20 : f32 to vector<8x8xf32>
    %68 = arith.select %66, %64, %67 : vector<8x8xi1>, vector<8x8xf32>
    %cst_21 = arith.constant dense<0xFF800000> : vector<8xf32>
    %69 = vector.multi_reduction <maximumf>, %68, %cst_21 [1] : vector<8x8xf32> to vector<8xf32>
    %70 = vector.shape_cast %69 : vector<8xf32> to vector<8x1xf32>
    %71 = vector.broadcast %70 : vector<8x1xf32> to vector<8x8xf32>
    %72 = arith.subf %68, %71 : vector<8x8xf32>
    %73 = math.exp %72 : vector<8x8xf32>
    %cst_22 = arith.constant dense<0.000000e+00> : vector<8xf32>
    %74 = vector.multi_reduction <add>, %73, %cst_22 [1] : vector<8x8xf32> to vector<8xf32>
    %75 = vector.shape_cast %74 : vector<8xf32> to vector<8x1xf32>
    %76 = tpu.reciprocal %75 {approx = true} : vector<8x1xf32> -> vector<8x1xf32>
    %77 = arith.truncf %73 : vector<8x8xf32> to vector<8x8xbf16>
    %cst_23 = arith.constant dense<0.000000e+00> : vector<8x8xf32>
    %78 = tpu.matmul %77, %63, %cst_23 {dimension_numbers = #tpu.dot_dimension_numbers<[1], [0], [0], [1], [0, 0, 1, 1], [], []>} : vector<8x8xbf16>, vector<8x8xbf16>, vector<8x8xf32> -> vector<8x8xf32>
    %79 = vector.broadcast %76 : vector<8x1xf32> to vector<8x8xf32>
    %80 = arith.mulf %78, %79 : vector<8x8xf32>
    %81 = vector.extract_strided_slice %3 {offsets = [0, 24], sizes = [8, 8], strides = [1, 1]} : vector<8x32xf32> to vector<8x8xf32>
    %82 = arith.truncf %81 : vector<8x8xf32> to vector<8x8xbf16>
    %83 = vector.extract_strided_slice %6 {offsets = [0, 24], sizes = [8, 8], strides = [1, 1]} : vector<8x32xf32> to vector<8x8xf32>
    %84 = arith.truncf %83 : vector<8x8xf32> to vector<8x8xbf16>
    %85 = vector.extract_strided_slice %7 {offsets = [0, 24], sizes = [8, 8], strides = [1, 1]} : vector<8x32xf32> to vector<8x8xf32>
    %86 = arith.truncf %85 : vector<8x8xf32> to vector<8x8xbf16>
    %cst_24 = arith.constant dense<0.000000e+00> : vector<8x8xf32>
    %87 = tpu.matmul %82, %84, %cst_24 {dimension_numbers = #tpu.dot_dimension_numbers<[1], [1], [0], [0], [0, 0, 1, 0], [], []>} : vector<8x8xbf16>, vector<8x8xbf16>, vector<8x8xf32> -> vector<8x8xf32>
    %cst_25 = arith.constant -1.000000e+09 : f32
    %88 = vector.shape_cast %11 : vector<1x8xi1> to vector<1x8xi1>
    %89 = vector.broadcast %88 : vector<1x8xi1> to vector<8x8xi1>
    %90 = vector.broadcast %cst_25 : f32 to vector<8x8xf32>
    %91 = arith.select %89, %87, %90 : vector<8x8xi1>, vector<8x8xf32>
    %cst_26 = arith.constant dense<0xFF800000> : vector<8xf32>
    %92 = vector.multi_reduction <maximumf>, %91, %cst_26 [1] : vector<8x8xf32> to vector<8xf32>
    %93 = vector.shape_cast %92 : vector<8xf32> to vector<8x1xf32>
    %94 = vector.broadcast %93 : vector<8x1xf32> to vector<8x8xf32>
    %95 = arith.subf %91, %94 : vector<8x8xf32>
    %96 = math.exp %95 : vector<8x8xf32>
    %cst_27 = arith.constant dense<0.000000e+00> : vector<8xf32>
    %97 = vector.multi_reduction <add>, %96, %cst_27 [1] : vector<8x8xf32> to vector<8xf32>
    %98 = vector.shape_cast %97 : vector<8xf32> to vector<8x1xf32>
    %99 = tpu.reciprocal %98 {approx = true} : vector<8x1xf32> -> vector<8x1xf32>
    %100 = arith.truncf %96 : vector<8x8xf32> to vector<8x8xbf16>
    %cst_28 = arith.constant dense<0.000000e+00> : vector<8x8xf32>
    %101 = tpu.matmul %100, %86, %cst_28 {dimension_numbers = #tpu.dot_dimension_numbers<[1], [0], [0], [1], [0, 0, 1, 1], [], []>} : vector<8x8xbf16>, vector<8x8xbf16>, vector<8x8xf32> -> vector<8x8xf32>
    %102 = vector.broadcast %99 : vector<8x1xf32> to vector<8x8xf32>
    %103 = arith.mulf %101, %102 : vector<8x8xf32>
    %104 = tpu.concatenate %34, %57, %80, %103 in 1 : vector<8x8xf32>, vector<8x8xf32>, vector<8x8xf32>, vector<8x8xf32> -> vector<8x32xf32>
    %c0_29 = arith.constant 0 : index
    %c0_30 = arith.constant 0 : index
    %c0_31 = arith.constant 0 : index
    %105 = vector.load %arg4[%c0_29, %c0_30, %c0_31] : memref<1x8x32xf32, #tpu.memory_space<vmem>>, vector<1x8x32xf32>
    %106 = vector.shape_cast %105 : vector<1x8x32xf32> to vector<8x32xf32>
    %107 = vector.shape_cast %104 : vector<8x32xf32> to vector<1x8x32xf32>
    tpu.vector_store %arg4[%c0_29, %c0_30, %c0_31], %107 {strides = array<i32>} : memref<1x8x32xf32, #tpu.memory_space<vmem>>, vector<1x8x32xf32>,
    return
  }
  func.func @transform_0(%arg0: i32) -> (i32, i32, i32) {
    %c0_i32 = arith.constant 0 : i32
    %c0_i32_0 = arith.constant 0 : i32
    %c0_i32_1 = arith.constant 0 : i32
    return %arg0, %c0_i32, %c0_i32_0 : i32, i32, i32
  }
  func.func @transform_1(%arg0: i32) -> (i32, i32, i32) {
    %c0_i32 = arith.constant 0 : i32
    %c0_i32_0 = arith.constant 0 : i32
    %c0_i32_1 = arith.constant 0 : i32
    return %arg0, %c0_i32, %c0_i32_0 : i32, i32, i32
  }
  func.func @transform_2(%arg0: i32) -> (i32, i32, i32) {
    %c0_i32 = arith.constant 0 : i32
    %c0_i32_0 = arith.constant 0 : i32
    %c0_i32_1 = arith.constant 0 : i32
    return %arg0, %c0_i32, %c0_i32_0 : i32, i32, i32
  }
  func.func @transform_3(%arg0: i32) -> (i32, i32, i32) {
    %c0_i32 = arith.constant 0 : i32
    %c0_i32_0 = arith.constant 0 : i32
    %c0_i32_1 = arith.constant 0 : i32
    return %arg0, %c0_i32, %c0_i32_0 : i32, i32, i32
  }
}

</mosaic_0001>

<llo_original>
// kernel: vanilla_transformer_forward.31
$region0: #{vanilla_transformer_forward.31}
  #allocation0 [shape = 'u32[]', space=smem, size = 0x4, offset = 0x4, fixed_abs, tag = 'smem constant byte address 0x4 - core index']
  #allocation1 [shape = 'u32[144,128]{1,0:T(1,128)}', space=vmem, size = 0x12000, scoped, tag = 'internal scratch']
  #allocation2 [shape = 'f32[16,128]{1,0:T(8,128)}', space=vmem, size = 0x2000, scoped, tag = 'scratch operand']
  %s0 = inlined_call_operand.vmem [shape: f32[16,128], index: 0, kind: input, shape index: {}]
  %s1 = inlined_call_operand.vmem [shape: bf16[128,128], index: 1, kind: input, shape index: {}]
  %s2 = inlined_call_operand.vmem [shape: f32[1,128], index: 2, kind: input, shape index: {}]
  %s3 = inlined_call_operand.vmem [shape: f32[16,128], index: 3, kind: input, shape index: {}]
  %s4 = inlined_call_operand.vmem [shape: f32[1,128], index: 4, kind: input, shape index: {}]
  %s5 = inlined_call_operand.vmem [shape: f32[1,128], index: 5, kind: input, shape index: {}]
  %s6 = inlined_call_operand.vmem [shape: f32[16,128], index: 6, kind: output, shape index: {}]
  %s7 = sld [smem:[#allocation0]]
  $region42: #{vanilla_transformer_forward.31} parent=0
    _
  %s9 = ssub.s32 1, %s7
  %s10 = scalar_select 0, %s9, %s7
  // Predicated region
  $region2: #{vanilla_transformer_forward.31} parent=0 // pred_check
    _
  $region3: #{vanilla_transformer_forward.31} parent=0 // pred_check_branch
    %12 = sbr.rel (0) target = $region5
  $region4: #{vanilla_transformer_forward.31} parent=0 // pred_region
    _
  $region5: #{vanilla_transformer_forward.31} parent=0 // pred_fallthru
    _
  // Predicated region
  $region6: #{vanilla_transformer_forward.31} parent=0 // pred_check
    _
  $region7: #{vanilla_transformer_forward.31} parent=0 // pred_check_branch
    %14 = sbr.rel (0) target = $region9
  $region8: #{vanilla_transformer_forward.31} parent=0 // pred_region
    _
  $region9: #{vanilla_transformer_forward.31} parent=0 // pred_fallthru
    _
  // Predicated region
  $region10: #{vanilla_transformer_forward.31} parent=0 // pred_check
    _
  $region11: #{vanilla_transformer_forward.31} parent=0 // pred_check_branch
    %16 = sbr.rel (0) target = $region13
  $region12: #{vanilla_transformer_forward.31} parent=0 // pred_region
    _
  $region13: #{vanilla_transformer_forward.31} parent=0 // pred_fallthru
    _
  // Predicated region
  $region14: #{vanilla_transformer_forward.31} parent=0 // pred_check
    _
  $region15: #{vanilla_transformer_forward.31} parent=0 // pred_check_branch
    %18 = sbr.rel (0) target = $region17
  $region16: #{vanilla_transformer_forward.31} parent=0 // pred_region
    _
  $region17: #{vanilla_transformer_forward.31} parent=0 // pred_fallthru
    _
  // Predicated region
  $region18: #{vanilla_transformer_forward.31} parent=0 // pred_check
    _
  $region19: #{vanilla_transformer_forward.31} parent=0 // pred_check_branch
    %20 = sbr.rel (0) target = $region21
  $region20: #{vanilla_transformer_forward.31} parent=0 // pred_region
    _
  $region21: #{vanilla_transformer_forward.31} parent=0 // pred_fallthru
    _
  // Predicated region
  $region22: #{vanilla_transformer_forward.31} parent=0 // pred_check
    _
  $region23: #{vanilla_transformer_forward.31} parent=0 // pred_check_branch
    %22 = sbr.rel (0) target = $region25
  $region24: #{vanilla_transformer_forward.31} parent=0 // pred_region
    _
  $region25: #{vanilla_transformer_forward.31} parent=0 // pred_fallthru
    _
  %p24 = scmp.eq.s32.totalorder 0, 0
  // Predicated region
  $region26: #{vanilla_transformer_forward.31} parent=0 // pred_check
    %p25 = pneg %p24
  $region27: #{vanilla_transformer_forward.31} parent=0 // pred_check_branch
    %27 = sbr.rel (%p25) target = $region29
  $region28: #{vanilla_transformer_forward.31} parent=0 // pred_region
    %28 = vst [vmem:[#allocation2] sm:$0xff] 0.0
    %29 = vst [vmem:[#allocation2 + $0x8] sm:$0xff] 0.0
  $region29: #{vanilla_transformer_forward.31} parent=0 // pred_fallthru
    _
  %v30 = vld [vmem:[#allocation2] sm:$0xff]
  %v31 = vld [vmem:[#allocation2 + $0x8] sm:$0xff]
  %v32 = vld [vmem:[%s0] sm:$0xff]
  %v33 = vld [vmem:[%s0 + $0x8] sm:$0xff]
  %v34 = vpack.c.bf16 %v33, %v32
  %v35 = vld [vmem:[%s1] sm:$0xf]
  %v36 = vld [vmem:[%s1 + $0x4] sm:$0xf]
  %v37 = vld [vmem:[%s1 + $0x8] sm:$0xf]
  %v38 = vld [vmem:[%s1 + $0xc] sm:$0xf]
  %v39 = vld [vmem:[%s1 + $0x10] sm:$0xf]
  %v40 = vld [vmem:[%s1 + $0x14] sm:$0xf]
  %v41 = vld [vmem:[%s1 + $0x18] sm:$0xf]
  %v42 = vld [vmem:[%s1 + $0x1c] sm:$0xf]
  %v43 = vld [vmem:[%s1 + $0x20] sm:$0xf]
  %v44 = vld [vmem:[%s1 + $0x24] sm:$0xf]
  %v45 = vld [vmem:[%s1 + $0x28] sm:$0xf]
  %v46 = vld [vmem:[%s1 + $0x2c] sm:$0xf]
  %v47 = vld [vmem:[%s1 + $0x30] sm:$0xf]
  %v48 = vld [vmem:[%s1 + $0x34] sm:$0xf]
  %v49 = vld [vmem:[%s1 + $0x38] sm:$0xf]
  %v50 = vld [vmem:[%s1 + $0x3c] sm:$0xf]
  %v67 = vunpack.c.l.b16 %v35
  %v68 = vunpack.c.l.b16 %v36
  %v69 = vunpack.c.l.b16 %v37
  %v70 = vunpack.c.l.b16 %v38
  %v71 = vunpack.c.l.b16 %v39
  %v72 = vunpack.c.l.b16 %v40
  %v73 = vunpack.c.l.b16 %v41
  %v74 = vunpack.c.l.b16 %v42
  %v75 = vunpack.c.l.b16 %v43
  %v76 = vunpack.c.l.b16 %v44
  %v77 = vunpack.c.l.b16 %v45
  %v78 = vunpack.c.l.b16 %v46
  %v79 = vunpack.c.l.b16 %v47
  %v80 = vunpack.c.l.b16 %v48
  %v81 = vunpack.c.l.b16 %v49
  %v82 = vunpack.c.l.b16 %v50
  %v83 = vpack.c.b16 %v68, %v67
  %v84 = vpack.c.b16 %v70, %v69
  %v85 = vpack.c.b16 %v72, %v71
  %v86 = vpack.c.b16 %v74, %v73
  %v87 = vpack.c.b16 %v76, %v75
  %v88 = vpack.c.b16 %v78, %v77
  %v89 = vpack.c.b16 %v80, %v79
  %v90 = vpack.c.b16 %v82, %v81
  %99 = vmatprep.subr.bf16.mxu0 0
  %100 = vmatpush1.bf16.msra.mxu0 %v83
  %101 = vmatprep.subr.bf16.mxu0 0
  %102 = vmatpush1.bf16.msra.mxu0 %v84
  %103 = vmatprep.subr.bf16.mxu0 0
  %104 = vmatpush1.bf16.msra.mxu0 %v85
  %105 = vmatprep.subr.bf16.mxu0 0
  %106 = vmatpush1.bf16.msra.mxu0 %v86
  %107 = vmatprep.subr.bf16.mxu0 0
  %108 = vmatpush1.bf16.msra.mxu0 %v87
  %109 = vmatprep.subr.bf16.mxu0 0
  %110 = vmatpush1.bf16.msra.mxu0 %v88
  %111 = vmatprep.subr.bf16.mxu0 0
  %112 = vmatpush1.bf16.msra.mxu0 %v89
  %113 = vmatprep.subr.bf16.mxu0 0
  %114 = vmatpush1.bf16.msra.mxu0 %v90
  %115 = vmatprep.subr.bf16.mxu0 0
  %116 = vmatpush1.bf16.msra.mxu0 0
  %117 = vmatprep.subr.bf16.mxu0 0
  %118 = vmatpush1.bf16.msra.mxu0 0
  %119 = vmatprep.subr.bf16.mxu0 0
  %120 = vmatpush1.bf16.msra.mxu0 0
  %121 = vmatprep.subr.bf16.mxu0 0
  %122 = vmatpush1.bf16.msra.mxu0 0
  %123 = vmatprep.subr.bf16.mxu0 0
  %124 = vmatpush1.bf16.msra.mxu0 0
  %125 = vmatprep.subr.bf16.mxu0 0
  %126 = vmatpush1.bf16.msra.mxu0 0
  %127 = vmatprep.subr.bf16.mxu0 0
  %128 = vmatpush1.bf16.msra.mxu0 0
  %129 = vmatprep.subr.bf16.mxu0 0
  %130 = vmatpush1.bf16.msra.mxu0 0
  %131 = vmatprep.mubr.bf16.mxu0 0
  %132 = vmatmul.mubr.bf16.gmra.mrb[0].mxu0 %v34
  %v133 = vpop.f32.mrb[0].mxu0
  %v134 = vadd.f32 0.0, %v133
  %v135 = vpop.f32.mrb[0].mxu0
  %v136 = vpop.f32.mrb[0].mxu0
  %v137 = vadd.f32 0.0, %v136
  %v138 = vpop.f32.mrb[0].mxu0
  %139 = vdwg.mxu0
  %v140 = vadd.f32 %v30, %v134
  %v141 = vadd.f32 %v31, %v137
  %142 = vst [vmem:[#allocation2] sm:$0xff] %v140
  %143 = vst [vmem:[#allocation2 + $0x8] sm:$0xff] %v141
  // Predicated region
  $region30: #{vanilla_transformer_forward.31} parent=0 // pred_check
    %p144 = pneg %p24
  $region31: #{vanilla_transformer_forward.31} parent=0 // pred_check_branch
    %146 = sbr.rel (%p144) target = $region33
  $region32: #{vanilla_transformer_forward.31} parent=0 // pred_region
    %v147 = vld [vmem:[#allocation2] sm:$0xff]
    %v148 = vld [vmem:[#allocation2 + $0x8] sm:$0xff]
    %v149 = vld [vmem:[%s2] sm:$0x1]
    %v151 = vlaneseq
    %v152 = vshrl.u32 %v151, 7
    %v153 = vsub.s32 0, %v152
    %v154 = vrot.slane %v149, %v153
    %v156 = vadd.f32 %v147, %v154
    %v157 = vadd.f32 %v148, %v154
    %v158 = vld [vmem:[%s3] sm:$0xff]
    %v159 = vld [vmem:[%s3 + $0x8] sm:$0xff]
    %v160 = vadd.f32 %v156, %v158
    %v161 = vadd.f32 %v157, %v159
    %v162 = vlaneseq
    %v163 = vand.u32 %v162, 127
    %vm164 = vcmp.lt.s32.totalorder %v163, 32
    %v165 = vsel %vm164, 1, 0
    %v166 = vcvt.s32.f32 %v165
    %v167 = vmul.f32 %v160, %v166
    %v168 = vmul.f32 %v161, %v166
    %169 = vadd.xlane.f32.xlu0 %v167
    %v170 = vpop.xlane.xlu0 %169
    %171 = vadd.xlane.f32.xlu0 %v168
    %v172 = vpop.xlane.xlu0 %171
    %v173 = vmul.f32 %v170, 0.03125
    %v174 = vmul.f32 %v172, 0.03125
    %v175 = vsub.f32 %v160, %v173
    %v176 = vsub.f32 %v161, %v174
    %v177 = vmul.f32 %v175, %v166
    %v178 = vmul.f32 %v176, %v166
    %v179 = vmul.f32 %v177, %v177
    %v180 = vmul.f32 %v178, %v178
    %181 = vadd.xlane.f32.xlu0 %v179
    %v182 = vpop.xlane.xlu0 %181
    %183 = vadd.xlane.f32.xlu0 %v180
    %v184 = vpop.xlane.xlu0 %183
    %v185 = vmul.f32 %v182, 0.03125
    %v186 = vmul.f32 %v184, 0.03125
    %v187 = vadd.f32 %v185, 1e-05
    %v188 = vadd.f32 %v186, 1e-05
    %v189 = vrsqrt.pop %v187
    %v190 = vrsqrt.pop %v188
    %v191 = vmul.f32 %v175, %v189
    %v192 = vmul.f32 %v176, %v190
    %v193 = vld [vmem:[%s4] sm:$0x1]
    %v195 = vlaneseq
    %v196 = vshrl.u32 %v195, 7
    %v197 = vsub.s32 0, %v196
    %v198 = vrot.slane %v193, %v197
    %v200 = vmul.f32 %v191, %v198
    %v201 = vmul.f32 %v192, %v198
    %v202 = vld [vmem:[%s5] sm:$0x1]
    %v204 = vlaneseq
    %v205 = vshrl.u32 %v204, 7
    %v206 = vsub.s32 0, %v205
    %v207 = vrot.slane %v202, %v206
    %v209 = vadd.f32 %v200, %v207
    %v210 = vadd.f32 %v201, %v207
    %211 = vst [vmem:[%s6] sm:$0xff] %v209
    %212 = vst [vmem:[%s6 + $0x8] sm:$0xff] %v210
  $region33: #{vanilla_transformer_forward.31} parent=0 // pred_fallthru
    _
  // Predicated region
  $region34: #{vanilla_transformer_forward.31} parent=0 // pred_check
    _
  $region35: #{vanilla_transformer_forward.31} parent=0 // pred_check_branch
    %214 = sbr.rel (0) target = $region37
  $region36: #{vanilla_transformer_forward.31} parent=0 // pred_region
    _
  $region37: #{vanilla_transformer_forward.31} parent=0 // pred_fallthru
    _
  // Predicated region
  $region38: #{vanilla_transformer_forward.31} parent=0 // pred_check
    _
  $region39: #{vanilla_transformer_forward.31} parent=0 // pred_check_branch
    %216 = sbr.rel (0) target = $region41
  $region40: #{vanilla_transformer_forward.31} parent=0 // pred_region
    _
  $region41: #{vanilla_transformer_forward.31} parent=0 // pred_fallthru
    _

// kernel: vanilla_transformer_forward.29
$region0: #{vanilla_transformer_forward.29}
  #allocation0 [shape = 'u32[]', space=smem, size = 0x4, offset = 0x4, fixed_abs, tag = 'smem constant byte address 0x4 - core index']
  #allocation1 [shape = 'u32[144,128]{1,0:T(1,128)}', space=vmem, size = 0x12000, scoped, tag = 'internal scratch']
  #allocation2 [shape = 'f32[16,128]{1,0:T(8,128)}', space=vmem, size = 0x2000, scoped, tag = 'scratch operand']
  %s0 = inlined_call_operand.vmem [shape: f32[16,128], index: 0, kind: input, shape index: {}]
  %s1 = inlined_call_operand.vmem [shape: bf16[128,128], index: 1, kind: input, shape index: {}]
  %s2 = inlined_call_operand.vmem [shape: f32[1,128], index: 2, kind: input, shape index: {}]
  %s3 = inlined_call_operand.vmem [shape: f32[16,128], index: 3, kind: output, shape index: {}]
  %s4 = sld [smem:[#allocation0]]
  $region30: #{vanilla_transformer_forward.29} parent=0
    _
  %s6 = ssub.s32 1, %s4
  %s7 = scalar_select 0, %s6, %s4
  // Predicated region
  $region2: #{vanilla_transformer_forward.29} parent=0 // pred_check
    _
  $region3: #{vanilla_transformer_forward.29} parent=0 // pred_check_branch
    %9 = sbr.rel (0) target = $region5
  $region4: #{vanilla_transformer_forward.29} parent=0 // pred_region
    _
  $region5: #{vanilla_transformer_forward.29} parent=0 // pred_fallthru
    _
  // Predicated region
  $region6: #{vanilla_transformer_forward.29} parent=0 // pred_check
    _
  $region7: #{vanilla_transformer_forward.29} parent=0 // pred_check_branch
    %11 = sbr.rel (0) target = $region9
  $region8: #{vanilla_transformer_forward.29} parent=0 // pred_region
    _
  $region9: #{vanilla_transformer_forward.29} parent=0 // pred_fallthru
    _
  // Predicated region
  $region10: #{vanilla_transformer_forward.29} parent=0 // pred_check
    _
  $region11: #{vanilla_transformer_forward.29} parent=0 // pred_check_branch
    %13 = sbr.rel (0) target = $region13
  $region12: #{vanilla_transformer_forward.29} parent=0 // pred_region
    _
  $region13: #{vanilla_transformer_forward.29} parent=0 // pred_fallthru
    _
  %p15 = scmp.eq.s32.totalorder 0, 0
  // Predicated region
  $region14: #{vanilla_transformer_forward.29} parent=0 // pred_check
    %p16 = pneg %p15
  $region15: #{vanilla_transformer_forward.29} parent=0 // pred_check_branch
    %18 = sbr.rel (%p16) target = $region17
  $region16: #{vanilla_transformer_forward.29} parent=0 // pred_region
    %19 = vst [vmem:[#allocation2] sm:$0xff] 0.0
    %20 = vst [vmem:[#allocation2 + $0x8] sm:$0xff] 0.0
  $region17: #{vanilla_transformer_forward.29} parent=0 // pred_fallthru
    _
  %v21 = vld [vmem:[#allocation2] sm:$0xff]
  %v22 = vld [vmem:[#allocation2 + $0x8] sm:$0xff]
  %v23 = vld [vmem:[%s0] sm:$0xff]
  %v24 = vld [vmem:[%s0 + $0x8] sm:$0xff]
  %v25 = vpack.c.bf16 %v24, %v23
  %v26 = vld [vmem:[%s1] sm:$0xf]
  %v27 = vld [vmem:[%s1 + $0x4] sm:$0xf]
  %v28 = vld [vmem:[%s1 + $0x8] sm:$0xf]
  %v29 = vld [vmem:[%s1 + $0xc] sm:$0xf]
  %v30 = vld [vmem:[%s1 + $0x10] sm:$0xf]
  %v31 = vld [vmem:[%s1 + $0x14] sm:$0xf]
  %v32 = vld [vmem:[%s1 + $0x18] sm:$0xf]
  %v33 = vld [vmem:[%s1 + $0x1c] sm:$0xf]
  %v34 = vld [vmem:[%s1 + $0x20] sm:$0xf]
  %v35 = vld [vmem:[%s1 + $0x24] sm:$0xf]
  %v36 = vld [vmem:[%s1 + $0x28] sm:$0xf]
  %v37 = vld [vmem:[%s1 + $0x2c] sm:$0xf]
  %v38 = vld [vmem:[%s1 + $0x30] sm:$0xf]
  %v39 = vld [vmem:[%s1 + $0x34] sm:$0xf]
  %v40 = vld [vmem:[%s1 + $0x38] sm:$0xf]
  %v41 = vld [vmem:[%s1 + $0x3c] sm:$0xf]
  %v58 = vunpack.c.l.b16 %v26
  %v59 = vunpack.c.l.b16 %v27
  %v60 = vunpack.c.l.b16 %v28
  %v61 = vunpack.c.l.b16 %v29
  %v62 = vunpack.c.l.b16 %v30
  %v63 = vunpack.c.l.b16 %v31
  %v64 = vunpack.c.l.b16 %v32
  %v65 = vunpack.c.l.b16 %v33
  %v66 = vunpack.c.l.b16 %v34
  %v67 = vunpack.c.l.b16 %v35
  %v68 = vunpack.c.l.b16 %v36
  %v69 = vunpack.c.l.b16 %v37
  %v70 = vunpack.c.l.b16 %v38
  %v71 = vunpack.c.l.b16 %v39
  %v72 = vunpack.c.l.b16 %v40
  %v73 = vunpack.c.l.b16 %v41
  %v74 = vpack.c.b16 %v59, %v58
  %v75 = vpack.c.b16 %v61, %v60
  %v76 = vpack.c.b16 %v63, %v62
  %v77 = vpack.c.b16 %v65, %v64
  %v78 = vpack.c.b16 %v67, %v66
  %v79 = vpack.c.b16 %v69, %v68
  %v80 = vpack.c.b16 %v71, %v70
  %v81 = vpack.c.b16 %v73, %v72
  %90 = vmatprep.subr.bf16.mxu0 0
  %91 = vmatpush1.bf16.msra.mxu0 %v74
  %92 = vmatprep.subr.bf16.mxu0 0
  %93 = vmatpush1.bf16.msra.mxu0 %v75
  %94 = vmatprep.subr.bf16.mxu0 0
  %95 = vmatpush1.bf16.msra.mxu0 %v76
  %96 = vmatprep.subr.bf16.mxu0 0
  %97 = vmatpush1.bf16.msra.mxu0 %v77
  %98 = vmatprep.subr.bf16.mxu0 0
  %99 = vmatpush1.bf16.msra.mxu0 %v78
  %100 = vmatprep.subr.bf16.mxu0 0
  %101 = vmatpush1.bf16.msra.mxu0 %v79
  %102 = vmatprep.subr.bf16.mxu0 0
  %103 = vmatpush1.bf16.msra.mxu0 %v80
  %104 = vmatprep.subr.bf16.mxu0 0
  %105 = vmatpush1.bf16.msra.mxu0 %v81
  %106 = vmatprep.subr.bf16.mxu0 0
  %107 = vmatpush1.bf16.msra.mxu0 0
  %108 = vmatprep.subr.bf16.mxu0 0
  %109 = vmatpush1.bf16.msra.mxu0 0
  %110 = vmatprep.subr.bf16.mxu0 0
  %111 = vmatpush1.bf16.msra.mxu0 0
  %112 = vmatprep.subr.bf16.mxu0 0
  %113 = vmatpush1.bf16.msra.mxu0 0
  %114 = vmatprep.subr.bf16.mxu0 0
  %115 = vmatpush1.bf16.msra.mxu0 0
  %116 = vmatprep.subr.bf16.mxu0 0
  %117 = vmatpush1.bf16.msra.mxu0 0
  %118 = vmatprep.subr.bf16.mxu0 0
  %119 = vmatpush1.bf16.msra.mxu0 0
  %120 = vmatprep.subr.bf16.mxu0 0
  %121 = vmatpush1.bf16.msra.mxu0 0
  %122 = vmatprep.mubr.bf16.mxu0 0
  %123 = vmatmul.mubr.bf16.gmra.mrb[0].mxu0 %v25
  %v124 = vpop.f32.mrb[0].mxu0
  %v125 = vadd.f32 0.0, %v124
  %v126 = vpop.f32.mrb[0].mxu0
  %v127 = vpop.f32.mrb[0].mxu0
  %v128 = vadd.f32 0.0, %v127
  %v129 = vpop.f32.mrb[0].mxu0
  %130 = vdwg.mxu0
  %v131 = vadd.f32 %v21, %v125
  %v132 = vadd.f32 %v22, %v128
  %133 = vst [vmem:[#allocation2] sm:$0xff] %v131
  %134 = vst [vmem:[#allocation2 + $0x8] sm:$0xff] %v132
  // Predicated region
  $region18: #{vanilla_transformer_forward.29} parent=0 // pred_check
    %p135 = pneg %p15
  $region19: #{vanilla_transformer_forward.29} parent=0 // pred_check_branch
    %137 = sbr.rel (%p135) target = $region21
  $region20: #{vanilla_transformer_forward.29} parent=0 // pred_region
    %v138 = vld [vmem:[#allocation2] sm:$0xff]
    %v139 = vld [vmem:[#allocation2 + $0x8] sm:$0xff]
    %v140 = vld [vmem:[%s2] sm:$0x1]
    %v142 = vlaneseq
    %v143 = vshrl.u32 %v142, 7
    %v144 = vsub.s32 0, %v143
    %v145 = vrot.slane %v140, %v144
    %v147 = vadd.f32 %v138, %v145
    %v148 = vadd.f32 %v139, %v145
    %149 = vst [vmem:[%s3] sm:$0xff] %v147
    %150 = vst [vmem:[%s3 + $0x8] sm:$0xff] %v148
  $region21: #{vanilla_transformer_forward.29} parent=0 // pred_fallthru
    _
  // Predicated region
  $region22: #{vanilla_transformer_forward.29} parent=0 // pred_check
    _
  $region23: #{vanilla_transformer_forward.29} parent=0 // pred_check_branch
    %152 = sbr.rel (0) target = $region25
  $region24: #{vanilla_transformer_forward.29} parent=0 // pred_region
    _
  $region25: #{vanilla_transformer_forward.29} parent=0 // pred_fallthru
    _
  // Predicated region
  $region26: #{vanilla_transformer_forward.29} parent=0 // pred_check
    _
  $region27: #{vanilla_transformer_forward.29} parent=0 // pred_check_branch
    %154 = sbr.rel (0) target = $region29
  $region28: #{vanilla_transformer_forward.29} parent=0 // pred_region
    _
  $region29: #{vanilla_transformer_forward.29} parent=0 // pred_fallthru
    _

// kernel: vanilla_transformer_forward.30
$region0: #{vanilla_transformer_forward.30}
  #allocation0 [shape = 'u32[]', space=smem, size = 0x4, offset = 0x4, fixed_abs, tag = 'smem constant byte address 0x4 - core index']
  #allocation1 [shape = 'u32[144,128]{1,0:T(1,128)}', space=vmem, size = 0x12000, scoped, tag = 'internal scratch']
  %s0 = inlined_call_operand.vmem [shape: f32[2,8,96], index: 0, kind: input, shape index: {}]
  %s1 = inlined_call_operand.vmem [shape: f32[2,8,1], index: 1, kind: input, shape index: {}]
  %s2 = inlined_call_operand.vmem [shape: f32[2,1,8], index: 2, kind: input, shape index: {}]
  %s3 = inlined_call_operand.vmem [shape: f32[2,8,32], index: 3, kind: output, shape index: {}]
  %s4 = sld [smem:[#allocation0]]
  $region45: #{vanilla_transformer_forward.30} parent=0
    _
  %s6 = ssub.s32 1, %s4
  %s7 = scalar_select 0, %s6, %s4
  loop: start=0, step=1, limit=4
  $region2: #{vanilla_transformer_forward.30} parent=0 // loop_pre_header
    _
  $region3: #{vanilla_transformer_forward.30} parent=0 // loop_header
    %s9 = sphi 0, %s13
    %p10 = scmp.ge.s32.totalorder %s9, 4
    %s19 = sphi 0, %s21
    %s22 = sphi 0, %s19
    %s23 = sphi 0, %s22
    %s39 = sphi 0, %s23
    %s45 = sphi 0, %s47
    %s48 = sphi 0, %s45
    %s49 = sphi 0, %s48
    %s65 = sphi 0, %s49
    %s71 = sphi 0, %s73
    %s74 = sphi 0, %s71
    %s75 = sphi 0, %s74
    %s91 = sphi 0, %s75
    %s97 = sphi 0, %s99
    %s100 = sphi 0, %s97
    %s101 = sphi 0, %s100
    %s117 = sphi 0, %s101
  $region4: #{vanilla_transformer_forward.30} parent=0 // loop_header_branch
    %12 = sbr.rel (%p10) target = $region8
  $region5: #{vanilla_transformer_forward.30} parent=0 // loop_body
    %s14 = ssub.s32 %s9, 1
    %s15 = ssub.s32 %s9, 2
    %s16 = sadd.s32 %s9, 1
    %s17 = ssub.s32 %s9, %s16
    %p18 = scmp.eq.s32.totalorder %s17, 0
    %s20 = sadd.s32 %s19, 1
    %s21 = scalar_select %p18, %s19, %s20
    %p24 = pneg %p18
    %p25 = scmp.eq.s32.totalorder %s9, 1
    %p26 = por %p24, %p25
    %p27 = scmp.ne.s32.totalorder %s19, %s22
    %p28 = scmp.eq.s32.totalorder %s9, 0
    %p29 = por %p27, %p28
    %p30 = scmp.ne.s32.totalorder %s19, %s22
    %p31 = scmp.eq.s32.totalorder %s14, 1
    %p32 = por %p30, %p31
    %p33 = scmp.ne.s32.totalorder %s22, %s23
    %p34 = scmp.eq.s32.totalorder %s14, 0
    %p35 = por %p33, %p34
    %p36 = scmp.ne.s32.totalorder %s22, %s23
    %p37 = scmp.eq.s32.totalorder %s15, 1
    %p38 = por %p36, %p37
    %p40 = scmp.ne.s32.totalorder %s23, %s39
    %p41 = scmp.eq.s32.totalorder %s15, 0
    %p42 = por %p40, %p41
    %s43 = ssub.s32 %s9, %s16
    %p44 = scmp.eq.s32.totalorder %s43, 0
    %s46 = sadd.s32 %s45, 1
    %s47 = scalar_select %p44, %s45, %s46
    %p50 = pneg %p44
    %p51 = scmp.eq.s32.totalorder %s9, 1
    %p52 = por %p50, %p51
    %p53 = scmp.ne.s32.totalorder %s45, %s48
    %p54 = scmp.eq.s32.totalorder %s9, 0
    %p55 = por %p53, %p54
    %p56 = scmp.ne.s32.totalorder %s45, %s48
    %p57 = scmp.eq.s32.totalorder %s14, 1
    %p58 = por %p56, %p57
    %p59 = scmp.ne.s32.totalorder %s48, %s49
    %p60 = scmp.eq.s32.totalorder %s14, 0
    %p61 = por %p59, %p60
    %p62 = scmp.ne.s32.totalorder %s48, %s49
    %p63 = scmp.eq.s32.totalorder %s15, 1
    %p64 = por %p62, %p63
    %p66 = scmp.ne.s32.totalorder %s49, %s65
    %p67 = scmp.eq.s32.totalorder %s15, 0
    %p68 = por %p66, %p67
    %s69 = ssub.s32 %s9, %s16
    %p70 = scmp.eq.s32.totalorder %s69, 0
    %s72 = sadd.s32 %s71, 1
    %s73 = scalar_select %p70, %s71, %s72
    %p76 = pneg %p70
    %p77 = scmp.eq.s32.totalorder %s9, 1
    %p78 = por %p76, %p77
    %p79 = scmp.ne.s32.totalorder %s71, %s74
    %p80 = scmp.eq.s32.totalorder %s9, 0
    %p81 = por %p79, %p80
    %p82 = scmp.ne.s32.totalorder %s71, %s74
    %p83 = scmp.eq.s32.totalorder %s14, 1
    %p84 = por %p82, %p83
    %p85 = scmp.ne.s32.totalorder %s74, %s75
    %p86 = scmp.eq.s32.totalorder %s14, 0
    %p87 = por %p85, %p86
    %p88 = scmp.ne.s32.totalorder %s74, %s75
    %p89 = scmp.eq.s32.totalorder %s15, 1
    %p90 = por %p88, %p89
    %p92 = scmp.ne.s32.totalorder %s75, %s91
    %p93 = scmp.eq.s32.totalorder %s15, 0
    %p94 = por %p92, %p93
    %s95 = ssub.s32 %s9, %s16
    %p96 = scmp.eq.s32.totalorder %s95, 0
    %s98 = sadd.s32 %s97, 1
    %s99 = scalar_select %p96, %s97, %s98
    %p102 = pneg %p96
    %p103 = scmp.eq.s32.totalorder %s9, 1
    %p104 = por %p102, %p103
    %p105 = scmp.ne.s32.totalorder %s97, %s100
    %p106 = scmp.eq.s32.totalorder %s9, 0
    %p107 = por %p105, %p106
    %p108 = scmp.ne.s32.totalorder %s97, %s100
    %p109 = scmp.eq.s32.totalorder %s14, 1
    %p110 = por %p108, %p109
    %p111 = scmp.ne.s32.totalorder %s100, %s101
    %p112 = scmp.eq.s32.totalorder %s14, 0
    %p113 = por %p111, %p112
    %p114 = scmp.ne.s32.totalorder %s100, %s101
    %p115 = scmp.eq.s32.totalorder %s15, 1
    %p116 = por %p114, %p115
    %p118 = scmp.ne.s32.totalorder %s101, %s117
    %p119 = scmp.eq.s32.totalorder %s15, 0
    %p120 = por %p118, %p119
    %p121 = scmp.le.s32.totalorder 1, %s9
    %p122 = scmp.lt.s32.totalorder %s9, 3
    %p123 = pnand %p121, %p122
    %p124 = pneg %p123
    // Predicated region
    $region9: #{vanilla_transformer_forward.30} parent=5 // pred_check
      _
    $region10: #{vanilla_transformer_forward.30} parent=5 // pred_check_branch
      %126 = sbr.rel (%p123) target = $region12
    $region11: #{vanilla_transformer_forward.30} parent=5 // pred_region
      %s127 = ssub.s32 %s9, 1
    $region12: #{vanilla_transformer_forward.30} parent=5 // pred_fallthru
      _
    %p128 = scmp.lt.s32.totalorder %s9, 2
    // Predicated region
    $region13: #{vanilla_transformer_forward.30} parent=5 // pred_check
      %p129 = pneg %p128
    $region14: #{vanilla_transformer_forward.30} parent=5 // pred_check_branch
      %131 = sbr.rel (%p129) target = $region16
    $region15: #{vanilla_transformer_forward.30} parent=5 // pred_region
      // Predicated region
      $region17: #{vanilla_transformer_forward.30} parent=15 // pred_check
        %p132 = pneg %p29
      $region18: #{vanilla_transformer_forward.30} parent=15 // pred_check_branch
        %134 = sbr.rel (%p132) target = $region20
      $region19: #{vanilla_transformer_forward.30} parent=15 // pred_region
        %p135 = scmp.lt.s32.totalorder %s9, 1
        %s136 = scalar_select %p135, %s9, 1
        %s137 = smul.addr %s136, 8
        %s138 = scalar_lea.vmem %s0, %s137
      $region20: #{vanilla_transformer_forward.30} parent=15 // pred_fallthru
        _
      // Predicated region
      $region21: #{vanilla_transformer_forward.30} parent=15 // pred_check
        %p139 = pneg %p55
      $region22: #{vanilla_transformer_forward.30} parent=15 // pred_check_branch
        %141 = sbr.rel (%p139) target = $region24
      $region23: #{vanilla_transformer_forward.30} parent=15 // pred_region
        %p142 = scmp.lt.s32.totalorder %s9, 1
        %s143 = scalar_select %p142, %s9, 1
        %s144 = smul.addr %s143, 8
        %s145 = scalar_lea.vmem %s1, %s144
      $region24: #{vanilla_transformer_forward.30} parent=15 // pred_fallthru
        _
      // Predicated region
      $region25: #{vanilla_transformer_forward.30} parent=15 // pred_check
        %p146 = pneg %p81
      $region26: #{vanilla_transformer_forward.30} parent=15 // pred_check_branch
        %148 = sbr.rel (%p146) target = $region28
      $region27: #{vanilla_transformer_forward.30} parent=15 // pred_region
        %p149 = scmp.lt.s32.totalorder %s9, 1
        %s150 = scalar_select %p149, %s9, 1
        %s151 = scalar_lea.vmem %s2, %s150
      $region28: #{vanilla_transformer_forward.30} parent=15 // pred_fallthru
        _
    $region16: #{vanilla_transformer_forward.30} parent=5 // pred_fallthru
      _
    %p152 = scmp.le.s32.totalorder 1, %s9
    %p153 = scmp.lt.s32.totalorder %s9, 3
    %p154 = pnand %p152, %p153
    %p155 = pneg %p154
    // Predicated region
    $region29: #{vanilla_transformer_forward.30} parent=5 // pred_check
      _
    $region30: #{vanilla_transformer_forward.30} parent=5 // pred_check_branch
      %157 = sbr.rel (%p154) target = $region32
    $region31: #{vanilla_transformer_forward.30} parent=5 // pred_region
      %s158 = ssub.s32 %s9, 1
      %p159 = scmp.lt.s32.totalorder %s14, 1
      %s160 = scalar_select %p159, %s14, 1
      %s161 = smul.addr %s160, 8
      %s162 = scalar_lea.vmem %s0, %s161
      %p163 = pneg %p35
      %p164 = pneg %p32
      %p165 = scmp.lt.s32.totalorder %s14, 1
      %s166 = scalar_select %p165, %s14, 1
      %s167 = smul.addr %s166, 8
      %s168 = scalar_lea.vmem %s1, %s167
      %p169 = pneg %p61
      %p170 = pneg %p58
      %p171 = scmp.lt.s32.totalorder %s14, 1
      %s172 = scalar_select %p171, %s14, 1
      %s173 = scalar_lea.vmem %s2, %s172
      %p174 = pneg %p87
      %p175 = pneg %p84
      %p176 = pneg %p113
      %p177 = pneg %p110
      %p178 = scmp.lt.s32.totalorder %s14, 1
      %s179 = scalar_select %p178, %s14, 1
      %s180 = smul.addr %s179, 8
      %s181 = scalar_lea.vmem %s3, %s180
      %p182 = scmp.lt.s32.totalorder %s14, 1
      %s183 = scalar_select %p182, %s14, 1
      %s184 = smul.addr %s183, 8
      %s185 = scalar_lea.vmem %s0, %s184
      %p186 = scmp.lt.s32.totalorder %s14, 1
      %s187 = scalar_select %p186, %s14, 1
      %s188 = smul.addr %s187, 8
      %s189 = scalar_lea.vmem %s1, %s188
      %p190 = scmp.lt.s32.totalorder %s14, 1
      %s191 = scalar_select %p190, %s14, 1
      %s192 = scalar_lea.vmem %s2, %s191
      %p193 = scmp.lt.s32.totalorder %s14, 1
      %s194 = scalar_select %p193, %s14, 1
      %s195 = smul.addr %s194, 8
      %s196 = scalar_lea.vmem %s3, %s195
      %v198 = vld [vmem:[%s185] sm:$0xff]
      %v199 = vmul.f32 %v198, 0.35355338
      %v200 = vld [vmem:[%s189] sm:$0xff]
      %v201 = vld [vmem:[%s192] sm:$0x1]
      %203 = vset.pattern.permute.xlu0 0
      %204 = vperm.xlu0 %203, %v200
      %v205 = vpop.permute.xlu0 %204
      %v208 = vlaneseq
      %v209 = vshrl.u32 %v208, 7
      %v210 = vsub.s32 0, %v209
      %v211 = vrot.slane %v201, %v210
      %v213 = vmul.f32 %v205, %v211
      %vm214 = vcmp.gt.f32.partialorder %v213, 0.5
      %v215 = vpack.c.bf16 %v199, %v199
      %v216 = vpack.c.bf16 %v198, %v198
      %218 = vrot.lane.b32.xlu0 %v216, 96
      %v219 = vpop.permute.xlu0 %218
      %vm220 = vcmask 64512
      %v222 = vsel %vm220, %v215, 0
      %v225 = vsel %vm220, %v219, 0
      %227 = vmatprep.subr.bf16.mxu0 0
      %228 = vmatpush1.bf16.xpose.msra.mxu0 %v225
      %229 = vmatprep.subr.bf16.mxu0 0
      %230 = vmatpush1.bf16.xpose.msra.mxu0 0
      %231 = vmatprep.subr.bf16.mxu0 0
      %232 = vmatpush1.bf16.xpose.msra.mxu0 0
      %233 = vmatprep.subr.bf16.mxu0 0
      %234 = vmatpush1.bf16.xpose.msra.mxu0 0
      %235 = vmatprep.subr.bf16.mxu0 0
      %236 = vmatpush1.bf16.xpose.msra.mxu0 0
      %237 = vmatprep.subr.bf16.mxu0 0
      %238 = vmatpush1.bf16.xpose.msra.mxu0 0
      %239 = vmatprep.subr.bf16.mxu0 0
      %240 = vmatpush1.bf16.xpose.msra.mxu0 0
      %241 = vmatprep.subr.bf16.mxu0 0
      %242 = vmatpush1.bf16.xpose.msra.mxu0 0
      %243 = vmatprep.subr.bf16.mxu0 0
      %244 = vmatpush1.bf16.xpose.msra.mxu0 0
      %245 = vmatprep.subr.bf16.mxu0 0
      %246 = vmatpush1.bf16.xpose.msra.mxu0 0
      %247 = vmatprep.subr.bf16.mxu0 0
      %248 = vmatpush1.bf16.xpose.msra.mxu0 0
      %249 = vmatprep.subr.bf16.mxu0 0
      %250 = vmatpush1.bf16.xpose.msra.mxu0 0
      %251 = vmatprep.subr.bf16.mxu0 0
      %252 = vmatpush1.bf16.xpose.msra.mxu0 0
      %253 = vmatprep.subr.bf16.mxu0 0
      %254 = vmatpush1.bf16.xpose.msra.mxu0 0
      %255 = vmatprep.subr.bf16.mxu0 0
      %256 = vmatpush1.bf16.xpose.msra.mxu0 0
      %257 = vmatprep.subr.bf16.mxu0 0
      %258 = vmatpush1.bf16.xpose.msra.mxu0 0
      %259 = vmatprep.mubr.bf16.mxu0 0
      %260 = vmatmul.mubr.bf16.gmra.mrb[0].mxu0 %v222
      %v261 = vpop.f32.mrb[0].mxu0
      %v262 = vadd.f32 0.0, %v261
      %v263 = vpop.f32.mrb[0].mxu0
      %v264 = vpop.f32.mrb[0].mxu0
      %v265 = vpop.f32.mrb[0].mxu0
      %266 = vdwg.mxu0
      %v267 = vsel %vm214, %v262, -1e+09
      %v268 = vsel %vm220, %v267, -inf
      %269 = vmax.xlane.f32.xlu0 %v268
      %v270 = vpop.xlane.xlu0 %269
      %v271 = vsub.f32 %v267, %v270
      %v272 = vmul.f32 %v271, 1.442695
      %v273 = vpow.pop %v272
      %v274 = vsel %vm220, %v273, 0.0
      %275 = vadd.xlane.f32.xlu0 %v274
      %v276 = vpop.xlane.xlu0 %275
      %v277 = vrcp.pop %v276
      %v278 = vpack.c.bf16 %v273, %v273
      %279 = vrot.lane.b32.xlu0 %v216, 64
      %v280 = vpop.permute.xlu0 %279
      %v282 = vsel %vm220, %v278, 0
      %vm284 = vcmask 1043456
      %v286 = vsel %vm284, %v280, 0
      %288 = vmatprep.subr.bf16.mxu0 0
      %289 = vmatpush1.bf16.msra.mxu0 %v286
      %290 = vmatprep.subr.bf16.mxu0 0
      %291 = vmatpush1.bf16.msra.mxu0 0
      %292 = vmatprep.subr.bf16.mxu0 0
      %293 = vmatpush1.bf16.msra.mxu0 0
      %294 = vmatprep.subr.bf16.mxu0 0
      %295 = vmatpush1.bf16.msra.mxu0 0
      %296 = vmatprep.subr.bf16.mxu0 0
      %297 = vmatpush1.bf16.msra.mxu0 0
      %298 = vmatprep.subr.bf16.mxu0 0
      %299 = vmatpush1.bf16.msra.mxu0 0
      %300 = vmatprep.subr.bf16.mxu0 0
      %301 = vmatpush1.bf16.msra.mxu0 0
      %302 = vmatprep.subr.bf16.mxu0 0
      %303 = vmatpush1.bf16.msra.mxu0 0
      %304 = vmatprep.subr.bf16.mxu0 0
      %305 = vmatpush1.bf16.msra.mxu0 0
      %306 = vmatprep.subr.bf16.mxu0 0
      %307 = vmatpush1.bf16.msra.mxu0 0
      %308 = vmatprep.subr.bf16.mxu0 0
      %309 = vmatpush1.bf16.msra.mxu0 0
      %310 = vmatprep.subr.bf16.mxu0 0
      %311 = vmatpush1.bf16.msra.mxu0 0
      %312 = vmatprep.subr.bf16.mxu0 0
      %313 = vmatpush1.bf16.msra.mxu0 0
      %314 = vmatprep.subr.bf16.mxu0 0
      %315 = vmatpush1.bf16.msra.mxu0 0
      %316 = vmatprep.subr.bf16.mxu0 0
      %317 = vmatpush1.bf16.msra.mxu0 0
      %318 = vmatprep.subr.bf16.mxu0 0
      %319 = vmatpush1.bf16.msra.mxu0 0
      %320 = vmatprep.mubr.bf16.mxu0 0
      %321 = vmatmul.mubr.bf16.gmra.mrb[0].mxu0 %v282
      %v322 = vpop.f32.mrb[0].mxu0
      %v323 = vadd.f32 0.0, %v322
      %v324 = vpop.f32.mrb[0].mxu0
      %v325 = vpop.f32.mrb[0].mxu0
      %v326 = vpop.f32.mrb[0].mxu0
      %327 = vdwg.mxu0
      %v328 = vmul.f32 %v323, %v277
      %330 = vrot.lane.b32.xlu0 %v215, 120
      %v331 = vpop.permute.xlu0 %330
      %332 = vrot.lane.b32.xlu0 %v216, 88
      %v333 = vpop.permute.xlu0 %332
      %v335 = vsel %vm220, %v331, 0
      %v338 = vsel %vm220, %v333, 0
      %340 = vmatprep.subr.bf16.mxu0 0
      %341 = vmatpush1.bf16.xpose.msra.mxu0 %v338
      %342 = vmatprep.subr.bf16.mxu0 0
      %343 = vmatpush1.bf16.xpose.msra.mxu0 0
      %344 = vmatprep.subr.bf16.mxu0 0
      %345 = vmatpush1.bf16.xpose.msra.mxu0 0
      %346 = vmatprep.subr.bf16.mxu0 0
      %347 = vmatpush1.bf16.xpose.msra.mxu0 0
      %348 = vmatprep.subr.bf16.mxu0 0
      %349 = vmatpush1.bf16.xpose.msra.mxu0 0
      %350 = vmatprep.subr.bf16.mxu0 0
      %351 = vmatpush1.bf16.xpose.msra.mxu0 0
      %352 = vmatprep.subr.bf16.mxu0 0
      %353 = vmatpush1.bf16.xpose.msra.mxu0 0
      %354 = vmatprep.subr.bf16.mxu0 0
      %355 = vmatpush1.bf16.xpose.msra.mxu0 0
      %356 = vmatprep.subr.bf16.mxu0 0
      %357 = vmatpush1.bf16.xpose.msra.mxu0 0
      %358 = vmatprep.subr.bf16.mxu0 0
      %359 = vmatpush1.bf16.xpose.msra.mxu0 0
      %360 = vmatprep.subr.bf16.mxu0 0
      %361 = vmatpush1.bf16.xpose.msra.mxu0 0
      %362 = vmatprep.subr.bf16.mxu0 0
      %363 = vmatpush1.bf16.xpose.msra.mxu0 0
      %364 = vmatprep.subr.bf16.mxu0 0
      %365 = vmatpush1.bf16.xpose.msra.mxu0 0
      %366 = vmatprep.subr.bf16.mxu0 0
      %367 = vmatpush1.bf16.xpose.msra.mxu0 0
      %368 = vmatprep.subr.bf16.mxu0 0
      %369 = vmatpush1.bf16.xpose.msra.mxu0 0
      %370 = vmatprep.subr.bf16.mxu0 0
      %371 = vmatpush1.bf16.xpose.msra.mxu0 0
      %372 = vmatprep.mubr.bf16.mxu0 0
      %373 = vmatmul.mubr.bf16.gmra.mrb[0].mxu0 %v335
      %v374 = vpop.f32.mrb[0].mxu0
      %v375 = vadd.f32 0.0, %v374
      %v376 = vpop.f32.mrb[0].mxu0
      %v377 = vpop.f32.mrb[0].mxu0
      %v378 = vpop.f32.mrb[0].mxu0
      %379 = vdwg.mxu0
      %v380 = vsel %vm214, %v375, -1e+09
      %v381 = vsel %vm220, %v380, -inf
      %382 = vmax.xlane.f32.xlu0 %v381
      %v383 = vpop.xlane.xlu0 %382
      %v384 = vsub.f32 %v380, %v383
      %v385 = vmul.f32 %v384, 1.442695
      %v386 = vpow.pop %v385
      %v387 = vsel %vm220, %v386, 0.0
      %388 = vadd.xlane.f32.xlu0 %v387
      %v389 = vpop.xlane.xlu0 %388
      %v390 = vrcp.pop %v389
      %v391 = vpack.c.bf16 %v386, %v386
      %392 = vrot.lane.b32.xlu0 %v216, 56
      %v393 = vpop.permute.xlu0 %392
      %v395 = vsel %vm220, %v391, 0
      %v398 = vsel %vm284, %v393, 0
      %400 = vmatprep.subr.bf16.mxu0 0
      %401 = vmatpush1.bf16.msra.mxu0 %v398
      %402 = vmatprep.subr.bf16.mxu0 0
      %403 = vmatpush1.bf16.msra.mxu0 0
      %404 = vmatprep.subr.bf16.mxu0 0
      %405 = vmatpush1.bf16.msra.mxu0 0
      %406 = vmatprep.subr.bf16.mxu0 0
      %407 = vmatpush1.bf16.msra.mxu0 0
      %408 = vmatprep.subr.bf16.mxu0 0
      %409 = vmatpush1.bf16.msra.mxu0 0
      %410 = vmatprep.subr.bf16.mxu0 0
      %411 = vmatpush1.bf16.msra.mxu0 0
      %412 = vmatprep.subr.bf16.mxu0 0
      %413 = vmatpush1.bf16.msra.mxu0 0
      %414 = vmatprep.subr.bf16.mxu0 0
      %415 = vmatpush1.bf16.msra.mxu0 0
      %416 = vmatprep.subr.bf16.mxu0 0
      %417 = vmatpush1.bf16.msra.mxu0 0
      %418 = vmatprep.subr.bf16.mxu0 0
      %419 = vmatpush1.bf16.msra.mxu0 0
      %420 = vmatprep.subr.bf16.mxu0 0
      %421 = vmatpush1.bf16.msra.mxu0 0
      %422 = vmatprep.subr.bf16.mxu0 0
      %423 = vmatpush1.bf16.msra.mxu0 0
      %424 = vmatprep.subr.bf16.mxu0 0
      %425 = vmatpush1.bf16.msra.mxu0 0
      %426 = vmatprep.subr.bf16.mxu0 0
      %427 = vmatpush1.bf16.msra.mxu0 0
      %428 = vmatprep.subr.bf16.mxu0 0
      %429 = vmatpush1.bf16.msra.mxu0 0
      %430 = vmatprep.subr.bf16.mxu0 0
      %431 = vmatpush1.bf16.msra.mxu0 0
      %432 = vmatprep.mubr.bf16.mxu0 0
      %433 = vmatmul.mubr.bf16.gmra.mrb[0].mxu0 %v395
      %v434 = vpop.f32.mrb[0].mxu0
      %v435 = vadd.f32 0.0, %v434
      %v436 = vpop.f32.mrb[0].mxu0
      %v437 = vpop.f32.mrb[0].mxu0
      %v438 = vpop.f32.mrb[0].mxu0
      %439 = vdwg.mxu0
      %v440 = vmul.f32 %v435, %v390
      %441 = vrot.lane.b32.xlu0 %v215, 112
      %v442 = vpop.permute.xlu0 %441
      %443 = vrot.lane.b32.xlu0 %v216, 80
      %v444 = vpop.permute.xlu0 %443
      %v446 = vsel %vm220, %v442, 0
      %v449 = vsel %vm220, %v444, 0
      %451 = vmatprep.subr.bf16.mxu0 0
      %452 = vmatpush1.bf16.xpose.msra.mxu0 %v449
      %453 = vmatprep.subr.bf16.mxu0 0
      %454 = vmatpush1.bf16.xpose.msra.mxu0 0
      %455 = vmatprep.subr.bf16.mxu0 0
      %456 = vmatpush1.bf16.xpose.msra.mxu0 0
      %457 = vmatprep.subr.bf16.mxu0 0
      %458 = vmatpush1.bf16.xpose.msra.mxu0 0
      %459 = vmatprep.subr.bf16.mxu0 0
      %460 = vmatpush1.bf16.xpose.msra.mxu0 0
      %461 = vmatprep.subr.bf16.mxu0 0
      %462 = vmatpush1.bf16.xpose.msra.mxu0 0
      %463 = vmatprep.subr.bf16.mxu0 0
      %464 = vmatpush1.bf16.xpose.msra.mxu0 0
      %465 = vmatprep.subr.bf16.mxu0 0
      %466 = vmatpush1.bf16.xpose.msra.mxu0 0
      %467 = vmatprep.subr.bf16.mxu0 0
      %468 = vmatpush1.bf16.xpose.msra.mxu0 0
      %469 = vmatprep.subr.bf16.mxu0 0
      %470 = vmatpush1.bf16.xpose.msra.mxu0 0
      %471 = vmatprep.subr.bf16.mxu0 0
      %472 = vmatpush1.bf16.xpose.msra.mxu0 0
      %473 = vmatprep.subr.bf16.mxu0 0
      %474 = vmatpush1.bf16.xpose.msra.mxu0 0
      %475 = vmatprep.subr.bf16.mxu0 0
      %476 = vmatpush1.bf16.xpose.msra.mxu0 0
      %477 = vmatprep.subr.bf16.mxu0 0
      %478 = vmatpush1.bf16.xpose.msra.mxu0 0
      %479 = vmatprep.subr.bf16.mxu0 0
      %480 = vmatpush1.bf16.xpose.msra.mxu0 0
      %481 = vmatprep.subr.bf16.mxu0 0
      %482 = vmatpush1.bf16.xpose.msra.mxu0 0
      %483 = vmatprep.mubr.bf16.mxu0 0
      %484 = vmatmul.mubr.bf16.gmra.mrb[0].mxu0 %v446
      %v485 = vpop.f32.mrb[0].mxu0
      %v486 = vadd.f32 0.0, %v485
      %v487 = vpop.f32.mrb[0].mxu0
      %v488 = vpop.f32.mrb[0].mxu0
      %v489 = vpop.f32.mrb[0].mxu0
      %490 = vdwg.mxu0
      %v491 = vsel %vm214, %v486, -1e+09
      %v492 = vsel %vm220, %v491, -inf
      %493 = vmax.xlane.f32.xlu0 %v492
      %v494 = vpop.xlane.xlu0 %493
      %v495 = vsub.f32 %v491, %v494
      %v496 = vmul.f32 %v495, 1.442695
      %v497 = vpow.pop %v496
      %v498 = vsel %vm220, %v497, 0.0
      %499 = vadd.xlane.f32.xlu0 %v498
      %v500 = vpop.xlane.xlu0 %499
      %v501 = vrcp.pop %v500
      %v502 = vpack.c.bf16 %v497, %v497
      %503 = vrot.lane.b32.xlu0 %v216, 48
      %v504 = vpop.permute.xlu0 %503
      %v506 = vsel %vm220, %v502, 0
      %v509 = vsel %vm284, %v504, 0
      %511 = vmatprep.subr.bf16.mxu0 0
      %512 = vmatpush1.bf16.msra.mxu0 %v509
      %513 = vmatprep.subr.bf16.mxu0 0
      %514 = vmatpush1.bf16.msra.mxu0 0
      %515 = vmatprep.subr.bf16.mxu0 0
      %516 = vmatpush1.bf16.msra.mxu0 0
      %517 = vmatprep.subr.bf16.mxu0 0
      %518 = vmatpush1.bf16.msra.mxu0 0
      %519 = vmatprep.subr.bf16.mxu0 0
      %520 = vmatpush1.bf16.msra.mxu0 0
      %521 = vmatprep.subr.bf16.mxu0 0
      %522 = vmatpush1.bf16.msra.mxu0 0
      %523 = vmatprep.subr.bf16.mxu0 0
      %524 = vmatpush1.bf16.msra.mxu0 0
      %525 = vmatprep.subr.bf16.mxu0 0
      %526 = vmatpush1.bf16.msra.mxu0 0
      %527 = vmatprep.subr.bf16.mxu0 0
      %528 = vmatpush1.bf16.msra.mxu0 0
      %529 = vmatprep.subr.bf16.mxu0 0
      %530 = vmatpush1.bf16.msra.mxu0 0
      %531 = vmatprep.subr.bf16.mxu0 0
      %532 = vmatpush1.bf16.msra.mxu0 0
      %533 = vmatprep.subr.bf16.mxu0 0
      %534 = vmatpush1.bf16.msra.mxu0 0
      %535 = vmatprep.subr.bf16.mxu0 0
      %536 = vmatpush1.bf16.msra.mxu0 0
      %537 = vmatprep.subr.bf16.mxu0 0
      %538 = vmatpush1.bf16.msra.mxu0 0
      %539 = vmatprep.subr.bf16.mxu0 0
      %540 = vmatpush1.bf16.msra.mxu0 0
      %541 = vmatprep.subr.bf16.mxu0 0
      %542 = vmatpush1.bf16.msra.mxu0 0
      %543 = vmatprep.mubr.bf16.mxu0 0
      %544 = vmatmul.mubr.bf16.gmra.mrb[0].mxu0 %v506
      %v545 = vpop.f32.mrb[0].mxu0
      %v546 = vadd.f32 0.0, %v545
      %v547 = vpop.f32.mrb[0].mxu0
      %v548 = vpop.f32.mrb[0].mxu0
      %v549 = vpop.f32.mrb[0].mxu0
      %550 = vdwg.mxu0
      %v551 = vmul.f32 %v546, %v501
      %552 = vrot.lane.b32.xlu0 %v215, 104
      %v553 = vpop.permute.xlu0 %552
      %554 = vrot.lane.b32.xlu0 %v216, 72
      %v555 = vpop.permute.xlu0 %554
      %v557 = vsel %vm220, %v553, 0
      %v560 = vsel %vm220, %v555, 0
      %562 = vmatprep.subr.bf16.mxu0 0
      %563 = vmatpush1.bf16.xpose.msra.mxu0 %v560
      %564 = vmatprep.subr.bf16.mxu0 0
      %565 = vmatpush1.bf16.xpose.msra.mxu0 0
      %566 = vmatprep.subr.bf16.mxu0 0
      %567 = vmatpush1.bf16.xpose.msra.mxu0 0
      %568 = vmatprep.subr.bf16.mxu0 0
      %569 = vmatpush1.bf16.xpose.msra.mxu0 0
      %570 = vmatprep.subr.bf16.mxu0 0
      %571 = vmatpush1.bf16.xpose.msra.mxu0 0
      %572 = vmatprep.subr.bf16.mxu0 0
      %573 = vmatpush1.bf16.xpose.msra.mxu0 0
      %574 = vmatprep.subr.bf16.mxu0 0
      %575 = vmatpush1.bf16.xpose.msra.mxu0 0
      %576 = vmatprep.subr.bf16.mxu0 0
      %577 = vmatpush1.bf16.xpose.msra.mxu0 0
      %578 = vmatprep.subr.bf16.mxu0 0
      %579 = vmatpush1.bf16.xpose.msra.mxu0 0
      %580 = vmatprep.subr.bf16.mxu0 0
      %581 = vmatpush1.bf16.xpose.msra.mxu0 0
      %582 = vmatprep.subr.bf16.mxu0 0
      %583 = vmatpush1.bf16.xpose.msra.mxu0 0
      %584 = vmatprep.subr.bf16.mxu0 0
      %585 = vmatpush1.bf16.xpose.msra.mxu0 0
      %586 = vmatprep.subr.bf16.mxu0 0
      %587 = vmatpush1.bf16.xpose.msra.mxu0 0
      %588 = vmatprep.subr.bf16.mxu0 0
      %589 = vmatpush1.bf16.xpose.msra.mxu0 0
      %590 = vmatprep.subr.bf16.mxu0 0
      %591 = vmatpush1.bf16.xpose.msra.mxu0 0
      %592 = vmatprep.subr.bf16.mxu0 0
      %593 = vmatpush1.bf16.xpose.msra.mxu0 0
      %594 = vmatprep.mubr.bf16.mxu0 0
      %595 = vmatmul.mubr.bf16.gmra.mrb[0].mxu0 %v557
      %v596 = vpop.f32.mrb[0].mxu0
      %v597 = vadd.f32 0.0, %v596
      %v598 = vpop.f32.mrb[0].mxu0
      %v599 = vpop.f32.mrb[0].mxu0
      %v600 = vpop.f32.mrb[0].mxu0
      %601 = vdwg.mxu0
      %v602 = vsel %vm214, %v597, -1e+09
      %v603 = vsel %vm220, %v602, -inf
      %604 = vmax.xlane.f32.xlu0 %v603
      %v605 = vpop.xlane.xlu0 %604
      %v606 = vsub.f32 %v602, %v605
      %v607 = vmul.f32 %v606, 1.442695
      %v608 = vpow.pop %v607
      %v609 = vsel %vm220, %v608, 0.0
      %610 = vadd.xlane.f32.xlu0 %v609
      %v611 = vpop.xlane.xlu0 %610
      %v612 = vrcp.pop %v611
      %v613 = vpack.c.bf16 %v608, %v608
      %614 = vrot.lane.b32.xlu0 %v216, 40
      %v615 = vpop.permute.xlu0 %614
      %v617 = vsel %vm220, %v613, 0
      %v620 = vsel %vm284, %v615, 0
      %622 = vmatprep.subr.bf16.mxu0 0
      %623 = vmatpush1.bf16.msra.mxu0 %v620
      %624 = vmatprep.subr.bf16.mxu0 0
      %625 = vmatpush1.bf16.msra.mxu0 0
      %626 = vmatprep.subr.bf16.mxu0 0
      %627 = vmatpush1.bf16.msra.mxu0 0
      %628 = vmatprep.subr.bf16.mxu0 0
      %629 = vmatpush1.bf16.msra.mxu0 0
      %630 = vmatprep.subr.bf16.mxu0 0
      %631 = vmatpush1.bf16.msra.mxu0 0
      %632 = vmatprep.subr.bf16.mxu0 0
      %633 = vmatpush1.bf16.msra.mxu0 0
      %634 = vmatprep.subr.bf16.mxu0 0
      %635 = vmatpush1.bf16.msra.mxu0 0
      %636 = vmatprep.subr.bf16.mxu0 0
      %637 = vmatpush1.bf16.msra.mxu0 0
      %638 = vmatprep.subr.bf16.mxu0 0
      %639 = vmatpush1.bf16.msra.mxu0 0
      %640 = vmatprep.subr.bf16.mxu0 0
      %641 = vmatpush1.bf16.msra.mxu0 0
      %642 = vmatprep.subr.bf16.mxu0 0
      %643 = vmatpush1.bf16.msra.mxu0 0
      %644 = vmatprep.subr.bf16.mxu0 0
      %645 = vmatpush1.bf16.msra.mxu0 0
      %646 = vmatprep.subr.bf16.mxu0 0
      %647 = vmatpush1.bf16.msra.mxu0 0
      %648 = vmatprep.subr.bf16.mxu0 0
      %649 = vmatpush1.bf16.msra.mxu0 0
      %650 = vmatprep.subr.bf16.mxu0 0
      %651 = vmatpush1.bf16.msra.mxu0 0
      %652 = vmatprep.subr.bf16.mxu0 0
      %653 = vmatpush1.bf16.msra.mxu0 0
      %654 = vmatprep.mubr.bf16.mxu0 0
      %655 = vmatmul.mubr.bf16.gmra.mrb[0].mxu0 %v617
      %v656 = vpop.f32.mrb[0].mxu0
      %v657 = vadd.f32 0.0, %v656
      %v658 = vpop.f32.mrb[0].mxu0
      %v659 = vpop.f32.mrb[0].mxu0
      %v660 = vpop.f32.mrb[0].mxu0
      %661 = vdwg.mxu0
      %v662 = vmul.f32 %v657, %v612
      %664 = vrot.lane.b32.xlu0 %v440, 8
      %v665 = vpop.permute.xlu0 %664
      %668 = vrot.lane.b32.xlu0 %v551, 16
      %v669 = vpop.permute.xlu0 %668
      %672 = vrot.lane.b32.xlu0 %v662, 24
      %v673 = vpop.permute.xlu0 %672
      %v675 = vsel %vm220, %v328, %v665
      %vm676 = vcmask 130048
      %v677 = vsel %vm676, %v675, %v669
      %vm678 = vcmask 195584
      %v679 = vsel %vm678, %v677, %v673
      %vm680 = vcmask 261120
      %681 = vst.msk [vmem:[%s196] sm:$0xff] %vm680, %v679
      %p682 = scmp.lt.s32.totalorder %s14, 1
      %s683 = scalar_select %p682, %s14, 1
      %s684 = smul.addr %s683, 8
      %s685 = scalar_lea.vmem %s3, %s684
      // Predicated region
      $region33: #{vanilla_transformer_forward.30} parent=31 // pred_check
        %p686 = pneg %p110
      $region34: #{vanilla_transformer_forward.30} parent=31 // pred_check_branch
        %688 = sbr.rel (%p686) target = $region36
      $region35: #{vanilla_transformer_forward.30} parent=31 // pred_region
        _
      $region36: #{vanilla_transformer_forward.30} parent=31 // pred_fallthru
        _
    $region32: #{vanilla_transformer_forward.30} parent=5 // pred_fallthru
      _
    %p689 = scmp.le.s32.totalorder 2, %s9
    // Predicated region
    $region37: #{vanilla_transformer_forward.30} parent=5 // pred_check
      %p690 = pneg %p689
    $region38: #{vanilla_transformer_forward.30} parent=5 // pred_check_branch
      %692 = sbr.rel (%p690) target = $region40
    $region39: #{vanilla_transformer_forward.30} parent=5 // pred_region
      %s693 = ssub.s32 %s9, 2
      // Predicated region
      $region41: #{vanilla_transformer_forward.30} parent=39 // pred_check
        %p694 = pneg %p116
      $region42: #{vanilla_transformer_forward.30} parent=39 // pred_check_branch
        %696 = sbr.rel (%p694) target = $region44
      $region43: #{vanilla_transformer_forward.30} parent=39 // pred_region
        %p697 = scmp.lt.s32.totalorder %s15, 1
        %s698 = scalar_select %p697, %s15, 1
        %s699 = smul.addr %s698, 8
        %s700 = scalar_lea.vmem %s3, %s699
      $region44: #{vanilla_transformer_forward.30} parent=39 // pred_fallthru
        _
    $region40: #{vanilla_transformer_forward.30} parent=5 // pred_fallthru
      _
  $region6: #{vanilla_transformer_forward.30} parent=0 // loop_footer
    %s13 = sadd.s32 1, %s9
  $region7: #{vanilla_transformer_forward.30} parent=0 // loop_footer_branch
    %8 = sbr.rel target = $region3
  $region8: #{vanilla_transformer_forward.30} parent=0 // loop_exit
    _

// kernel: vanilla_transformer_forward.32
$region0: #{vanilla_transformer_forward.32}
  #allocation0 [shape = 'u32[]', space=smem, size = 0x4, offset = 0x4, fixed_abs, tag = 'smem constant byte address 0x4 - core index']
  #allocation1 [shape = 'u32[144,128]{1,0:T(1,128)}', space=vmem, size = 0x12000, scoped, tag = 'internal scratch']
  #allocation2 [shape = 'f32[16,128]{1,0:T(8,128)}', space=vmem, size = 0x2000, scoped, tag = 'scratch operand']
  %s0 = inlined_call_operand.vmem [shape: f32[16,128], index: 0, kind: input, shape index: {}]
  %s1 = inlined_call_operand.vmem [shape: bf16[128,128], index: 1, kind: input, shape index: {}]
  %s2 = inlined_call_operand.vmem [shape: f32[1,128], index: 2, kind: input, shape index: {}]
  %s3 = inlined_call_operand.vmem [shape: f32[16,128], index: 3, kind: output, shape index: {}]
  %s4 = sld [smem:[#allocation0]]
  $region30: #{vanilla_transformer_forward.32} parent=0
    _
  %s6 = ssub.s32 1, %s4
  %s7 = scalar_select 0, %s6, %s4
  // Predicated region
  $region2: #{vanilla_transformer_forward.32} parent=0 // pred_check
    _
  $region3: #{vanilla_transformer_forward.32} parent=0 // pred_check_branch
    %9 = sbr.rel (0) target = $region5
  $region4: #{vanilla_transformer_forward.32} parent=0 // pred_region
    _
  $region5: #{vanilla_transformer_forward.32} parent=0 // pred_fallthru
    _
  // Predicated region
  $region6: #{vanilla_transformer_forward.32} parent=0 // pred_check
    _
  $region7: #{vanilla_transformer_forward.32} parent=0 // pred_check_branch
    %11 = sbr.rel (0) target = $region9
  $region8: #{vanilla_transformer_forward.32} parent=0 // pred_region
    _
  $region9: #{vanilla_transformer_forward.32} parent=0 // pred_fallthru
    _
  // Predicated region
  $region10: #{vanilla_transformer_forward.32} parent=0 // pred_check
    _
  $region11: #{vanilla_transformer_forward.32} parent=0 // pred_check_branch
    %13 = sbr.rel (0) target = $region13
  $region12: #{vanilla_transformer_forward.32} parent=0 // pred_region
    _
  $region13: #{vanilla_transformer_forward.32} parent=0 // pred_fallthru
    _
  %p15 = scmp.eq.s32.totalorder 0, 0
  // Predicated region
  $region14: #{vanilla_transformer_forward.32} parent=0 // pred_check
    %p16 = pneg %p15
  $region15: #{vanilla_transformer_forward.32} parent=0 // pred_check_branch
    %18 = sbr.rel (%p16) target = $region17
  $region16: #{vanilla_transformer_forward.32} parent=0 // pred_region
    %19 = vst [vmem:[#allocation2] sm:$0xff] 0.0
    %20 = vst [vmem:[#allocation2 + $0x8] sm:$0xff] 0.0
  $region17: #{vanilla_transformer_forward.32} parent=0 // pred_fallthru
    _
  %v21 = vld [vmem:[#allocation2] sm:$0xff]
  %v22 = vld [vmem:[#allocation2 + $0x8] sm:$0xff]
  %v23 = vld [vmem:[%s0] sm:$0xff]
  %v24 = vld [vmem:[%s0 + $0x8] sm:$0xff]
  %v25 = vpack.c.bf16 %v24, %v23
  %v26 = vld [vmem:[%s1] sm:$0xf]
  %v27 = vld [vmem:[%s1 + $0x4] sm:$0xf]
  %v28 = vld [vmem:[%s1 + $0x8] sm:$0xf]
  %v29 = vld [vmem:[%s1 + $0xc] sm:$0xf]
  %v30 = vld [vmem:[%s1 + $0x10] sm:$0xf]
  %v31 = vld [vmem:[%s1 + $0x14] sm:$0xf]
  %v32 = vld [vmem:[%s1 + $0x18] sm:$0xf]
  %v33 = vld [vmem:[%s1 + $0x1c] sm:$0xf]
  %v34 = vld [vmem:[%s1 + $0x20] sm:$0xf]
  %v35 = vld [vmem:[%s1 + $0x24] sm:$0xf]
  %v36 = vld [vmem:[%s1 + $0x28] sm:$0xf]
  %v37 = vld [vmem:[%s1 + $0x2c] sm:$0xf]
  %v38 = vld [vmem:[%s1 + $0x30] sm:$0xf]
  %v39 = vld [vmem:[%s1 + $0x34] sm:$0xf]
  %v40 = vld [vmem:[%s1 + $0x38] sm:$0xf]
  %v41 = vld [vmem:[%s1 + $0x3c] sm:$0xf]
  %v58 = vunpack.c.l.b16 %v26
  %v59 = vunpack.c.l.b16 %v27
  %v60 = vunpack.c.l.b16 %v28
  %v61 = vunpack.c.l.b16 %v29
  %v62 = vunpack.c.l.b16 %v30
  %v63 = vunpack.c.l.b16 %v31
  %v64 = vunpack.c.l.b16 %v32
  %v65 = vunpack.c.l.b16 %v33
  %v66 = vunpack.c.l.b16 %v34
  %v67 = vunpack.c.l.b16 %v35
  %v68 = vunpack.c.l.b16 %v36
  %v69 = vunpack.c.l.b16 %v37
  %v70 = vunpack.c.l.b16 %v38
  %v71 = vunpack.c.l.b16 %v39
  %v72 = vunpack.c.l.b16 %v40
  %v73 = vunpack.c.l.b16 %v41
  %v74 = vpack.c.b16 %v59, %v58
  %v75 = vpack.c.b16 %v61, %v60
  %v76 = vpack.c.b16 %v63, %v62
  %v77 = vpack.c.b16 %v65, %v64
  %v78 = vpack.c.b16 %v67, %v66
  %v79 = vpack.c.b16 %v69, %v68
  %v80 = vpack.c.b16 %v71, %v70
  %v81 = vpack.c.b16 %v73, %v72
  %90 = vmatprep.subr.bf16.mxu0 0
  %91 = vmatpush1.bf16.msra.mxu0 %v74
  %92 = vmatprep.subr.bf16.mxu0 0
  %93 = vmatpush1.bf16.msra.mxu0 %v75
  %94 = vmatprep.subr.bf16.mxu0 0
  %95 = vmatpush1.bf16.msra.mxu0 %v76
  %96 = vmatprep.subr.bf16.mxu0 0
  %97 = vmatpush1.bf16.msra.mxu0 %v77
  %98 = vmatprep.subr.bf16.mxu0 0
  %99 = vmatpush1.bf16.msra.mxu0 %v78
  %100 = vmatprep.subr.bf16.mxu0 0
  %101 = vmatpush1.bf16.msra.mxu0 %v79
  %102 = vmatprep.subr.bf16.mxu0 0
  %103 = vmatpush1.bf16.msra.mxu0 %v80
  %104 = vmatprep.subr.bf16.mxu0 0
  %105 = vmatpush1.bf16.msra.mxu0 %v81
  %106 = vmatprep.subr.bf16.mxu0 0
  %107 = vmatpush1.bf16.msra.mxu0 0
  %108 = vmatprep.subr.bf16.mxu0 0
  %109 = vmatpush1.bf16.msra.mxu0 0
  %110 = vmatprep.subr.bf16.mxu0 0
  %111 = vmatpush1.bf16.msra.mxu0 0
  %112 = vmatprep.subr.bf16.mxu0 0
  %113 = vmatpush1.bf16.msra.mxu0 0
  %114 = vmatprep.subr.bf16.mxu0 0
  %115 = vmatpush1.bf16.msra.mxu0 0
  %116 = vmatprep.subr.bf16.mxu0 0
  %117 = vmatpush1.bf16.msra.mxu0 0
  %118 = vmatprep.subr.bf16.mxu0 0
  %119 = vmatpush1.bf16.msra.mxu0 0
  %120 = vmatprep.subr.bf16.mxu0 0
  %121 = vmatpush1.bf16.msra.mxu0 0
  %122 = vmatprep.mubr.bf16.mxu0 0
  %123 = vmatmul.mubr.bf16.gmra.mrb[0].mxu0 %v25
  %v124 = vpop.f32.mrb[0].mxu0
  %v125 = vadd.f32 0.0, %v124
  %v126 = vpop.f32.mrb[0].mxu0
  %v127 = vpop.f32.mrb[0].mxu0
  %v128 = vadd.f32 0.0, %v127
  %v129 = vpop.f32.mrb[0].mxu0
  %130 = vdwg.mxu0
  %v131 = vadd.f32 %v21, %v125
  %v132 = vadd.f32 %v22, %v128
  %133 = vst [vmem:[#allocation2] sm:$0xff] %v131
  %134 = vst [vmem:[#allocation2 + $0x8] sm:$0xff] %v132
  // Predicated region
  $region18: #{vanilla_transformer_forward.32} parent=0 // pred_check
    %p135 = pneg %p15
  $region19: #{vanilla_transformer_forward.32} parent=0 // pred_check_branch
    %137 = sbr.rel (%p135) target = $region21
  $region20: #{vanilla_transformer_forward.32} parent=0 // pred_region
    %v138 = vld [vmem:[#allocation2] sm:$0xff]
    %v139 = vld [vmem:[#allocation2 + $0x8] sm:$0xff]
    %v140 = vld [vmem:[%s2] sm:$0x1]
    %v142 = vlaneseq
    %v143 = vshrl.u32 %v142, 7
    %v144 = vsub.s32 0, %v143
    %v145 = vrot.slane %v140, %v144
    %v147 = vadd.f32 %v138, %v145
    %v148 = vadd.f32 %v139, %v145
    %v149 = vmax.f32 %v147, 0.0
    %v150 = vmax.f32 %v148, 0.0
    %151 = vst [vmem:[%s3] sm:$0xff] %v149
    %152 = vst [vmem:[%s3 + $0x8] sm:$0xff] %v150
  $region21: #{vanilla_transformer_forward.32} parent=0 // pred_fallthru
    _
  // Predicated region
  $region22: #{vanilla_transformer_forward.32} parent=0 // pred_check
    _
  $region23: #{vanilla_transformer_forward.32} parent=0 // pred_check_branch
    %154 = sbr.rel (0) target = $region25
  $region24: #{vanilla_transformer_forward.32} parent=0 // pred_region
    _
  $region25: #{vanilla_transformer_forward.32} parent=0 // pred_fallthru
    _
  // Predicated region
  $region26: #{vanilla_transformer_forward.32} parent=0 // pred_check
    _
  $region27: #{vanilla_transformer_forward.32} parent=0 // pred_check_branch
    %156 = sbr.rel (0) target = $region29
  $region28: #{vanilla_transformer_forward.32} parent=0 // pred_region
    _
  $region29: #{vanilla_transformer_forward.32} parent=0 // pred_fallthru
    _

// kernel: vanilla_transformer_forward.40
$region0: #{vanilla_transformer_forward.40}
  #allocation0 [shape = 'u32[]', space=smem, size = 0x4, offset = 0x4, fixed_abs, tag = 'smem constant byte address 0x4 - core index']
  #allocation1 [shape = 'u32[144,128]{1,0:T(1,128)}', space=vmem, size = 0x12000, scoped, tag = 'internal scratch']
  %s0 = inlined_call_operand.vmem [shape: f32[2,8,96], index: 0, kind: input, shape index: {}]
  %s1 = inlined_call_operand.vmem [shape: f32[2,8,1], index: 1, kind: input, shape index: {}]
  %s2 = inlined_call_operand.vmem [shape: f32[2,1,8], index: 2, kind: input, shape index: {}]
  %s3 = inlined_call_operand.vmem [shape: f32[2,8,32], index: 3, kind: output, shape index: {}]
  %s4 = sld [smem:[#allocation0]]
  $region45: #{vanilla_transformer_forward.40} parent=0
    _
  %s6 = ssub.s32 1, %s4
  %s7 = scalar_select 0, %s6, %s4
  loop: start=0, step=1, limit=4
  $region2: #{vanilla_transformer_forward.40} parent=0 // loop_pre_header
    _
  $region3: #{vanilla_transformer_forward.40} parent=0 // loop_header
    %s9 = sphi 0, %s13
    %p10 = scmp.ge.s32.totalorder %s9, 4
    %s19 = sphi 0, %s21
    %s22 = sphi 0, %s19
    %s23 = sphi 0, %s22
    %s39 = sphi 0, %s23
    %s45 = sphi 0, %s47
    %s48 = sphi 0, %s45
    %s49 = sphi 0, %s48
    %s65 = sphi 0, %s49
    %s71 = sphi 0, %s73
    %s74 = sphi 0, %s71
    %s75 = sphi 0, %s74
    %s91 = sphi 0, %s75
    %s97 = sphi 0, %s99
    %s100 = sphi 0, %s97
    %s101 = sphi 0, %s100
    %s117 = sphi 0, %s101
  $region4: #{vanilla_transformer_forward.40} parent=0 // loop_header_branch
    %12 = sbr.rel (%p10) target = $region8
  $region5: #{vanilla_transformer_forward.40} parent=0 // loop_body
    %s14 = ssub.s32 %s9, 1
    %s15 = ssub.s32 %s9, 2
    %s16 = sadd.s32 %s9, 1
    %s17 = ssub.s32 %s9, %s16
    %p18 = scmp.eq.s32.totalorder %s17, 0
    %s20 = sadd.s32 %s19, 1
    %s21 = scalar_select %p18, %s19, %s20
    %p24 = pneg %p18
    %p25 = scmp.eq.s32.totalorder %s9, 1
    %p26 = por %p24, %p25
    %p27 = scmp.ne.s32.totalorder %s19, %s22
    %p28 = scmp.eq.s32.totalorder %s9, 0
    %p29 = por %p27, %p28
    %p30 = scmp.ne.s32.totalorder %s19, %s22
    %p31 = scmp.eq.s32.totalorder %s14, 1
    %p32 = por %p30, %p31
    %p33 = scmp.ne.s32.totalorder %s22, %s23
    %p34 = scmp.eq.s32.totalorder %s14, 0
    %p35 = por %p33, %p34
    %p36 = scmp.ne.s32.totalorder %s22, %s23
    %p37 = scmp.eq.s32.totalorder %s15, 1
    %p38 = por %p36, %p37
    %p40 = scmp.ne.s32.totalorder %s23, %s39
    %p41 = scmp.eq.s32.totalorder %s15, 0
    %p42 = por %p40, %p41
    %s43 = ssub.s32 %s9, %s16
    %p44 = scmp.eq.s32.totalorder %s43, 0
    %s46 = sadd.s32 %s45, 1
    %s47 = scalar_select %p44, %s45, %s46
    %p50 = pneg %p44
    %p51 = scmp.eq.s32.totalorder %s9, 1
    %p52 = por %p50, %p51
    %p53 = scmp.ne.s32.totalorder %s45, %s48
    %p54 = scmp.eq.s32.totalorder %s9, 0
    %p55 = por %p53, %p54
    %p56 = scmp.ne.s32.totalorder %s45, %s48
    %p57 = scmp.eq.s32.totalorder %s14, 1
    %p58 = por %p56, %p57
    %p59 = scmp.ne.s32.totalorder %s48, %s49
    %p60 = scmp.eq.s32.totalorder %s14, 0
    %p61 = por %p59, %p60
    %p62 = scmp.ne.s32.totalorder %s48, %s49
    %p63 = scmp.eq.s32.totalorder %s15, 1
    %p64 = por %p62, %p63
    %p66 = scmp.ne.s32.totalorder %s49, %s65
    %p67 = scmp.eq.s32.totalorder %s15, 0
    %p68 = por %p66, %p67
    %s69 = ssub.s32 %s9, %s16
    %p70 = scmp.eq.s32.totalorder %s69, 0
    %s72 = sadd.s32 %s71, 1
    %s73 = scalar_select %p70, %s71, %s72
    %p76 = pneg %p70
    %p77 = scmp.eq.s32.totalorder %s9, 1
    %p78 = por %p76, %p77
    %p79 = scmp.ne.s32.totalorder %s71, %s74
    %p80 = scmp.eq.s32.totalorder %s9, 0
    %p81 = por %p79, %p80
    %p82 = scmp.ne.s32.totalorder %s71, %s74
    %p83 = scmp.eq.s32.totalorder %s14, 1
    %p84 = por %p82, %p83
    %p85 = scmp.ne.s32.totalorder %s74, %s75
    %p86 = scmp.eq.s32.totalorder %s14, 0
    %p87 = por %p85, %p86
    %p88 = scmp.ne.s32.totalorder %s74, %s75
    %p89 = scmp.eq.s32.totalorder %s15, 1
    %p90 = por %p88, %p89
    %p92 = scmp.ne.s32.totalorder %s75, %s91
    %p93 = scmp.eq.s32.totalorder %s15, 0
    %p94 = por %p92, %p93
    %s95 = ssub.s32 %s9, %s16
    %p96 = scmp.eq.s32.totalorder %s95, 0
    %s98 = sadd.s32 %s97, 1
    %s99 = scalar_select %p96, %s97, %s98
    %p102 = pneg %p96
    %p103 = scmp.eq.s32.totalorder %s9, 1
    %p104 = por %p102, %p103
    %p105 = scmp.ne.s32.totalorder %s97, %s100
    %p106 = scmp.eq.s32.totalorder %s9, 0
    %p107 = por %p105, %p106
    %p108 = scmp.ne.s32.totalorder %s97, %s100
    %p109 = scmp.eq.s32.totalorder %s14, 1
    %p110 = por %p108, %p109
    %p111 = scmp.ne.s32.totalorder %s100, %s101
    %p112 = scmp.eq.s32.totalorder %s14, 0
    %p113 = por %p111, %p112
    %p114 = scmp.ne.s32.totalorder %s100, %s101
    %p115 = scmp.eq.s32.totalorder %s15, 1
    %p116 = por %p114, %p115
    %p118 = scmp.ne.s32.totalorder %s101, %s117
    %p119 = scmp.eq.s32.totalorder %s15, 0
    %p120 = por %p118, %p119
    %p121 = scmp.le.s32.totalorder 1, %s9
    %p122 = scmp.lt.s32.totalorder %s9, 3
    %p123 = pnand %p121, %p122
    %p124 = pneg %p123
    // Predicated region
    $region9: #{vanilla_transformer_forward.40} parent=5 // pred_check
      _
    $region10: #{vanilla_transformer_forward.40} parent=5 // pred_check_branch
      %126 = sbr.rel (%p123) target = $region12
    $region11: #{vanilla_transformer_forward.40} parent=5 // pred_region
      %s127 = ssub.s32 %s9, 1
    $region12: #{vanilla_transformer_forward.40} parent=5 // pred_fallthru
      _
    %p128 = scmp.lt.s32.totalorder %s9, 2
    // Predicated region
    $region13: #{vanilla_transformer_forward.40} parent=5 // pred_check
      %p129 = pneg %p128
    $region14: #{vanilla_transformer_forward.40} parent=5 // pred_check_branch
      %131 = sbr.rel (%p129) target = $region16
    $region15: #{vanilla_transformer_forward.40} parent=5 // pred_region
      // Predicated region
      $region17: #{vanilla_transformer_forward.40} parent=15 // pred_check
        %p132 = pneg %p29
      $region18: #{vanilla_transformer_forward.40} parent=15 // pred_check_branch
        %134 = sbr.rel (%p132) target = $region20
      $region19: #{vanilla_transformer_forward.40} parent=15 // pred_region
        %p135 = scmp.lt.s32.totalorder %s9, 1
        %s136 = scalar_select %p135, %s9, 1
        %s137 = smul.addr %s136, 8
        %s138 = scalar_lea.vmem %s0, %s137
      $region20: #{vanilla_transformer_forward.40} parent=15 // pred_fallthru
        _
      // Predicated region
      $region21: #{vanilla_transformer_forward.40} parent=15 // pred_check
        %p139 = pneg %p55
      $region22: #{vanilla_transformer_forward.40} parent=15 // pred_check_branch
        %141 = sbr.rel (%p139) target = $region24
      $region23: #{vanilla_transformer_forward.40} parent=15 // pred_region
        %p142 = scmp.lt.s32.totalorder %s9, 1
        %s143 = scalar_select %p142, %s9, 1
        %s144 = smul.addr %s143, 8
        %s145 = scalar_lea.vmem %s1, %s144
      $region24: #{vanilla_transformer_forward.40} parent=15 // pred_fallthru
        _
      // Predicated region
      $region25: #{vanilla_transformer_forward.40} parent=15 // pred_check
        %p146 = pneg %p81
      $region26: #{vanilla_transformer_forward.40} parent=15 // pred_check_branch
        %148 = sbr.rel (%p146) target = $region28
      $region27: #{vanilla_transformer_forward.40} parent=15 // pred_region
        %p149 = scmp.lt.s32.totalorder %s9, 1
        %s150 = scalar_select %p149, %s9, 1
        %s151 = scalar_lea.vmem %s2, %s150
      $region28: #{vanilla_transformer_forward.40} parent=15 // pred_fallthru
        _
    $region16: #{vanilla_transformer_forward.40} parent=5 // pred_fallthru
      _
    %p152 = scmp.le.s32.totalorder 1, %s9
    %p153 = scmp.lt.s32.totalorder %s9, 3
    %p154 = pnand %p152, %p153
    %p155 = pneg %p154
    // Predicated region
    $region29: #{vanilla_transformer_forward.40} parent=5 // pred_check
      _
    $region30: #{vanilla_transformer_forward.40} parent=5 // pred_check_branch
      %157 = sbr.rel (%p154) target = $region32
    $region31: #{vanilla_transformer_forward.40} parent=5 // pred_region
      %s158 = ssub.s32 %s9, 1
      %p159 = scmp.lt.s32.totalorder %s14, 1
      %s160 = scalar_select %p159, %s14, 1
      %s161 = smul.addr %s160, 8
      %s162 = scalar_lea.vmem %s0, %s161
      %p163 = pneg %p35
      %p164 = pneg %p32
      %p165 = scmp.lt.s32.totalorder %s14, 1
      %s166 = scalar_select %p165, %s14, 1
      %s167 = smul.addr %s166, 8
      %s168 = scalar_lea.vmem %s1, %s167
      %p169 = pneg %p61
      %p170 = pneg %p58
      %p171 = scmp.lt.s32.totalorder %s14, 1
      %s172 = scalar_select %p171, %s14, 1
      %s173 = scalar_lea.vmem %s2, %s172
      %p174 = pneg %p87
      %p175 = pneg %p84
      %p176 = pneg %p113
      %p177 = pneg %p110
      %p178 = scmp.lt.s32.totalorder %s14, 1
      %s179 = scalar_select %p178, %s14, 1
      %s180 = smul.addr %s179, 8
      %s181 = scalar_lea.vmem %s3, %s180
      %p182 = scmp.lt.s32.totalorder %s14, 1
      %s183 = scalar_select %p182, %s14, 1
      %s184 = smul.addr %s183, 8
      %s185 = scalar_lea.vmem %s0, %s184
      %p186 = scmp.lt.s32.totalorder %s14, 1
      %s187 = scalar_select %p186, %s14, 1
      %s188 = smul.addr %s187, 8
      %s189 = scalar_lea.vmem %s1, %s188
      %p190 = scmp.lt.s32.totalorder %s14, 1
      %s191 = scalar_select %p190, %s14, 1
      %s192 = scalar_lea.vmem %s2, %s191
      %p193 = scmp.lt.s32.totalorder %s14, 1
      %s194 = scalar_select %p193, %s14, 1
      %s195 = smul.addr %s194, 8
      %s196 = scalar_lea.vmem %s3, %s195
      %v198 = vld [vmem:[%s185] sm:$0xff]
      %v199 = vmul.f32 %v198, 0.35355338
      %v200 = vld [vmem:[%s189] sm:$0xff]
      %v201 = vld [vmem:[%s192] sm:$0x1]
      %203 = vset.pattern.permute.xlu0 0
      %204 = vperm.xlu0 %203, %v200
      %v205 = vpop.permute.xlu0 %204
      %v208 = vlaneseq
      %v209 = vshrl.u32 %v208, 7
      %v210 = vsub.s32 0, %v209
      %v211 = vrot.slane %v201, %v210
      %v213 = vmul.f32 %v205, %v211
      %v214 = vlaneseq
      %v215 = vshrl.u32 %v214, 7
      %v216 = vlaneseq
      %v217 = vand.u32 %v216, 127
      %vm218 = vcmp.le.s32.totalorder %v217, %v215
      %v219 = vsel %vm218, 1, 0
      %v220 = vcvt.s32.f32 %v219
      %v221 = vmul.f32 %v213, %v220
      %vm222 = vcmp.gt.f32.partialorder %v221, 0.5
      %v223 = vpack.c.bf16 %v199, %v199
      %v224 = vpack.c.bf16 %v198, %v198
      %226 = vrot.lane.b32.xlu0 %v224, 96
      %v227 = vpop.permute.xlu0 %226
      %vm228 = vcmask 64512
      %v230 = vsel %vm228, %v223, 0
      %v233 = vsel %vm228, %v227, 0
      %235 = vmatprep.subr.bf16.mxu0 0
      %236 = vmatpush1.bf16.xpose.msra.mxu0 %v233
      %237 = vmatprep.subr.bf16.mxu0 0
      %238 = vmatpush1.bf16.xpose.msra.mxu0 0
      %239 = vmatprep.subr.bf16.mxu0 0
      %240 = vmatpush1.bf16.xpose.msra.mxu0 0
      %241 = vmatprep.subr.bf16.mxu0 0
      %242 = vmatpush1.bf16.xpose.msra.mxu0 0
      %243 = vmatprep.subr.bf16.mxu0 0
      %244 = vmatpush1.bf16.xpose.msra.mxu0 0
      %245 = vmatprep.subr.bf16.mxu0 0
      %246 = vmatpush1.bf16.xpose.msra.mxu0 0
      %247 = vmatprep.subr.bf16.mxu0 0
      %248 = vmatpush1.bf16.xpose.msra.mxu0 0
      %249 = vmatprep.subr.bf16.mxu0 0
      %250 = vmatpush1.bf16.xpose.msra.mxu0 0
      %251 = vmatprep.subr.bf16.mxu0 0
      %252 = vmatpush1.bf16.xpose.msra.mxu0 0
      %253 = vmatprep.subr.bf16.mxu0 0
      %254 = vmatpush1.bf16.xpose.msra.mxu0 0
      %255 = vmatprep.subr.bf16.mxu0 0
      %256 = vmatpush1.bf16.xpose.msra.mxu0 0
      %257 = vmatprep.subr.bf16.mxu0 0
      %258 = vmatpush1.bf16.xpose.msra.mxu0 0
      %259 = vmatprep.subr.bf16.mxu0 0
      %260 = vmatpush1.bf16.xpose.msra.mxu0 0
      %261 = vmatprep.subr.bf16.mxu0 0
      %262 = vmatpush1.bf16.xpose.msra.mxu0 0
      %263 = vmatprep.subr.bf16.mxu0 0
      %264 = vmatpush1.bf16.xpose.msra.mxu0 0
      %265 = vmatprep.subr.bf16.mxu0 0
      %266 = vmatpush1.bf16.xpose.msra.mxu0 0
      %267 = vmatprep.mubr.bf16.mxu0 0
      %268 = vmatmul.mubr.bf16.gmra.mrb[0].mxu0 %v230
      %v269 = vpop.f32.mrb[0].mxu0
      %v270 = vadd.f32 0.0, %v269
      %v271 = vpop.f32.mrb[0].mxu0
      %v272 = vpop.f32.mrb[0].mxu0
      %v273 = vpop.f32.mrb[0].mxu0
      %274 = vdwg.mxu0
      %v275 = vsel %vm222, %v270, -1e+09
      %v276 = vsel %vm228, %v275, -inf
      %277 = vmax.xlane.f32.xlu0 %v276
      %v278 = vpop.xlane.xlu0 %277
      %v279 = vsub.f32 %v275, %v278
      %v280 = vmul.f32 %v279, 1.442695
      %v281 = vpow.pop %v280
      %v282 = vsel %vm228, %v281, 0.0
      %283 = vadd.xlane.f32.xlu0 %v282
      %v284 = vpop.xlane.xlu0 %283
      %v285 = vrcp.pop %v284
      %v286 = vpack.c.bf16 %v281, %v281
      %287 = vrot.lane.b32.xlu0 %v224, 64
      %v288 = vpop.permute.xlu0 %287
      %v290 = vsel %vm228, %v286, 0
      %vm292 = vcmask 1043456
      %v294 = vsel %vm292, %v288, 0
      %296 = vmatprep.subr.bf16.mxu0 0
      %297 = vmatpush1.bf16.msra.mxu0 %v294
      %298 = vmatprep.subr.bf16.mxu0 0
      %299 = vmatpush1.bf16.msra.mxu0 0
      %300 = vmatprep.subr.bf16.mxu0 0
      %301 = vmatpush1.bf16.msra.mxu0 0
      %302 = vmatprep.subr.bf16.mxu0 0
      %303 = vmatpush1.bf16.msra.mxu0 0
      %304 = vmatprep.subr.bf16.mxu0 0
      %305 = vmatpush1.bf16.msra.mxu0 0
      %306 = vmatprep.subr.bf16.mxu0 0
      %307 = vmatpush1.bf16.msra.mxu0 0
      %308 = vmatprep.subr.bf16.mxu0 0
      %309 = vmatpush1.bf16.msra.mxu0 0
      %310 = vmatprep.subr.bf16.mxu0 0
      %311 = vmatpush1.bf16.msra.mxu0 0
      %312 = vmatprep.subr.bf16.mxu0 0
      %313 = vmatpush1.bf16.msra.mxu0 0
      %314 = vmatprep.subr.bf16.mxu0 0
      %315 = vmatpush1.bf16.msra.mxu0 0
      %316 = vmatprep.subr.bf16.mxu0 0
      %317 = vmatpush1.bf16.msra.mxu0 0
      %318 = vmatprep.subr.bf16.mxu0 0
      %319 = vmatpush1.bf16.msra.mxu0 0
      %320 = vmatprep.subr.bf16.mxu0 0
      %321 = vmatpush1.bf16.msra.mxu0 0
      %322 = vmatprep.subr.bf16.mxu0 0
      %323 = vmatpush1.bf16.msra.mxu0 0
      %324 = vmatprep.subr.bf16.mxu0 0
      %325 = vmatpush1.bf16.msra.mxu0 0
      %326 = vmatprep.subr.bf16.mxu0 0
      %327 = vmatpush1.bf16.msra.mxu0 0
      %328 = vmatprep.mubr.bf16.mxu0 0
      %329 = vmatmul.mubr.bf16.gmra.mrb[0].mxu0 %v290
      %v330 = vpop.f32.mrb[0].mxu0
      %v331 = vadd.f32 0.0, %v330
      %v332 = vpop.f32.mrb[0].mxu0
      %v333 = vpop.f32.mrb[0].mxu0
      %v334 = vpop.f32.mrb[0].mxu0
      %335 = vdwg.mxu0
      %v336 = vmul.f32 %v331, %v285
      %338 = vrot.lane.b32.xlu0 %v223, 120
      %v339 = vpop.permute.xlu0 %338
      %340 = vrot.lane.b32.xlu0 %v224, 88
      %v341 = vpop.permute.xlu0 %340
      %v343 = vsel %vm228, %v339, 0
      %v346 = vsel %vm228, %v341, 0
      %348 = vmatprep.subr.bf16.mxu0 0
      %349 = vmatpush1.bf16.xpose.msra.mxu0 %v346
      %350 = vmatprep.subr.bf16.mxu0 0
      %351 = vmatpush1.bf16.xpose.msra.mxu0 0
      %352 = vmatprep.subr.bf16.mxu0 0
      %353 = vmatpush1.bf16.xpose.msra.mxu0 0
      %354 = vmatprep.subr.bf16.mxu0 0
      %355 = vmatpush1.bf16.xpose.msra.mxu0 0
      %356 = vmatprep.subr.bf16.mxu0 0
      %357 = vmatpush1.bf16.xpose.msra.mxu0 0
      %358 = vmatprep.subr.bf16.mxu0 0
      %359 = vmatpush1.bf16.xpose.msra.mxu0 0
      %360 = vmatprep.subr.bf16.mxu0 0
      %361 = vmatpush1.bf16.xpose.msra.mxu0 0
      %362 = vmatprep.subr.bf16.mxu0 0
      %363 = vmatpush1.bf16.xpose.msra.mxu0 0
      %364 = vmatprep.subr.bf16.mxu0 0
      %365 = vmatpush1.bf16.xpose.msra.mxu0 0
      %366 = vmatprep.subr.bf16.mxu0 0
      %367 = vmatpush1.bf16.xpose.msra.mxu0 0
      %368 = vmatprep.subr.bf16.mxu0 0
      %369 = vmatpush1.bf16.xpose.msra.mxu0 0
      %370 = vmatprep.subr.bf16.mxu0 0
      %371 = vmatpush1.bf16.xpose.msra.mxu0 0
      %372 = vmatprep.subr.bf16.mxu0 0
      %373 = vmatpush1.bf16.xpose.msra.mxu0 0
      %374 = vmatprep.subr.bf16.mxu0 0
      %375 = vmatpush1.bf16.xpose.msra.mxu0 0
      %376 = vmatprep.subr.bf16.mxu0 0
      %377 = vmatpush1.bf16.xpose.msra.mxu0 0
      %378 = vmatprep.subr.bf16.mxu0 0
      %379 = vmatpush1.bf16.xpose.msra.mxu0 0
      %380 = vmatprep.mubr.bf16.mxu0 0
      %381 = vmatmul.mubr.bf16.gmra.mrb[0].mxu0 %v343
      %v382 = vpop.f32.mrb[0].mxu0
      %v383 = vadd.f32 0.0, %v382
      %v384 = vpop.f32.mrb[0].mxu0
      %v385 = vpop.f32.mrb[0].mxu0
      %v386 = vpop.f32.mrb[0].mxu0
      %387 = vdwg.mxu0
      %v388 = vsel %vm222, %v383, -1e+09
      %v389 = vsel %vm228, %v388, -inf
      %390 = vmax.xlane.f32.xlu0 %v389
      %v391 = vpop.xlane.xlu0 %390
      %v392 = vsub.f32 %v388, %v391
      %v393 = vmul.f32 %v392, 1.442695
      %v394 = vpow.pop %v393
      %v395 = vsel %vm228, %v394, 0.0
      %396 = vadd.xlane.f32.xlu0 %v395
      %v397 = vpop.xlane.xlu0 %396
      %v398 = vrcp.pop %v397
      %v399 = vpack.c.bf16 %v394, %v394
      %400 = vrot.lane.b32.xlu0 %v224, 56
      %v401 = vpop.permute.xlu0 %400
      %v403 = vsel %vm228, %v399, 0
      %v406 = vsel %vm292, %v401, 0
      %408 = vmatprep.subr.bf16.mxu0 0
      %409 = vmatpush1.bf16.msra.mxu0 %v406
      %410 = vmatprep.subr.bf16.mxu0 0
      %411 = vmatpush1.bf16.msra.mxu0 0
      %412 = vmatprep.subr.bf16.mxu0 0
      %413 = vmatpush1.bf16.msra.mxu0 0
      %414 = vmatprep.subr.bf16.mxu0 0
      %415 = vmatpush1.bf16.msra.mxu0 0
      %416 = vmatprep.subr.bf16.mxu0 0
      %417 = vmatpush1.bf16.msra.mxu0 0
      %418 = vmatprep.subr.bf16.mxu0 0
      %419 = vmatpush1.bf16.msra.mxu0 0
      %420 = vmatprep.subr.bf16.mxu0 0
      %421 = vmatpush1.bf16.msra.mxu0 0
      %422 = vmatprep.subr.bf16.mxu0 0
      %423 = vmatpush1.bf16.msra.mxu0 0
      %424 = vmatprep.subr.bf16.mxu0 0
      %425 = vmatpush1.bf16.msra.mxu0 0
      %426 = vmatprep.subr.bf16.mxu0 0
      %427 = vmatpush1.bf16.msra.mxu0 0
      %428 = vmatprep.subr.bf16.mxu0 0
      %429 = vmatpush1.bf16.msra.mxu0 0
      %430 = vmatprep.subr.bf16.mxu0 0
      %431 = vmatpush1.bf16.msra.mxu0 0
      %432 = vmatprep.subr.bf16.mxu0 0
      %433 = vmatpush1.bf16.msra.mxu0 0
      %434 = vmatprep.subr.bf16.mxu0 0
      %435 = vmatpush1.bf16.msra.mxu0 0
      %436 = vmatprep.subr.bf16.mxu0 0
      %437 = vmatpush1.bf16.msra.mxu0 0
      %438 = vmatprep.subr.bf16.mxu0 0
      %439 = vmatpush1.bf16.msra.mxu0 0
      %440 = vmatprep.mubr.bf16.mxu0 0
      %441 = vmatmul.mubr.bf16.gmra.mrb[0].mxu0 %v403
      %v442 = vpop.f32.mrb[0].mxu0
      %v443 = vadd.f32 0.0, %v442
      %v444 = vpop.f32.mrb[0].mxu0
      %v445 = vpop.f32.mrb[0].mxu0
      %v446 = vpop.f32.mrb[0].mxu0
      %447 = vdwg.mxu0
      %v448 = vmul.f32 %v443, %v398
      %449 = vrot.lane.b32.xlu0 %v223, 112
      %v450 = vpop.permute.xlu0 %449
      %451 = vrot.lane.b32.xlu0 %v224, 80
      %v452 = vpop.permute.xlu0 %451
      %v454 = vsel %vm228, %v450, 0
      %v457 = vsel %vm228, %v452, 0
      %459 = vmatprep.subr.bf16.mxu0 0
      %460 = vmatpush1.bf16.xpose.msra.mxu0 %v457
      %461 = vmatprep.subr.bf16.mxu0 0
      %462 = vmatpush1.bf16.xpose.msra.mxu0 0
      %463 = vmatprep.subr.bf16.mxu0 0
      %464 = vmatpush1.bf16.xpose.msra.mxu0 0
      %465 = vmatprep.subr.bf16.mxu0 0
      %466 = vmatpush1.bf16.xpose.msra.mxu0 0
      %467 = vmatprep.subr.bf16.mxu0 0
      %468 = vmatpush1.bf16.xpose.msra.mxu0 0
      %469 = vmatprep.subr.bf16.mxu0 0
      %470 = vmatpush1.bf16.xpose.msra.mxu0 0
      %471 = vmatprep.subr.bf16.mxu0 0
      %472 = vmatpush1.bf16.xpose.msra.mxu0 0
      %473 = vmatprep.subr.bf16.mxu0 0
      %474 = vmatpush1.bf16.xpose.msra.mxu0 0
      %475 = vmatprep.subr.bf16.mxu0 0
      %476 = vmatpush1.bf16.xpose.msra.mxu0 0
      %477 = vmatprep.subr.bf16.mxu0 0
      %478 = vmatpush1.bf16.xpose.msra.mxu0 0
      %479 = vmatprep.subr.bf16.mxu0 0
      %480 = vmatpush1.bf16.xpose.msra.mxu0 0
      %481 = vmatprep.subr.bf16.mxu0 0
      %482 = vmatpush1.bf16.xpose.msra.mxu0 0
      %483 = vmatprep.subr.bf16.mxu0 0
      %484 = vmatpush1.bf16.xpose.msra.mxu0 0
      %485 = vmatprep.subr.bf16.mxu0 0
      %486 = vmatpush1.bf16.xpose.msra.mxu0 0
      %487 = vmatprep.subr.bf16.mxu0 0
      %488 = vmatpush1.bf16.xpose.msra.mxu0 0
      %489 = vmatprep.subr.bf16.mxu0 0
      %490 = vmatpush1.bf16.xpose.msra.mxu0 0
      %491 = vmatprep.mubr.bf16.mxu0 0
      %492 = vmatmul.mubr.bf16.gmra.mrb[0].mxu0 %v454
      %v493 = vpop.f32.mrb[0].mxu0
      %v494 = vadd.f32 0.0, %v493
      %v495 = vpop.f32.mrb[0].mxu0
      %v496 = vpop.f32.mrb[0].mxu0
      %v497 = vpop.f32.mrb[0].mxu0
      %498 = vdwg.mxu0
      %v499 = vsel %vm222, %v494, -1e+09
      %v500 = vsel %vm228, %v499, -inf
      %501 = vmax.xlane.f32.xlu0 %v500
      %v502 = vpop.xlane.xlu0 %501
      %v503 = vsub.f32 %v499, %v502
      %v504 = vmul.f32 %v503, 1.442695
      %v505 = vpow.pop %v504
      %v506 = vsel %vm228, %v505, 0.0
      %507 = vadd.xlane.f32.xlu0 %v506
      %v508 = vpop.xlane.xlu0 %507
      %v509 = vrcp.pop %v508
      %v510 = vpack.c.bf16 %v505, %v505
      %511 = vrot.lane.b32.xlu0 %v224, 48
      %v512 = vpop.permute.xlu0 %511
      %v514 = vsel %vm228, %v510, 0
      %v517 = vsel %vm292, %v512, 0
      %519 = vmatprep.subr.bf16.mxu0 0
      %520 = vmatpush1.bf16.msra.mxu0 %v517
      %521 = vmatprep.subr.bf16.mxu0 0
      %522 = vmatpush1.bf16.msra.mxu0 0
      %523 = vmatprep.subr.bf16.mxu0 0
      %524 = vmatpush1.bf16.msra.mxu0 0
      %525 = vmatprep.subr.bf16.mxu0 0
      %526 = vmatpush1.bf16.msra.mxu0 0
      %527 = vmatprep.subr.bf16.mxu0 0
      %528 = vmatpush1.bf16.msra.mxu0 0
      %529 = vmatprep.subr.bf16.mxu0 0
      %530 = vmatpush1.bf16.msra.mxu0 0
      %531 = vmatprep.subr.bf16.mxu0 0
      %532 = vmatpush1.bf16.msra.mxu0 0
      %533 = vmatprep.subr.bf16.mxu0 0
      %534 = vmatpush1.bf16.msra.mxu0 0
      %535 = vmatprep.subr.bf16.mxu0 0
      %536 = vmatpush1.bf16.msra.mxu0 0
      %537 = vmatprep.subr.bf16.mxu0 0
      %538 = vmatpush1.bf16.msra.mxu0 0
      %539 = vmatprep.subr.bf16.mxu0 0
      %540 = vmatpush1.bf16.msra.mxu0 0
      %541 = vmatprep.subr.bf16.mxu0 0
      %542 = vmatpush1.bf16.msra.mxu0 0
      %543 = vmatprep.subr.bf16.mxu0 0
      %544 = vmatpush1.bf16.msra.mxu0 0
      %545 = vmatprep.subr.bf16.mxu0 0
      %546 = vmatpush1.bf16.msra.mxu0 0
      %547 = vmatprep.subr.bf16.mxu0 0
      %548 = vmatpush1.bf16.msra.mxu0 0
      %549 = vmatprep.subr.bf16.mxu0 0
      %550 = vmatpush1.bf16.msra.mxu0 0
      %551 = vmatprep.mubr.bf16.mxu0 0
      %552 = vmatmul.mubr.bf16.gmra.mrb[0].mxu0 %v514
      %v553 = vpop.f32.mrb[0].mxu0
      %v554 = vadd.f32 0.0, %v553
      %v555 = vpop.f32.mrb[0].mxu0
      %v556 = vpop.f32.mrb[0].mxu0
      %v557 = vpop.f32.mrb[0].mxu0
      %558 = vdwg.mxu0
      %v559 = vmul.f32 %v554, %v509
      %560 = vrot.lane.b32.xlu0 %v223, 104
      %v561 = vpop.permute.xlu0 %560
      %562 = vrot.lane.b32.xlu0 %v224, 72
      %v563 = vpop.permute.xlu0 %562
      %v565 = vsel %vm228, %v561, 0
      %v568 = vsel %vm228, %v563, 0
      %570 = vmatprep.subr.bf16.mxu0 0
      %571 = vmatpush1.bf16.xpose.msra.mxu0 %v568
      %572 = vmatprep.subr.bf16.mxu0 0
      %573 = vmatpush1.bf16.xpose.msra.mxu0 0
      %574 = vmatprep.subr.bf16.mxu0 0
      %575 = vmatpush1.bf16.xpose.msra.mxu0 0
      %576 = vmatprep.subr.bf16.mxu0 0
      %577 = vmatpush1.bf16.xpose.msra.mxu0 0
      %578 = vmatprep.subr.bf16.mxu0 0
      %579 = vmatpush1.bf16.xpose.msra.mxu0 0
      %580 = vmatprep.subr.bf16.mxu0 0
      %581 = vmatpush1.bf16.xpose.msra.mxu0 0
      %582 = vmatprep.subr.bf16.mxu0 0
      %583 = vmatpush1.bf16.xpose.msra.mxu0 0
      %584 = vmatprep.subr.bf16.mxu0 0
      %585 = vmatpush1.bf16.xpose.msra.mxu0 0
      %586 = vmatprep.subr.bf16.mxu0 0
      %587 = vmatpush1.bf16.xpose.msra.mxu0 0
      %588 = vmatprep.subr.bf16.mxu0 0
      %589 = vmatpush1.bf16.xpose.msra.mxu0 0
      %590 = vmatprep.subr.bf16.mxu0 0
      %591 = vmatpush1.bf16.xpose.msra.mxu0 0
      %592 = vmatprep.subr.bf16.mxu0 0
      %593 = vmatpush1.bf16.xpose.msra.mxu0 0
      %594 = vmatprep.subr.bf16.mxu0 0
      %595 = vmatpush1.bf16.xpose.msra.mxu0 0
      %596 = vmatprep.subr.bf16.mxu0 0
      %597 = vmatpush1.bf16.xpose.msra.mxu0 0
      %598 = vmatprep.subr.bf16.mxu0 0
      %599 = vmatpush1.bf16.xpose.msra.mxu0 0
      %600 = vmatprep.subr.bf16.mxu0 0
      %601 = vmatpush1.bf16.xpose.msra.mxu0 0
      %602 = vmatprep.mubr.bf16.mxu0 0
      %603 = vmatmul.mubr.bf16.gmra.mrb[0].mxu0 %v565
      %v604 = vpop.f32.mrb[0].mxu0
      %v605 = vadd.f32 0.0, %v604
      %v606 = vpop.f32.mrb[0].mxu0
      %v607 = vpop.f32.mrb[0].mxu0
      %v608 = vpop.f32.mrb[0].mxu0
      %609 = vdwg.mxu0
      %v610 = vsel %vm222, %v605, -1e+09
      %v611 = vsel %vm228, %v610, -inf
      %612 = vmax.xlane.f32.xlu0 %v611
      %v613 = vpop.xlane.xlu0 %612
      %v614 = vsub.f32 %v610, %v613
      %v615 = vmul.f32 %v614, 1.442695
      %v616 = vpow.pop %v615
      %v617 = vsel %vm228, %v616, 0.0
      %618 = vadd.xlane.f32.xlu0 %v617
      %v619 = vpop.xlane.xlu0 %618
      %v620 = vrcp.pop %v619
      %v621 = vpack.c.bf16 %v616, %v616
      %622 = vrot.lane.b32.xlu0 %v224, 40
      %v623 = vpop.permute.xlu0 %622
      %v625 = vsel %vm228, %v621, 0
      %v628 = vsel %vm292, %v623, 0
      %630 = vmatprep.subr.bf16.mxu0 0
      %631 = vmatpush1.bf16.msra.mxu0 %v628
      %632 = vmatprep.subr.bf16.mxu0 0
      %633 = vmatpush1.bf16.msra.mxu0 0
      %634 = vmatprep.subr.bf16.mxu0 0
      %635 = vmatpush1.bf16.msra.mxu0 0
      %636 = vmatprep.subr.bf16.mxu0 0
      %637 = vmatpush1.bf16.msra.mxu0 0
      %638 = vmatprep.subr.bf16.mxu0 0
      %639 = vmatpush1.bf16.msra.mxu0 0
      %640 = vmatprep.subr.bf16.mxu0 0
      %641 = vmatpush1.bf16.msra.mxu0 0
      %642 = vmatprep.subr.bf16.mxu0 0
      %643 = vmatpush1.bf16.msra.mxu0 0
      %644 = vmatprep.subr.bf16.mxu0 0
      %645 = vmatpush1.bf16.msra.mxu0 0
      %646 = vmatprep.subr.bf16.mxu0 0
      %647 = vmatpush1.bf16.msra.mxu0 0
      %648 = vmatprep.subr.bf16.mxu0 0
      %649 = vmatpush1.bf16.msra.mxu0 0
      %650 = vmatprep.subr.bf16.mxu0 0
      %651 = vmatpush1.bf16.msra.mxu0 0
      %652 = vmatprep.subr.bf16.mxu0 0
      %653 = vmatpush1.bf16.msra.mxu0 0
      %654 = vmatprep.subr.bf16.mxu0 0
      %655 = vmatpush1.bf16.msra.mxu0 0
      %656 = vmatprep.subr.bf16.mxu0 0
      %657 = vmatpush1.bf16.msra.mxu0 0
      %658 = vmatprep.subr.bf16.mxu0 0
      %659 = vmatpush1.bf16.msra.mxu0 0
      %660 = vmatprep.subr.bf16.mxu0 0
      %661 = vmatpush1.bf16.msra.mxu0 0
      %662 = vmatprep.mubr.bf16.mxu0 0
      %663 = vmatmul.mubr.bf16.gmra.mrb[0].mxu0 %v625
      %v664 = vpop.f32.mrb[0].mxu0
      %v665 = vadd.f32 0.0, %v664
      %v666 = vpop.f32.mrb[0].mxu0
      %v667 = vpop.f32.mrb[0].mxu0
      %v668 = vpop.f32.mrb[0].mxu0
      %669 = vdwg.mxu0
      %v670 = vmul.f32 %v665, %v620
      %672 = vrot.lane.b32.xlu0 %v448, 8
      %v673 = vpop.permute.xlu0 %672
      %676 = vrot.lane.b32.xlu0 %v559, 16
      %v677 = vpop.permute.xlu0 %676
      %680 = vrot.lane.b32.xlu0 %v670, 24
      %v681 = vpop.permute.xlu0 %680
      %v683 = vsel %vm228, %v336, %v673
      %vm684 = vcmask 130048
      %v685 = vsel %vm684, %v683, %v677
      %vm686 = vcmask 195584
      %v687 = vsel %vm686, %v685, %v681
      %vm688 = vcmask 261120
      %689 = vst.msk [vmem:[%s196] sm:$0xff] %vm688, %v687
      %p690 = scmp.lt.s32.totalorder %s14, 1
      %s691 = scalar_select %p690, %s14, 1
      %s692 = smul.addr %s691, 8
      %s693 = scalar_lea.vmem %s3, %s692
      // Predicated region
      $region33: #{vanilla_transformer_forward.40} parent=31 // pred_check
        %p694 = pneg %p110
      $region34: #{vanilla_transformer_forward.40} parent=31 // pred_check_branch
        %696 = sbr.rel (%p694) target = $region36
      $region35: #{vanilla_transformer_forward.40} parent=31 // pred_region
        _
      $region36: #{vanilla_transformer_forward.40} parent=31 // pred_fallthru
        _
    $region32: #{vanilla_transformer_forward.40} parent=5 // pred_fallthru
      _
    %p697 = scmp.le.s32.totalorder 2, %s9
    // Predicated region
    $region37: #{vanilla_transformer_forward.40} parent=5 // pred_check
      %p698 = pneg %p697
    $region38: #{vanilla_transformer_forward.40} parent=5 // pred_check_branch
      %700 = sbr.rel (%p698) target = $region40
    $region39: #{vanilla_transformer_forward.40} parent=5 // pred_region
      %s701 = ssub.s32 %s9, 2
      // Predicated region
      $region41: #{vanilla_transformer_forward.40} parent=39 // pred_check
        %p702 = pneg %p116
      $region42: #{vanilla_transformer_forward.40} parent=39 // pred_check_branch
        %704 = sbr.rel (%p702) target = $region44
      $region43: #{vanilla_transformer_forward.40} parent=39 // pred_region
        %p705 = scmp.lt.s32.totalorder %s15, 1
        %s706 = scalar_select %p705, %s15, 1
        %s707 = smul.addr %s706, 8
        %s708 = scalar_lea.vmem %s3, %s707
      $region44: #{vanilla_transformer_forward.40} parent=39 // pred_fallthru
        _
    $region40: #{vanilla_transformer_forward.40} parent=5 // pred_fallthru
      _
  $region6: #{vanilla_transformer_forward.40} parent=0 // loop_footer
    %s13 = sadd.s32 1, %s9
  $region7: #{vanilla_transformer_forward.40} parent=0 // loop_footer_branch
    %8 = sbr.rel target = $region3
  $region8: #{vanilla_transformer_forward.40} parent=0 // loop_exit
    _

// kernel: vanilla_transformer_forward.44
$region0: #{vanilla_transformer_forward.44}
  #allocation0 [shape = 'u32[]', space=smem, size = 0x4, offset = 0x4, fixed_abs, tag = 'smem constant byte address 0x4 - core index']
  #allocation1 [shape = 'u32[144,128]{1,0:T(1,128)}', space=vmem, size = 0x12000, scoped, tag = 'internal scratch']
  %s0 = inlined_call_operand.vmem [shape: f32[2,8,32], index: 0, kind: input, shape index: {}]
  %s1 = inlined_call_operand.vmem [shape: f32[2,8,64], index: 1, kind: input, shape index: {}]
  %s2 = inlined_call_operand.vmem [shape: f32[2,1,8], index: 2, kind: input, shape index: {}]
  %s3 = inlined_call_operand.vmem [shape: f32[2,8,32], index: 3, kind: output, shape index: {}]
  %s4 = sld [smem:[#allocation0]]
  $region45: #{vanilla_transformer_forward.44} parent=0
    _
  %s6 = ssub.s32 1, %s4
  %s7 = scalar_select 0, %s6, %s4
  loop: start=0, step=1, limit=4
  $region2: #{vanilla_transformer_forward.44} parent=0 // loop_pre_header
    _
  $region3: #{vanilla_transformer_forward.44} parent=0 // loop_header
    %s9 = sphi 0, %s13
    %p10 = scmp.ge.s32.totalorder %s9, 4
    %s19 = sphi 0, %s21
    %s22 = sphi 0, %s19
    %s23 = sphi 0, %s22
    %s39 = sphi 0, %s23
    %s45 = sphi 0, %s47
    %s48 = sphi 0, %s45
    %s49 = sphi 0, %s48
    %s65 = sphi 0, %s49
    %s71 = sphi 0, %s73
    %s74 = sphi 0, %s71
    %s75 = sphi 0, %s74
    %s91 = sphi 0, %s75
    %s97 = sphi 0, %s99
    %s100 = sphi 0, %s97
    %s101 = sphi 0, %s100
    %s117 = sphi 0, %s101
  $region4: #{vanilla_transformer_forward.44} parent=0 // loop_header_branch
    %12 = sbr.rel (%p10) target = $region8
  $region5: #{vanilla_transformer_forward.44} parent=0 // loop_body
    %s14 = ssub.s32 %s9, 1
    %s15 = ssub.s32 %s9, 2
    %s16 = sadd.s32 %s9, 1
    %s17 = ssub.s32 %s9, %s16
    %p18 = scmp.eq.s32.totalorder %s17, 0
    %s20 = sadd.s32 %s19, 1
    %s21 = scalar_select %p18, %s19, %s20
    %p24 = pneg %p18
    %p25 = scmp.eq.s32.totalorder %s9, 1
    %p26 = por %p24, %p25
    %p27 = scmp.ne.s32.totalorder %s19, %s22
    %p28 = scmp.eq.s32.totalorder %s9, 0
    %p29 = por %p27, %p28
    %p30 = scmp.ne.s32.totalorder %s19, %s22
    %p31 = scmp.eq.s32.totalorder %s14, 1
    %p32 = por %p30, %p31
    %p33 = scmp.ne.s32.totalorder %s22, %s23
    %p34 = scmp.eq.s32.totalorder %s14, 0
    %p35 = por %p33, %p34
    %p36 = scmp.ne.s32.totalorder %s22, %s23
    %p37 = scmp.eq.s32.totalorder %s15, 1
    %p38 = por %p36, %p37
    %p40 = scmp.ne.s32.totalorder %s23, %s39
    %p41 = scmp.eq.s32.totalorder %s15, 0
    %p42 = por %p40, %p41
    %s43 = ssub.s32 %s9, %s16
    %p44 = scmp.eq.s32.totalorder %s43, 0
    %s46 = sadd.s32 %s45, 1
    %s47 = scalar_select %p44, %s45, %s46
    %p50 = pneg %p44
    %p51 = scmp.eq.s32.totalorder %s9, 1
    %p52 = por %p50, %p51
    %p53 = scmp.ne.s32.totalorder %s45, %s48
    %p54 = scmp.eq.s32.totalorder %s9, 0
    %p55 = por %p53, %p54
    %p56 = scmp.ne.s32.totalorder %s45, %s48
    %p57 = scmp.eq.s32.totalorder %s14, 1
    %p58 = por %p56, %p57
    %p59 = scmp.ne.s32.totalorder %s48, %s49
    %p60 = scmp.eq.s32.totalorder %s14, 0
    %p61 = por %p59, %p60
    %p62 = scmp.ne.s32.totalorder %s48, %s49
    %p63 = scmp.eq.s32.totalorder %s15, 1
    %p64 = por %p62, %p63
    %p66 = scmp.ne.s32.totalorder %s49, %s65
    %p67 = scmp.eq.s32.totalorder %s15, 0
    %p68 = por %p66, %p67
    %s69 = ssub.s32 %s9, %s16
    %p70 = scmp.eq.s32.totalorder %s69, 0
    %s72 = sadd.s32 %s71, 1
    %s73 = scalar_select %p70, %s71, %s72
    %p76 = pneg %p70
    %p77 = scmp.eq.s32.totalorder %s9, 1
    %p78 = por %p76, %p77
    %p79 = scmp.ne.s32.totalorder %s71, %s74
    %p80 = scmp.eq.s32.totalorder %s9, 0
    %p81 = por %p79, %p80
    %p82 = scmp.ne.s32.totalorder %s71, %s74
    %p83 = scmp.eq.s32.totalorder %s14, 1
    %p84 = por %p82, %p83
    %p85 = scmp.ne.s32.totalorder %s74, %s75
    %p86 = scmp.eq.s32.totalorder %s14, 0
    %p87 = por %p85, %p86
    %p88 = scmp.ne.s32.totalorder %s74, %s75
    %p89 = scmp.eq.s32.totalorder %s15, 1
    %p90 = por %p88, %p89
    %p92 = scmp.ne.s32.totalorder %s75, %s91
    %p93 = scmp.eq.s32.totalorder %s15, 0
    %p94 = por %p92, %p93
    %s95 = ssub.s32 %s9, %s16
    %p96 = scmp.eq.s32.totalorder %s95, 0
    %s98 = sadd.s32 %s97, 1
    %s99 = scalar_select %p96, %s97, %s98
    %p102 = pneg %p96
    %p103 = scmp.eq.s32.totalorder %s9, 1
    %p104 = por %p102, %p103
    %p105 = scmp.ne.s32.totalorder %s97, %s100
    %p106 = scmp.eq.s32.totalorder %s9, 0
    %p107 = por %p105, %p106
    %p108 = scmp.ne.s32.totalorder %s97, %s100
    %p109 = scmp.eq.s32.totalorder %s14, 1
    %p110 = por %p108, %p109
    %p111 = scmp.ne.s32.totalorder %s100, %s101
    %p112 = scmp.eq.s32.totalorder %s14, 0
    %p113 = por %p111, %p112
    %p114 = scmp.ne.s32.totalorder %s100, %s101
    %p115 = scmp.eq.s32.totalorder %s15, 1
    %p116 = por %p114, %p115
    %p118 = scmp.ne.s32.totalorder %s101, %s117
    %p119 = scmp.eq.s32.totalorder %s15, 0
    %p120 = por %p118, %p119
    %p121 = scmp.le.s32.totalorder 1, %s9
    %p122 = scmp.lt.s32.totalorder %s9, 3
    %p123 = pnand %p121, %p122
    %p124 = pneg %p123
    // Predicated region
    $region9: #{vanilla_transformer_forward.44} parent=5 // pred_check
      _
    $region10: #{vanilla_transformer_forward.44} parent=5 // pred_check_branch
      %126 = sbr.rel (%p123) target = $region12
    $region11: #{vanilla_transformer_forward.44} parent=5 // pred_region
      %s127 = ssub.s32 %s9, 1
    $region12: #{vanilla_transformer_forward.44} parent=5 // pred_fallthru
      _
    %p128 = scmp.lt.s32.totalorder %s9, 2
    // Predicated region
    $region13: #{vanilla_transformer_forward.44} parent=5 // pred_check
      %p129 = pneg %p128
    $region14: #{vanilla_transformer_forward.44} parent=5 // pred_check_branch
      %131 = sbr.rel (%p129) target = $region16
    $region15: #{vanilla_transformer_forward.44} parent=5 // pred_region
      // Predicated region
      $region17: #{vanilla_transformer_forward.44} parent=15 // pred_check
        %p132 = pneg %p29
      $region18: #{vanilla_transformer_forward.44} parent=15 // pred_check_branch
        %134 = sbr.rel (%p132) target = $region20
      $region19: #{vanilla_transformer_forward.44} parent=15 // pred_region
        %p135 = scmp.lt.s32.totalorder %s9, 1
        %s136 = scalar_select %p135, %s9, 1
        %s137 = smul.addr %s136, 8
        %s138 = scalar_lea.vmem %s0, %s137
      $region20: #{vanilla_transformer_forward.44} parent=15 // pred_fallthru
        _
      // Predicated region
      $region21: #{vanilla_transformer_forward.44} parent=15 // pred_check
        %p139 = pneg %p55
      $region22: #{vanilla_transformer_forward.44} parent=15 // pred_check_branch
        %141 = sbr.rel (%p139) target = $region24
      $region23: #{vanilla_transformer_forward.44} parent=15 // pred_region
        %p142 = scmp.lt.s32.totalorder %s9, 1
        %s143 = scalar_select %p142, %s9, 1
        %s144 = smul.addr %s143, 8
        %s145 = scalar_lea.vmem %s1, %s144
      $region24: #{vanilla_transformer_forward.44} parent=15 // pred_fallthru
        _
      // Predicated region
      $region25: #{vanilla_transformer_forward.44} parent=15 // pred_check
        %p146 = pneg %p81
      $region26: #{vanilla_transformer_forward.44} parent=15 // pred_check_branch
        %148 = sbr.rel (%p146) target = $region28
      $region27: #{vanilla_transformer_forward.44} parent=15 // pred_region
        %p149 = scmp.lt.s32.totalorder %s9, 1
        %s150 = scalar_select %p149, %s9, 1
        %s151 = scalar_lea.vmem %s2, %s150
      $region28: #{vanilla_transformer_forward.44} parent=15 // pred_fallthru
        _
    $region16: #{vanilla_transformer_forward.44} parent=5 // pred_fallthru
      _
    %p152 = scmp.le.s32.totalorder 1, %s9
    %p153 = scmp.lt.s32.totalorder %s9, 3
    %p154 = pnand %p152, %p153
    %p155 = pneg %p154
    // Predicated region
    $region29: #{vanilla_transformer_forward.44} parent=5 // pred_check
      _
    $region30: #{vanilla_transformer_forward.44} parent=5 // pred_check_branch
      %157 = sbr.rel (%p154) target = $region32
    $region31: #{vanilla_transformer_forward.44} parent=5 // pred_region
      %s158 = ssub.s32 %s9, 1
      %p159 = scmp.lt.s32.totalorder %s14, 1
      %s160 = scalar_select %p159, %s14, 1
      %s161 = smul.addr %s160, 8
      %s162 = scalar_lea.vmem %s0, %s161
      %p163 = pneg %p35
      %p164 = pneg %p32
      %p165 = scmp.lt.s32.totalorder %s14, 1
      %s166 = scalar_select %p165, %s14, 1
      %s167 = smul.addr %s166, 8
      %s168 = scalar_lea.vmem %s1, %s167
      %p169 = pneg %p61
      %p170 = pneg %p58
      %p171 = scmp.lt.s32.totalorder %s14, 1
      %s172 = scalar_select %p171, %s14, 1
      %s173 = scalar_lea.vmem %s2, %s172
      %p174 = pneg %p87
      %p175 = pneg %p84
      %p176 = pneg %p113
      %p177 = pneg %p110
      %p178 = scmp.lt.s32.totalorder %s14, 1
      %s179 = scalar_select %p178, %s14, 1
      %s180 = smul.addr %s179, 8
      %s181 = scalar_lea.vmem %s3, %s180
      %p182 = scmp.lt.s32.totalorder %s14, 1
      %s183 = scalar_select %p182, %s14, 1
      %s184 = smul.addr %s183, 8
      %s185 = scalar_lea.vmem %s0, %s184
      %p186 = scmp.lt.s32.totalorder %s14, 1
      %s187 = scalar_select %p186, %s14, 1
      %s188 = smul.addr %s187, 8
      %s189 = scalar_lea.vmem %s1, %s188
      %p190 = scmp.lt.s32.totalorder %s14, 1
      %s191 = scalar_select %p190, %s14, 1
      %s192 = scalar_lea.vmem %s2, %s191
      %p193 = scmp.lt.s32.totalorder %s14, 1
      %s194 = scalar_select %p193, %s14, 1
      %s195 = smul.addr %s194, 8
      %s196 = scalar_lea.vmem %s3, %s195
      %v198 = vld [vmem:[%s185] sm:$0xff]
      %v199 = vmul.f32 %v198, 0.35355338
      %v200 = vld [vmem:[%s189] sm:$0xff]
      %v201 = vld [vmem:[%s192] sm:$0x1]
      %vm202 = vcmp.gt.f32.partialorder %v201, 0.5
      %v203 = vpack.c.bf16 %v199, %v199
      %v204 = vpack.c.bf16 %v200, %v200
      %vm205 = vcmask 64512
      %v207 = vsel %vm205, %v203, 0
      %v210 = vsel %vm205, %v204, 0
      %212 = vmatprep.subr.bf16.mxu0 0
      %213 = vmatpush1.bf16.xpose.msra.mxu0 %v210
      %214 = vmatprep.subr.bf16.mxu0 0
      %215 = vmatpush1.bf16.xpose.msra.mxu0 0
      %216 = vmatprep.subr.bf16.mxu0 0
      %217 = vmatpush1.bf16.xpose.msra.mxu0 0
      %218 = vmatprep.subr.bf16.mxu0 0
      %219 = vmatpush1.bf16.xpose.msra.mxu0 0
      %220 = vmatprep.subr.bf16.mxu0 0
      %221 = vmatpush1.bf16.xpose.msra.mxu0 0
      %222 = vmatprep.subr.bf16.mxu0 0
      %223 = vmatpush1.bf16.xpose.msra.mxu0 0
      %224 = vmatprep.subr.bf16.mxu0 0
      %225 = vmatpush1.bf16.xpose.msra.mxu0 0
      %226 = vmatprep.subr.bf16.mxu0 0
      %227 = vmatpush1.bf16.xpose.msra.mxu0 0
      %228 = vmatprep.subr.bf16.mxu0 0
      %229 = vmatpush1.bf16.xpose.msra.mxu0 0
      %230 = vmatprep.subr.bf16.mxu0 0
      %231 = vmatpush1.bf16.xpose.msra.mxu0 0
      %232 = vmatprep.subr.bf16.mxu0 0
      %233 = vmatpush1.bf16.xpose.msra.mxu0 0
      %234 = vmatprep.subr.bf16.mxu0 0
      %235 = vmatpush1.bf16.xpose.msra.mxu0 0
      %236 = vmatprep.subr.bf16.mxu0 0
      %237 = vmatpush1.bf16.xpose.msra.mxu0 0
      %238 = vmatprep.subr.bf16.mxu0 0
      %239 = vmatpush1.bf16.xpose.msra.mxu0 0
      %240 = vmatprep.subr.bf16.mxu0 0
      %241 = vmatpush1.bf16.xpose.msra.mxu0 0
      %242 = vmatprep.subr.bf16.mxu0 0
      %243 = vmatpush1.bf16.xpose.msra.mxu0 0
      %244 = vmatprep.mubr.bf16.mxu0 0
      %245 = vmatmul.mubr.bf16.gmra.mrb[0].mxu0 %v207
      %v246 = vpop.f32.mrb[0].mxu0
      %v247 = vadd.f32 0.0, %v246
      %v248 = vpop.f32.mrb[0].mxu0
      %v249 = vpop.f32.mrb[0].mxu0
      %v250 = vpop.f32.mrb[0].mxu0
      %251 = vdwg.mxu0
      %v252 = vsel %vm202, 1, 0
      %v253 = vlaneseq
      %v254 = vshrl.u32 %v253, 7
      %v255 = vsub.s32 0, %v254
      %v256 = vrot.slane %v252, %v255
      %vm257 = vcmp.eq.s32.totalorder %v256, 1
      %v258 = vsel %vm257, %v247, -1e+09
      %v259 = vsel %vm205, %v258, -inf
      %260 = vmax.xlane.f32.xlu0 %v259
      %v261 = vpop.xlane.xlu0 %260
      %v262 = vsub.f32 %v258, %v261
      %v263 = vmul.f32 %v262, 1.442695
      %v264 = vpow.pop %v263
      %v265 = vsel %vm205, %v264, 0.0
      %266 = vadd.xlane.f32.xlu0 %v265
      %v267 = vpop.xlane.xlu0 %266
      %v268 = vrcp.pop %v267
      %v269 = vpack.c.bf16 %v264, %v264
      %271 = vrot.lane.b32.xlu0 %v204, 96
      %v272 = vpop.permute.xlu0 %271
      %v274 = vsel %vm205, %v269, 0
      %vm276 = vcmask 1043456
      %v278 = vsel %vm276, %v272, 0
      %280 = vmatprep.subr.bf16.mxu0 0
      %281 = vmatpush1.bf16.msra.mxu0 %v278
      %282 = vmatprep.subr.bf16.mxu0 0
      %283 = vmatpush1.bf16.msra.mxu0 0
      %284 = vmatprep.subr.bf16.mxu0 0
      %285 = vmatpush1.bf16.msra.mxu0 0
      %286 = vmatprep.subr.bf16.mxu0 0
      %287 = vmatpush1.bf16.msra.mxu0 0
      %288 = vmatprep.subr.bf16.mxu0 0
      %289 = vmatpush1.bf16.msra.mxu0 0
      %290 = vmatprep.subr.bf16.mxu0 0
      %291 = vmatpush1.bf16.msra.mxu0 0
      %292 = vmatprep.subr.bf16.mxu0 0
      %293 = vmatpush1.bf16.msra.mxu0 0
      %294 = vmatprep.subr.bf16.mxu0 0
      %295 = vmatpush1.bf16.msra.mxu0 0
      %296 = vmatprep.subr.bf16.mxu0 0
      %297 = vmatpush1.bf16.msra.mxu0 0
      %298 = vmatprep.subr.bf16.mxu0 0
      %299 = vmatpush1.bf16.msra.mxu0 0
      %300 = vmatprep.subr.bf16.mxu0 0
      %301 = vmatpush1.bf16.msra.mxu0 0
      %302 = vmatprep.subr.bf16.mxu0 0
      %303 = vmatpush1.bf16.msra.mxu0 0
      %304 = vmatprep.subr.bf16.mxu0 0
      %305 = vmatpush1.bf16.msra.mxu0 0
      %306 = vmatprep.subr.bf16.mxu0 0
      %307 = vmatpush1.bf16.msra.mxu0 0
      %308 = vmatprep.subr.bf16.mxu0 0
      %309 = vmatpush1.bf16.msra.mxu0 0
      %310 = vmatprep.subr.bf16.mxu0 0
      %311 = vmatpush1.bf16.msra.mxu0 0
      %312 = vmatprep.mubr.bf16.mxu0 0
      %313 = vmatmul.mubr.bf16.gmra.mrb[0].mxu0 %v274
      %v314 = vpop.f32.mrb[0].mxu0
      %v315 = vadd.f32 0.0, %v314
      %v316 = vpop.f32.mrb[0].mxu0
      %v317 = vpop.f32.mrb[0].mxu0
      %v318 = vpop.f32.mrb[0].mxu0
      %319 = vdwg.mxu0
      %v320 = vmul.f32 %v315, %v268
      %322 = vrot.lane.b32.xlu0 %v203, 120
      %v323 = vpop.permute.xlu0 %322
      %324 = vrot.lane.b32.xlu0 %v204, 120
      %v325 = vpop.permute.xlu0 %324
      %v327 = vsel %vm205, %v323, 0
      %v330 = vsel %vm205, %v325, 0
      %332 = vmatprep.subr.bf16.mxu0 0
      %333 = vmatpush1.bf16.xpose.msra.mxu0 %v330
      %334 = vmatprep.subr.bf16.mxu0 0
      %335 = vmatpush1.bf16.xpose.msra.mxu0 0
      %336 = vmatprep.subr.bf16.mxu0 0
      %337 = vmatpush1.bf16.xpose.msra.mxu0 0
      %338 = vmatprep.subr.bf16.mxu0 0
      %339 = vmatpush1.bf16.xpose.msra.mxu0 0
      %340 = vmatprep.subr.bf16.mxu0 0
      %341 = vmatpush1.bf16.xpose.msra.mxu0 0
      %342 = vmatprep.subr.bf16.mxu0 0
      %343 = vmatpush1.bf16.xpose.msra.mxu0 0
      %344 = vmatprep.subr.bf16.mxu0 0
      %345 = vmatpush1.bf16.xpose.msra.mxu0 0
      %346 = vmatprep.subr.bf16.mxu0 0
      %347 = vmatpush1.bf16.xpose.msra.mxu0 0
      %348 = vmatprep.subr.bf16.mxu0 0
      %349 = vmatpush1.bf16.xpose.msra.mxu0 0
      %350 = vmatprep.subr.bf16.mxu0 0
      %351 = vmatpush1.bf16.xpose.msra.mxu0 0
      %352 = vmatprep.subr.bf16.mxu0 0
      %353 = vmatpush1.bf16.xpose.msra.mxu0 0
      %354 = vmatprep.subr.bf16.mxu0 0
      %355 = vmatpush1.bf16.xpose.msra.mxu0 0
      %356 = vmatprep.subr.bf16.mxu0 0
      %357 = vmatpush1.bf16.xpose.msra.mxu0 0
      %358 = vmatprep.subr.bf16.mxu0 0
      %359 = vmatpush1.bf16.xpose.msra.mxu0 0
      %360 = vmatprep.subr.bf16.mxu0 0
      %361 = vmatpush1.bf16.xpose.msra.mxu0 0
      %362 = vmatprep.subr.bf16.mxu0 0
      %363 = vmatpush1.bf16.xpose.msra.mxu0 0
      %364 = vmatprep.mubr.bf16.mxu0 0
      %365 = vmatmul.mubr.bf16.gmra.mrb[0].mxu0 %v327
      %v366 = vpop.f32.mrb[0].mxu0
      %v367 = vadd.f32 0.0, %v366
      %v368 = vpop.f32.mrb[0].mxu0
      %v369 = vpop.f32.mrb[0].mxu0
      %v370 = vpop.f32.mrb[0].mxu0
      %371 = vdwg.mxu0
      %v372 = vsel %vm257, %v367, -1e+09
      %v373 = vsel %vm205, %v372, -inf
      %374 = vmax.xlane.f32.xlu0 %v373
      %v375 = vpop.xlane.xlu0 %374
      %v376 = vsub.f32 %v372, %v375
      %v377 = vmul.f32 %v376, 1.442695
      %v378 = vpow.pop %v377
      %v379 = vsel %vm205, %v378, 0.0
      %380 = vadd.xlane.f32.xlu0 %v379
      %v381 = vpop.xlane.xlu0 %380
      %v382 = vrcp.pop %v381
      %v383 = vpack.c.bf16 %v378, %v378
      %384 = vrot.lane.b32.xlu0 %v204, 88
      %v385 = vpop.permute.xlu0 %384
      %v387 = vsel %vm205, %v383, 0
      %v390 = vsel %vm276, %v385, 0
      %392 = vmatprep.subr.bf16.mxu0 0
      %393 = vmatpush1.bf16.msra.mxu0 %v390
      %394 = vmatprep.subr.bf16.mxu0 0
      %395 = vmatpush1.bf16.msra.mxu0 0
      %396 = vmatprep.subr.bf16.mxu0 0
      %397 = vmatpush1.bf16.msra.mxu0 0
      %398 = vmatprep.subr.bf16.mxu0 0
      %399 = vmatpush1.bf16.msra.mxu0 0
      %400 = vmatprep.subr.bf16.mxu0 0
      %401 = vmatpush1.bf16.msra.mxu0 0
      %402 = vmatprep.subr.bf16.mxu0 0
      %403 = vmatpush1.bf16.msra.mxu0 0
      %404 = vmatprep.subr.bf16.mxu0 0
      %405 = vmatpush1.bf16.msra.mxu0 0
      %406 = vmatprep.subr.bf16.mxu0 0
      %407 = vmatpush1.bf16.msra.mxu0 0
      %408 = vmatprep.subr.bf16.mxu0 0
      %409 = vmatpush1.bf16.msra.mxu0 0
      %410 = vmatprep.subr.bf16.mxu0 0
      %411 = vmatpush1.bf16.msra.mxu0 0
      %412 = vmatprep.subr.bf16.mxu0 0
      %413 = vmatpush1.bf16.msra.mxu0 0
      %414 = vmatprep.subr.bf16.mxu0 0
      %415 = vmatpush1.bf16.msra.mxu0 0
      %416 = vmatprep.subr.bf16.mxu0 0
      %417 = vmatpush1.bf16.msra.mxu0 0
      %418 = vmatprep.subr.bf16.mxu0 0
      %419 = vmatpush1.bf16.msra.mxu0 0
      %420 = vmatprep.subr.bf16.mxu0 0
      %421 = vmatpush1.bf16.msra.mxu0 0
      %422 = vmatprep.subr.bf16.mxu0 0
      %423 = vmatpush1.bf16.msra.mxu0 0
      %424 = vmatprep.mubr.bf16.mxu0 0
      %425 = vmatmul.mubr.bf16.gmra.mrb[0].mxu0 %v387
      %v426 = vpop.f32.mrb[0].mxu0
      %v427 = vadd.f32 0.0, %v426
      %v428 = vpop.f32.mrb[0].mxu0
      %v429 = vpop.f32.mrb[0].mxu0
      %v430 = vpop.f32.mrb[0].mxu0
      %431 = vdwg.mxu0
      %v432 = vmul.f32 %v427, %v382
      %433 = vrot.lane.b32.xlu0 %v203, 112
      %v434 = vpop.permute.xlu0 %433
      %435 = vrot.lane.b32.xlu0 %v204, 112
      %v436 = vpop.permute.xlu0 %435
      %v438 = vsel %vm205, %v434, 0
      %v441 = vsel %vm205, %v436, 0
      %443 = vmatprep.subr.bf16.mxu0 0
      %444 = vmatpush1.bf16.xpose.msra.mxu0 %v441
      %445 = vmatprep.subr.bf16.mxu0 0
      %446 = vmatpush1.bf16.xpose.msra.mxu0 0
      %447 = vmatprep.subr.bf16.mxu0 0
      %448 = vmatpush1.bf16.xpose.msra.mxu0 0
      %449 = vmatprep.subr.bf16.mxu0 0
      %450 = vmatpush1.bf16.xpose.msra.mxu0 0
      %451 = vmatprep.subr.bf16.mxu0 0
      %452 = vmatpush1.bf16.xpose.msra.mxu0 0
      %453 = vmatprep.subr.bf16.mxu0 0
      %454 = vmatpush1.bf16.xpose.msra.mxu0 0
      %455 = vmatprep.subr.bf16.mxu0 0
      %456 = vmatpush1.bf16.xpose.msra.mxu0 0
      %457 = vmatprep.subr.bf16.mxu0 0
      %458 = vmatpush1.bf16.xpose.msra.mxu0 0
      %459 = vmatprep.subr.bf16.mxu0 0
      %460 = vmatpush1.bf16.xpose.msra.mxu0 0
      %461 = vmatprep.subr.bf16.mxu0 0
      %462 = vmatpush1.bf16.xpose.msra.mxu0 0
      %463 = vmatprep.subr.bf16.mxu0 0
      %464 = vmatpush1.bf16.xpose.msra.mxu0 0
      %465 = vmatprep.subr.bf16.mxu0 0
      %466 = vmatpush1.bf16.xpose.msra.mxu0 0
      %467 = vmatprep.subr.bf16.mxu0 0
      %468 = vmatpush1.bf16.xpose.msra.mxu0 0
      %469 = vmatprep.subr.bf16.mxu0 0
      %470 = vmatpush1.bf16.xpose.msra.mxu0 0
      %471 = vmatprep.subr.bf16.mxu0 0
      %472 = vmatpush1.bf16.xpose.msra.mxu0 0
      %473 = vmatprep.subr.bf16.mxu0 0
      %474 = vmatpush1.bf16.xpose.msra.mxu0 0
      %475 = vmatprep.mubr.bf16.mxu0 0
      %476 = vmatmul.mubr.bf16.gmra.mrb[0].mxu0 %v438
      %v477 = vpop.f32.mrb[0].mxu0
      %v478 = vadd.f32 0.0, %v477
      %v479 = vpop.f32.mrb[0].mxu0
      %v480 = vpop.f32.mrb[0].mxu0
      %v481 = vpop.f32.mrb[0].mxu0
      %482 = vdwg.mxu0
      %v483 = vsel %vm257, %v478, -1e+09
      %v484 = vsel %vm205, %v483, -inf
      %485 = vmax.xlane.f32.xlu0 %v484
      %v486 = vpop.xlane.xlu0 %485
      %v487 = vsub.f32 %v483, %v486
      %v488 = vmul.f32 %v487, 1.442695
      %v489 = vpow.pop %v488
      %v490 = vsel %vm205, %v489, 0.0
      %491 = vadd.xlane.f32.xlu0 %v490
      %v492 = vpop.xlane.xlu0 %491
      %v493 = vrcp.pop %v492
      %v494 = vpack.c.bf16 %v489, %v489
      %495 = vrot.lane.b32.xlu0 %v204, 80
      %v496 = vpop.permute.xlu0 %495
      %v498 = vsel %vm205, %v494, 0
      %v501 = vsel %vm276, %v496, 0
      %503 = vmatprep.subr.bf16.mxu0 0
      %504 = vmatpush1.bf16.msra.mxu0 %v501
      %505 = vmatprep.subr.bf16.mxu0 0
      %506 = vmatpush1.bf16.msra.mxu0 0
      %507 = vmatprep.subr.bf16.mxu0 0
      %508 = vmatpush1.bf16.msra.mxu0 0
      %509 = vmatprep.subr.bf16.mxu0 0
      %510 = vmatpush1.bf16.msra.mxu0 0
      %511 = vmatprep.subr.bf16.mxu0 0
      %512 = vmatpush1.bf16.msra.mxu0 0
      %513 = vmatprep.subr.bf16.mxu0 0
      %514 = vmatpush1.bf16.msra.mxu0 0
      %515 = vmatprep.subr.bf16.mxu0 0
      %516 = vmatpush1.bf16.msra.mxu0 0
      %517 = vmatprep.subr.bf16.mxu0 0
      %518 = vmatpush1.bf16.msra.mxu0 0
      %519 = vmatprep.subr.bf16.mxu0 0
      %520 = vmatpush1.bf16.msra.mxu0 0
      %521 = vmatprep.subr.bf16.mxu0 0
      %522 = vmatpush1.bf16.msra.mxu0 0
      %523 = vmatprep.subr.bf16.mxu0 0
      %524 = vmatpush1.bf16.msra.mxu0 0
      %525 = vmatprep.subr.bf16.mxu0 0
      %526 = vmatpush1.bf16.msra.mxu0 0
      %527 = vmatprep.subr.bf16.mxu0 0
      %528 = vmatpush1.bf16.msra.mxu0 0
      %529 = vmatprep.subr.bf16.mxu0 0
      %530 = vmatpush1.bf16.msra.mxu0 0
      %531 = vmatprep.subr.bf16.mxu0 0
      %532 = vmatpush1.bf16.msra.mxu0 0
      %533 = vmatprep.subr.bf16.mxu0 0
      %534 = vmatpush1.bf16.msra.mxu0 0
      %535 = vmatprep.mubr.bf16.mxu0 0
      %536 = vmatmul.mubr.bf16.gmra.mrb[0].mxu0 %v498
      %v537 = vpop.f32.mrb[0].mxu0
      %v538 = vadd.f32 0.0, %v537
      %v539 = vpop.f32.mrb[0].mxu0
      %v540 = vpop.f32.mrb[0].mxu0
      %v541 = vpop.f32.mrb[0].mxu0
      %542 = vdwg.mxu0
      %v543 = vmul.f32 %v538, %v493
      %544 = vrot.lane.b32.xlu0 %v203, 104
      %v545 = vpop.permute.xlu0 %544
      %546 = vrot.lane.b32.xlu0 %v204, 104
      %v547 = vpop.permute.xlu0 %546
      %v549 = vsel %vm205, %v545, 0
      %v552 = vsel %vm205, %v547, 0
      %554 = vmatprep.subr.bf16.mxu0 0
      %555 = vmatpush1.bf16.xpose.msra.mxu0 %v552
      %556 = vmatprep.subr.bf16.mxu0 0
      %557 = vmatpush1.bf16.xpose.msra.mxu0 0
      %558 = vmatprep.subr.bf16.mxu0 0
      %559 = vmatpush1.bf16.xpose.msra.mxu0 0
      %560 = vmatprep.subr.bf16.mxu0 0
      %561 = vmatpush1.bf16.xpose.msra.mxu0 0
      %562 = vmatprep.subr.bf16.mxu0 0
      %563 = vmatpush1.bf16.xpose.msra.mxu0 0
      %564 = vmatprep.subr.bf16.mxu0 0
      %565 = vmatpush1.bf16.xpose.msra.mxu0 0
      %566 = vmatprep.subr.bf16.mxu0 0
      %567 = vmatpush1.bf16.xpose.msra.mxu0 0
      %568 = vmatprep.subr.bf16.mxu0 0
      %569 = vmatpush1.bf16.xpose.msra.mxu0 0
      %570 = vmatprep.subr.bf16.mxu0 0
      %571 = vmatpush1.bf16.xpose.msra.mxu0 0
      %572 = vmatprep.subr.bf16.mxu0 0
      %573 = vmatpush1.bf16.xpose.msra.mxu0 0
      %574 = vmatprep.subr.bf16.mxu0 0
      %575 = vmatpush1.bf16.xpose.msra.mxu0 0
      %576 = vmatprep.subr.bf16.mxu0 0
      %577 = vmatpush1.bf16.xpose.msra.mxu0 0
      %578 = vmatprep.subr.bf16.mxu0 0
      %579 = vmatpush1.bf16.xpose.msra.mxu0 0
      %580 = vmatprep.subr.bf16.mxu0 0
      %581 = vmatpush1.bf16.xpose.msra.mxu0 0
      %582 = vmatprep.subr.bf16.mxu0 0
      %583 = vmatpush1.bf16.xpose.msra.mxu0 0
      %584 = vmatprep.subr.bf16.mxu0 0
      %585 = vmatpush1.bf16.xpose.msra.mxu0 0
      %586 = vmatprep.mubr.bf16.mxu0 0
      %587 = vmatmul.mubr.bf16.gmra.mrb[0].mxu0 %v549
      %v588 = vpop.f32.mrb[0].mxu0
      %v589 = vadd.f32 0.0, %v588
      %v590 = vpop.f32.mrb[0].mxu0
      %v591 = vpop.f32.mrb[0].mxu0
      %v592 = vpop.f32.mrb[0].mxu0
      %593 = vdwg.mxu0
      %v594 = vsel %vm257, %v589, -1e+09
      %v595 = vsel %vm205, %v594, -inf
      %596 = vmax.xlane.f32.xlu0 %v595
      %v597 = vpop.xlane.xlu0 %596
      %v598 = vsub.f32 %v594, %v597
      %v599 = vmul.f32 %v598, 1.442695
      %v600 = vpow.pop %v599
      %v601 = vsel %vm205, %v600, 0.0
      %602 = vadd.xlane.f32.xlu0 %v601
      %v603 = vpop.xlane.xlu0 %602
      %v604 = vrcp.pop %v603
      %v605 = vpack.c.bf16 %v600, %v600
      %606 = vrot.lane.b32.xlu0 %v204, 72
      %v607 = vpop.permute.xlu0 %606
      %v609 = vsel %vm205, %v605, 0
      %v612 = vsel %vm276, %v607, 0
      %614 = vmatprep.subr.bf16.mxu0 0
      %615 = vmatpush1.bf16.msra.mxu0 %v612
      %616 = vmatprep.subr.bf16.mxu0 0
      %617 = vmatpush1.bf16.msra.mxu0 0
      %618 = vmatprep.subr.bf16.mxu0 0
      %619 = vmatpush1.bf16.msra.mxu0 0
      %620 = vmatprep.subr.bf16.mxu0 0
      %621 = vmatpush1.bf16.msra.mxu0 0
      %622 = vmatprep.subr.bf16.mxu0 0
      %623 = vmatpush1.bf16.msra.mxu0 0
      %624 = vmatprep.subr.bf16.mxu0 0
      %625 = vmatpush1.bf16.msra.mxu0 0
      %626 = vmatprep.subr.bf16.mxu0 0
      %627 = vmatpush1.bf16.msra.mxu0 0
      %628 = vmatprep.subr.bf16.mxu0 0
      %629 = vmatpush1.bf16.msra.mxu0 0
      %630 = vmatprep.subr.bf16.mxu0 0
      %631 = vmatpush1.bf16.msra.mxu0 0
      %632 = vmatprep.subr.bf16.mxu0 0
      %633 = vmatpush1.bf16.msra.mxu0 0
      %634 = vmatprep.subr.bf16.mxu0 0
      %635 = vmatpush1.bf16.msra.mxu0 0
      %636 = vmatprep.subr.bf16.mxu0 0
      %637 = vmatpush1.bf16.msra.mxu0 0
      %638 = vmatprep.subr.bf16.mxu0 0
      %639 = vmatpush1.bf16.msra.mxu0 0
      %640 = vmatprep.subr.bf16.mxu0 0
      %641 = vmatpush1.bf16.msra.mxu0 0
      %642 = vmatprep.subr.bf16.mxu0 0
      %643 = vmatpush1.bf16.msra.mxu0 0
      %644 = vmatprep.subr.bf16.mxu0 0
      %645 = vmatpush1.bf16.msra.mxu0 0
      %646 = vmatprep.mubr.bf16.mxu0 0
      %647 = vmatmul.mubr.bf16.gmra.mrb[0].mxu0 %v609
      %v648 = vpop.f32.mrb[0].mxu0
      %v649 = vadd.f32 0.0, %v648
      %v650 = vpop.f32.mrb[0].mxu0
      %v651 = vpop.f32.mrb[0].mxu0
      %v652 = vpop.f32.mrb[0].mxu0
      %653 = vdwg.mxu0
      %v654 = vmul.f32 %v649, %v604
      %656 = vrot.lane.b32.xlu0 %v432, 8
      %v657 = vpop.permute.xlu0 %656
      %660 = vrot.lane.b32.xlu0 %v543, 16
      %v661 = vpop.permute.xlu0 %660
      %664 = vrot.lane.b32.xlu0 %v654, 24
      %v665 = vpop.permute.xlu0 %664
      %v667 = vsel %vm205, %v320, %v657
      %vm668 = vcmask 130048
      %v669 = vsel %vm668, %v667, %v661
      %vm670 = vcmask 195584
      %v671 = vsel %vm670, %v669, %v665
      %vm672 = vcmask 261120
      %673 = vst.msk [vmem:[%s196] sm:$0xff] %vm672, %v671
      %p674 = scmp.lt.s32.totalorder %s14, 1
      %s675 = scalar_select %p674, %s14, 1
      %s676 = smul.addr %s675, 8
      %s677 = scalar_lea.vmem %s3, %s676
      // Predicated region
      $region33: #{vanilla_transformer_forward.44} parent=31 // pred_check
        %p678 = pneg %p110
      $region34: #{vanilla_transformer_forward.44} parent=31 // pred_check_branch
        %680 = sbr.rel (%p678) target = $region36
      $region35: #{vanilla_transformer_forward.44} parent=31 // pred_region
        _
      $region36: #{vanilla_transformer_forward.44} parent=31 // pred_fallthru
        _
    $region32: #{vanilla_transformer_forward.44} parent=5 // pred_fallthru
      _
    %p681 = scmp.le.s32.totalorder 2, %s9
    // Predicated region
    $region37: #{vanilla_transformer_forward.44} parent=5 // pred_check
      %p682 = pneg %p681
    $region38: #{vanilla_transformer_forward.44} parent=5 // pred_check_branch
      %684 = sbr.rel (%p682) target = $region40
    $region39: #{vanilla_transformer_forward.44} parent=5 // pred_region
      %s685 = ssub.s32 %s9, 2
      // Predicated region
      $region41: #{vanilla_transformer_forward.44} parent=39 // pred_check
        %p686 = pneg %p116
      $region42: #{vanilla_transformer_forward.44} parent=39 // pred_check_branch
        %688 = sbr.rel (%p686) target = $region44
      $region43: #{vanilla_transformer_forward.44} parent=39 // pred_region
        %p689 = scmp.lt.s32.totalorder %s15, 1
        %s690 = scalar_select %p689, %s15, 1
        %s691 = smul.addr %s690, 8
        %s692 = scalar_lea.vmem %s3, %s691
      $region44: #{vanilla_transformer_forward.44} parent=39 // pred_fallthru
        _
    $region40: #{vanilla_transformer_forward.44} parent=5 // pred_fallthru
      _
  $region6: #{vanilla_transformer_forward.44} parent=0 // loop_footer
    %s13 = sadd.s32 1, %s9
  $region7: #{vanilla_transformer_forward.44} parent=0 // loop_footer_branch
    %8 = sbr.rel target = $region3
  $region8: #{vanilla_transformer_forward.44} parent=0 // loop_exit
    _

</llo_original>
